<compile_context>
chip_gen: v5e
topology: v5e:2x2
jax: 0.10.0
libtpu: 0.0.40
codegen_flags: <defaults>
</compile_context>

<pallas_src>
import jax
import jax.numpy as jnp
from jax.experimental import pallas as pl
from jax.experimental.pallas import tpu as pltpu


# ----------------------------- Pallas kernel -----------------------------

def _make_coupled_conv3x3_kernel(add_x0: bool):
    """Kernel body.  Refs (in order):
      x_ref  : (1, H, W, C)      bf16 image (unpadded), one batch element per grid step
      x0_ref : (1, H*W, Cout)    other reversible stream (only if add_x0)
      w_ref  : (3, 3*C, Cout)    bf16 weights, slab per kh; row within slab = kw*C + ci
      b_ref  : (1, Cout)         f32 bias
      y_ref  : (1, H*W, Cout)    f32 output: y = x0 + conv3x3(x1) + b
      xc_ref : (H, W, 3*C)       bf16 VMEM scratch: kw-shifted, lane-concatenated image
    """

    def kernel(*refs):
        if add_x0:
            x_ref, x0_ref, w_ref, b_ref, y_ref, xc_ref = refs
        else:
            x_ref, w_ref, b_ref, y_ref, xc_ref = refs

        _, h, w, c = x_ref.shape
        hw = h * w

        x = x_ref[0]                                        # (H, W, C) bf16

        # --- build the kw-shifted image in the VMEM scratch (no HBM im2col / pad) ---
        #   xc[r, col, kw*C + ci] = x[r, col + kw - 1, ci], zero outside [0, W)
        # Zeroing the whole scratch each step keeps the boundary columns zero and makes
        # the kernel independent of cross-iteration scratch state (megacore-safe).
        xc_ref[...] = jnp.zeros(xc_ref.shape, xc_ref.dtype)
        xc_ref[:, 1:, 0:c] = x[:, :w - 1, :]                # kw = 0  (dw = -1)
        xc_ref[:, :, c:2 * c] = x                           # kw = 1  (dw =  0), aligned
        xc_ref[:, :w - 1, 2 * c:3 * c] = x[:, 1:, :]        # kw = 2  (dw = +1)

        # --- kh = 1 (dh = 0): full extent; fold bias (+ coupling) into the init write ---
        acc = jnp.dot(xc_ref[...].reshape(hw, 3 * c), w_ref[1],
                      preferred_element_type=jnp.float32)   # bf16 MXU, f32 accum
        acc = acc + b_ref[...]
        if add_x0:
            acc = acc + x0_ref[0].astype(jnp.float32)       # additive coupling, f32
        y_ref[0] = acc.astype(y_ref.dtype)

        # --- kh = 0 (dh = -1): input rows [0, H-1) contribute to output rows [1, H) ---
        top = jnp.dot(xc_ref[:h - 1].reshape((h - 1) * w, 3 * c), w_ref[0],
                      preferred_element_type=jnp.float32)
        y_ref[0, w:hw, :] += top                            # 8-aligned window RMW

        # --- kh = 2 (dh = +1): input rows [1, H) contribute to output rows [0, H-1) ---
        bot = jnp.dot(xc_ref[1:].reshape((h - 1) * w, 3 * c), w_ref[2],
                      preferred_element_type=jnp.float32)
        y_ref[0, 0:(h - 1) * w, :] += bot

    return kernel


def coupled_conv3x3_pallas(x0_flat, x1_nhwc, w_fused, bias,
                           *, vmem_limit_bytes=48 * 1024 * 1024):
    """y = x0 + conv3x3(x1) + bias, returned flattened as (N, H*W, Cout) in f32.

    x0_flat: (N, H*W, Cout) or None (first module: x0 == 0, stream skipped)
    x1_nhwc: (N, H, W, Cin)  unpadded NHWC activations (bf16 recommended)
    w_fused: (3, 3*Cin, Cout) weights, slab per kh, row within slab = kw*Cin + ci
    bias   : (1, Cout) f32
    """
    n, h, w, c = x1_nhwc.shape
    kh_, k3c, cout = w_fused.shape
    assert (kh_, k3c) == (3, 3 * c)
    assert h >= 2 and w >= 2
    hw = h * w
    add_x0 = x0_flat is not None

    # Whole-image-resident tiling (M = H*W).  Double-buffered blocks + scratch must fit
    # the per-core VMEM budget (64 MiB on v7x, 128 MiB on v5e/v6e).
    # TODO(synk): for large feature maps, add an H-tile grid axis with halo handling
    # (or manual halo DMA via memory_space=pl.ANY) instead of the full-image block.
    def _nbytes(shape, dtype):
        sz = 1
        for d in shape:
            sz *= d
        return sz * jnp.dtype(dtype).itemsize

    resident = 2 * (_nbytes((1, h, w, c), x1_nhwc.dtype)
                    + _nbytes((3, k3c, cout), w_fused.dtype)
                    + _nbytes((1, cout), bias.dtype)
                    + _nbytes((1, hw, cout), jnp.float32)
                    + (_nbytes((1, hw, cout), x0_flat.dtype) if add_x0 else 0))
    resident += _nbytes((h, w, 3 * c), x1_nhwc.dtype)
    assert resident < vmem_limit_bytes, (
        f"whole-image-resident tiling needs ~{resident} B VMEM; add an H-tile axis")

    kernel = _make_coupled_conv3x3_kernel(add_x0)

    in_specs = [pl.BlockSpec((1, h, w, c), lambda i: (i, 0, 0, 0))]
    inputs = [x1_nhwc]
    if add_x0:
        in_specs.append(pl.BlockSpec((1, hw, cout), lambda i: (i, 0, 0)))
        inputs.append(x0_flat)
    in_specs += [
        pl.BlockSpec((3, k3c, cout), lambda i: (0, 0, 0)),   # weight-stationary
        pl.BlockSpec((1, cout), lambda i: (0, 0)),
    ]
    inputs += [w_fused, bias]

    return pl.pallas_call(
        kernel,
        out_shape=jax.ShapeDtypeStruct((n, hw, cout), jnp.float32),
        grid_spec=pltpu.PrefetchScalarGridSpec(
            num_scalar_prefetch=0,
            grid=(n,),                                       # batch only -> megacore
            in_specs=in_specs,                               #   shards on N (v7x item)
            out_specs=pl.BlockSpec((1, hw, cout), lambda i: (i, 0, 0)),
            scratch_shapes=[pltpu.VMEM((h, w, 3 * c), x1_nhwc.dtype)],
        ),
        compiler_params=pltpu.CompilerParams(
            dimension_semantics=("parallel",),
            # 48 MiB: above the 32 MiB scoped default (v5e/v6e item), still well inside
            # v7x's 64 MiB physical VMEM.  Actual use here is ~1.5 MiB.
            vmem_limit_bytes=vmem_limit_bytes,
        ),
    )(*inputs)


# ------------------------------- JAX glue -------------------------------

class SingleBranchReversibleModuleJAX:
    """Forward-pass equivalent of revlib's SingleBranchReversibleModule with
    wrapped_module = Conv2d(C, C, 3, padding=1) and additive coupling.
    Activations are NHWC end-to-end; MXU operands are bf16, coupling/bias f32."""

    def __init__(self, secondary_branch_buffer, weight_hwio, bias,
                 first=False, last=False, compute_dtype=jnp.bfloat16):
        self.buffer = secondary_branch_buffer
        kh, kw, cin, cout = weight_hwio.shape
        assert (kh, kw) == (3, 3)
        # (3, 3*Cin, Cout): one K=3C slab per kh; row within a slab = kw*Cin + ci.
        self.w_fused = weight_hwio.reshape(kh, kw * cin, cout).astype(compute_dtype)
        self.bias = bias.reshape(1, cout).astype(jnp.float32)
        self.first = first
        self.last = last
        self.compute_dtype = compute_dtype

    def __call__(self, x1_nhwc):
        n, h, w, c = x1_nhwc.shape
        if self.first:
            self.buffer.clear()
            x0_flat = None                     # x0 == 0: skip the stream entirely
        else:
            x0_nhwc = self.buffer.pop()[0]
            x0_flat = x0_nhwc.reshape(n, h * w, -1)          # free reshape

        # TODO(synk): backward-pass machinery (_ReversibleHalfResidualSwapFn.backward,
        # saved_tensors_hooks replay, RNG-state capture, _ReplaceGrad, target_device
        # copies) is autograd-only and has no forward-compute Pallas equivalent.
        x1_k = x1_nhwc.astype(self.compute_dtype)            # bf16 MXU operands
        y_flat = coupled_conv3x3_pallas(x0_flat, x1_k, self.w_fused, self.bias)
        y_nhwc = y_flat.reshape(n, h, w, -1)                  # free reshape

        if not self.last:
            # Forward only needs x1; revlib's extra `back` entries feed the backward pass.
            self.buffer.append([x1_nhwc])
        return y_nhwc


# -------------------------------- driver --------------------------------

if __name__ == "__main__":
    key = jax.random.PRNGKey(0)
    # C = 128 so channel tiles are lane-dense (128-wide stores / MXU-N).
    N, C, H, W = 2, 128, 16, 16
    k1, k2, k3, k4, k5 = jax.random.split(key, 5)

    x_nchw = jax.random.normal(k1, (N, C, H, W), jnp.float32)

    # deterministic, PyTorch-Conv2d-style uniform init (fan_in = C * 3 * 3)
    bound = 1.0 / float((C * 9) ** 0.5)
    w1 = jax.random.uniform(k2, (3, 3, C, C), jnp.float32, -bound, bound)   # HWIO
    b1 = jax.random.uniform(k3, (C,), jnp.float32, -bound, bound)
    w2 = jax.random.uniform(k4, (3, 3, C, C), jnp.float32, -bound, bound)
    b2 = jax.random.uniform(k5, (C,), jnp.float32, -bound, bound)

    # single NCHW->NHWC transpose for the whole reversible stack
    x = jnp.transpose(x_nchw, (0, 2, 3, 1))

    secondary_branch_buffer = []
    mod_first = SingleBranchReversibleModuleJAX(secondary_branch_buffer, w1, b1, first=True)
    mod_last = SingleBranchReversibleModuleJAX(secondary_branch_buffer, w2, b2, last=True)

    y_mid = mod_first(x)        # = 0 + conv1(x) + b1
    y_out = mod_last(y_mid)     # = x + conv2(y_mid) + b2
    y_out = jax.block_until_ready(y_out)
    y_out_nchw = jnp.transpose(y_out, (0, 3, 1, 2))

    # reference (pure JAX, NHWC, full-precision conv)
    def ref_conv(inp_nhwc, w_hwio, b):
        out = jax.lax.conv_general_dilated(
            inp_nhwc, w_hwio, window_strides=(1, 1), padding=((1, 1), (1, 1)),
            dimension_numbers=("NHWC", "HWIO", "NHWC"),
            precision=jax.lax.Precision.HIGHEST)
        return out + b.reshape(1, 1, 1, -1)

    ref_mid = ref_conv(x, w1, b1)
    ref_out = x + ref_conv(ref_mid, w2, b2)
    ref_out_nchw = jnp.transpose(ref_out, (0, 3, 1, 2))

    err = float(jnp.max(jnp.abs(y_out_nchw - ref_out_nchw)))
    assert y_out_nchw.shape == (N, C, H, W) and y_out_nchw.dtype == jnp.float32
    assert err < 2e-2, f"max abs err {err}"
    print("KERNEL_OK")
</pallas_src>

<mosaic_0001>
module attributes {stable_mosaic.version = 11 : i64} {
  func.func @kernel(%arg0: i32, %arg1: memref<1x16x16x128xbf16, #tpu.memory_space<vmem>>, %arg2: memref<3x384x128xbf16, #tpu.memory_space<vmem>>, %arg3: memref<1x128xf32, #tpu.memory_space<vmem>>, %arg4: memref<1x256x128xf32, #tpu.memory_space<vmem>>, %arg5: memref<16x16x384xbf16, #tpu.memory_space<vmem>>) attributes {dimension_semantics = [#tpu.dimension_semantics<parallel>], iteration_bounds = array<i64: 2>, scalar_prefetch = 0 : i64, scratch_operands = 1 : i64, tpu.core_type = #tpu.core_type<tc>, window_params = [{transform_indices = @transform_0, window_bounds = array<i64: 1, 16, 16, 128>}, {pipeline_mode = #tpu.pipeline_mode<synchronous>, transform_indices = @transform_1, window_bounds = array<i64: 3, 384, 128>}, {pipeline_mode = #tpu.pipeline_mode<synchronous>, transform_indices = @transform_2, window_bounds = array<i64: 1, 128>}, {transform_indices = @transform_3, window_bounds = array<i64: 1, 256, 128>}]} {
    %c0 = arith.constant 0 : index
    %c0_0 = arith.constant 0 : index
    %c0_1 = arith.constant 0 : index
    %c0_2 = arith.constant 0 : index
    %0 = vector.load %arg1[%c0, %c0_0, %c0_1, %c0_2] : memref<1x16x16x128xbf16, #tpu.memory_space<vmem>>, vector<1x16x16x128xbf16>
    %1 = vector.shape_cast %0 : vector<1x16x16x128xbf16> to vector<16x16x128xbf16>
    %cst = arith.constant 0.000000e+00 : bf16
    %2 = vector.broadcast %cst : bf16 to vector<16x16x384xbf16>
    %c0_3 = arith.constant 0 : index
    %c0_4 = arith.constant 0 : index
    %c0_5 = arith.constant 0 : index
    %3 = vector.load %arg5[%c0_3, %c0_4, %c0_5] : memref<16x16x384xbf16, #tpu.memory_space<vmem>>, vector<16x16x384xbf16>
    tpu.vector_store %arg5[%c0_3, %c0_4, %c0_5], %2 {strides = array<i32>} : memref<16x16x384xbf16, #tpu.memory_space<vmem>>, vector<16x16x384xbf16>,
    %4 = vector.extract_strided_slice %1 {offsets = [0, 0, 0], sizes = [16, 15, 128], strides = [1, 1, 1]} : vector<16x16x128xbf16> to vector<16x15x128xbf16>
    %c0_6 = arith.constant 0 : index
    %c1 = arith.constant 1 : index
    %c0_7 = arith.constant 0 : index
    %5 = vector.load %arg5[%c0_6, %c1, %c0_7] : memref<16x16x384xbf16, #tpu.memory_space<vmem>>, vector<16x15x128xbf16>
    tpu.vector_store %arg5[%c0_6, %c1, %c0_7], %4 {strides = array<i32>} : memref<16x16x384xbf16, #tpu.memory_space<vmem>>, vector<16x15x128xbf16>,
    %c0_8 = arith.constant 0 : index
    %c0_9 = arith.constant 0 : index
    %c128 = arith.constant 128 : index
    %6 = vector.load %arg5[%c0_8, %c0_9, %c128] : memref<16x16x384xbf16, #tpu.memory_space<vmem>>, vector<16x16x128xbf16>
    tpu.vector_store %arg5[%c0_8, %c0_9, %c128], %1 {strides = array<i32>} : memref<16x16x384xbf16, #tpu.memory_space<vmem>>, vector<16x16x128xbf16>,
    %7 = vector.extract_strided_slice %1 {offsets = [0, 1, 0], sizes = [16, 15, 128], strides = [1, 1, 1]} : vector<16x16x128xbf16> to vector<16x15x128xbf16>
    %c0_10 = arith.constant 0 : index
    %c0_11 = arith.constant 0 : index
    %c256 = arith.constant 256 : index
    %8 = vector.load %arg5[%c0_10, %c0_11, %c256] : memref<16x16x384xbf16, #tpu.memory_space<vmem>>, vector<16x15x128xbf16>
    tpu.vector_store %arg5[%c0_10, %c0_11, %c256], %7 {strides = array<i32>} : memref<16x16x384xbf16, #tpu.memory_space<vmem>>, vector<16x15x128xbf16>,
    %c0_12 = arith.constant 0 : index
    %c0_13 = arith.constant 0 : index
    %c0_14 = arith.constant 0 : index
    %9 = vector.load %arg5[%c0_12, %c0_13, %c0_14] : memref<16x16x384xbf16, #tpu.memory_space<vmem>>, vector<16x16x384xbf16>
    %10 = vector.shape_cast %9 : vector<16x16x384xbf16> to vector<256x384xbf16>
    %c1_15 = arith.constant 1 : index
    %c0_16 = arith.constant 0 : index
    %c0_17 = arith.constant 0 : index
    %11 = vector.load %arg2[%c1_15, %c0_16, %c0_17] : memref<3x384x128xbf16, #tpu.memory_space<vmem>>, vector<1x384x128xbf16>
    %12 = vector.shape_cast %11 : vector<1x384x128xbf16> to vector<384x128xbf16>
    %cst_18 = arith.constant dense<0.000000e+00> : vector<256x128xf32>
    %13 = tpu.matmul %10, %12, %cst_18 {dimension_numbers = #tpu.dot_dimension_numbers<[1], [0], [0], [1], [0, 0, 1, 1], [], []>} : vector<256x384xbf16>, vector<384x128xbf16>, vector<256x128xf32> -> vector<256x128xf32>
    %c0_19 = arith.constant 0 : index
    %c0_20 = arith.constant 0 : index
    %14 = vector.load %arg3[%c0_19, %c0_20] : memref<1x128xf32, #tpu.memory_space<vmem>>, vector<1x128xf32>
    %15 = vector.broadcast %14 : vector<1x128xf32> to vector<256x128xf32>
    %16 = arith.addf %13, %15 : vector<256x128xf32>
    %c0_21 = arith.constant 0 : index
    %c0_22 = arith.constant 0 : index
    %c0_23 = arith.constant 0 : index
    %17 = vector.load %arg4[%c0_21, %c0_22, %c0_23] : memref<1x256x128xf32, #tpu.memory_space<vmem>>, vector<1x256x128xf32>
    %18 = vector.shape_cast %17 : vector<1x256x128xf32> to vector<256x128xf32>
    %19 = vector.shape_cast %16 : vector<256x128xf32> to vector<1x256x128xf32>
    tpu.vector_store %arg4[%c0_21, %c0_22, %c0_23], %19 {strides = array<i32>} : memref<1x256x128xf32, #tpu.memory_space<vmem>>, vector<1x256x128xf32>,
    %c0_24 = arith.constant 0 : index
    %c0_25 = arith.constant 0 : index
    %c0_26 = arith.constant 0 : index
    %20 = vector.load %arg5[%c0_24, %c0_25, %c0_26] : memref<16x16x384xbf16, #tpu.memory_space<vmem>>, vector<15x16x384xbf16>
    %21 = vector.shape_cast %20 : vector<15x16x384xbf16> to vector<240x384xbf16>
    %c0_27 = arith.constant 0 : index
    %c0_28 = arith.constant 0 : index
    %c0_29 = arith.constant 0 : index
    %22 = vector.load %arg2[%c0_27, %c0_28, %c0_29] : memref<3x384x128xbf16, #tpu.memory_space<vmem>>, vector<1x384x128xbf16>
    %23 = vector.shape_cast %22 : vector<1x384x128xbf16> to vector<384x128xbf16>
    %cst_30 = arith.constant dense<0.000000e+00> : vector<240x128xf32>
    %24 = tpu.matmul %21, %23, %cst_30 {dimension_numbers = #tpu.dot_dimension_numbers<[1], [0], [0], [1], [0, 0, 1, 1], [], []>} : vector<240x384xbf16>, vector<384x128xbf16>, vector<240x128xf32> -> vector<240x128xf32>
    %c0_31 = arith.constant 0 : index
    %c16 = arith.constant 16 : index
    %c0_32 = arith.constant 0 : index
    %25 = vector.load %arg4[%c0_31, %c16, %c0_32] : memref<1x256x128xf32, #tpu.memory_space<vmem>>, vector<1x240x128xf32>
    %26 = vector.shape_cast %25 : vector<1x240x128xf32> to vector<240x128xf32>
    %27 = arith.addf %26, %24 : vector<240x128xf32>
    %c0_33 = arith.constant 0 : index
    %c16_34 = arith.constant 16 : index
    %c0_35 = arith.constant 0 : index
    %28 = vector.load %arg4[%c0_33, %c16_34, %c0_35] : memref<1x256x128xf32, #tpu.memory_space<vmem>>, vector<1x240x128xf32>
    %29 = vector.shape_cast %28 : vector<1x240x128xf32> to vector<240x128xf32>
    %30 = vector.shape_cast %27 : vector<240x128xf32> to vector<1x240x128xf32>
    tpu.vector_store %arg4[%c0_33, %c16_34, %c0_35], %30 {strides = array<i32>} : memref<1x256x128xf32, #tpu.memory_space<vmem>>, vector<1x240x128xf32>,
    %c1_36 = arith.constant 1 : index
    %c0_37 = arith.constant 0 : index
    %c0_38 = arith.constant 0 : index
    %31 = vector.load %arg5[%c1_36, %c0_37, %c0_38] : memref<16x16x384xbf16, #tpu.memory_space<vmem>>, vector<15x16x384xbf16>
    %32 = vector.shape_cast %31 : vector<15x16x384xbf16> to vector<240x384xbf16>
    %c2 = arith.constant 2 : index
    %c0_39 = arith.constant 0 : index
    %c0_40 = arith.constant 0 : index
    %33 = vector.load %arg2[%c2, %c0_39, %c0_40] : memref<3x384x128xbf16, #tpu.memory_space<vmem>>, vector<1x384x128xbf16>
    %34 = vector.shape_cast %33 : vector<1x384x128xbf16> to vector<384x128xbf16>
    %cst_41 = arith.constant dense<0.000000e+00> : vector<240x128xf32>
    %35 = tpu.matmul %32, %34, %cst_41 {dimension_numbers = #tpu.dot_dimension_numbers<[1], [0], [0], [1], [0, 0, 1, 1], [], []>} : vector<240x384xbf16>, vector<384x128xbf16>, vector<240x128xf32> -> vector<240x128xf32>
    %c0_42 = arith.constant 0 : index
    %c0_43 = arith.constant 0 : index
    %c0_44 = arith.constant 0 : index
    %36 = vector.load %arg4[%c0_42, %c0_43, %c0_44] : memref<1x256x128xf32, #tpu.memory_space<vmem>>, vector<1x240x128xf32>
    %37 = vector.shape_cast %36 : vector<1x240x128xf32> to vector<240x128xf32>
    %38 = arith.addf %37, %35 : vector<240x128xf32>
    %c0_45 = arith.constant 0 : index
    %c0_46 = arith.constant 0 : index
    %c0_47 = arith.constant 0 : index
    %39 = vector.load %arg4[%c0_45, %c0_46, %c0_47] : memref<1x256x128xf32, #tpu.memory_space<vmem>>, vector<1x240x128xf32>
    %40 = vector.shape_cast %39 : vector<1x240x128xf32> to vector<240x128xf32>
    %41 = vector.shape_cast %38 : vector<240x128xf32> to vector<1x240x128xf32>
    tpu.vector_store %arg4[%c0_45, %c0_46, %c0_47], %41 {strides = array<i32>} : memref<1x256x128xf32, #tpu.memory_space<vmem>>, vector<1x240x128xf32>,
    return
  }
  func.func @transform_0(%arg0: i32) -> (i32, i32, i32, i32) {
    %c0_i32 = arith.constant 0 : i32
    %c0_i32_0 = arith.constant 0 : i32
    %c0_i32_1 = arith.constant 0 : i32
    %c0_i32_2 = arith.constant 0 : i32
    return %arg0, %c0_i32, %c0_i32_0, %c0_i32_1 : i32, i32, i32, i32
  }
  func.func @transform_1(%arg0: i32) -> (i32, i32, i32) {
    %c0_i32 = arith.constant 0 : i32
    %c0_i32_0 = arith.constant 0 : i32
    %c0_i32_1 = arith.constant 0 : i32
    %c0_i32_2 = arith.constant 0 : i32
    return %c0_i32, %c0_i32_0, %c0_i32_1 : i32, i32, i32
  }
  func.func @transform_2(%arg0: i32) -> (i32, i32) {
    %c0_i32 = arith.constant 0 : i32
    %c0_i32_0 = arith.constant 0 : i32
    %c0_i32_1 = arith.constant 0 : i32
    return %c0_i32, %c0_i32_0 : i32, i32
  }
  func.func @transform_3(%arg0: i32) -> (i32, i32, i32) {
    %c0_i32 = arith.constant 0 : i32
    %c0_i32_0 = arith.constant 0 : i32
    %c0_i32_1 = arith.constant 0 : i32
    return %arg0, %c0_i32, %c0_i32_0 : i32, i32, i32
  }
}

</mosaic_0001>

<llo_original>
// kernel: tpu_custom_call.1
$region0: #{tpu_custom_call.1}
  #allocation0 [shape = 'u32[]', space=smem, size = 0x4, offset = 0x4, fixed_abs, tag = 'smem constant byte address 0x4 - core index']
  #allocation1 [shape = 'u32[72,128]{1,0:T(1,128)}', space=vmem, size = 0x9000, scoped, tag = 'internal scratch']
  #allocation2 [shape = 'bf16[16,16,384]{2,1,0:T(8,128)(2,1)}', space=vmem, size = 0x30000, scoped, tag = 'scratch operand']
  %s0 = inlined_call_operand.hbm [shape: bf16[2,16,16,128], index: 0, kind: input, shape index: {}]
  %s1 = inlined_call_operand.hbm [shape: bf16[3,384,128], index: 1, kind: input, shape index: {}]
  %s2 = inlined_call_operand.vmem [shape: f32[1,128], index: 2, kind: input, shape index: {}]
  %s3 = inlined_call_operand.hbm [shape: f32[2,256,128], index: 3, kind: output, shape index: {}]
  %s4 = sld [smem:[#allocation0]]
  $region53: #{tpu_custom_call.1} parent=0
    _
  %s6 = ssub.s32 1, %s4
  %s7 = scalar_select 0, %s6, %s4
  $region1: #{tpu_custom_call.1} parent=0
    #allocation3 [shape = 'u8[131072]{0}', space=vmem, size = 0x20000, scoped, tag = 'input window, operand 0']
    #allocation4 [shape = 's32[2]{0}', space=sflag, size = 0x8, scoped, tag = 'scoped memory for tpu_custom_call.1']
    #allocation5 [shape = 's32[2]{0}', space=sflag, size = 0x8, scoped, tag = 'scoped memory for tpu_custom_call.1']
    #allocation6 [shape = 'u8[294912]{0}', space=vmem, size = 0x48000, scoped, tag = 'input window, operand 1, single buffered']
    #allocation7 [shape = 's32[1]{0}', space=sflag, size = 0x4, scoped, tag = 'scoped memory for tpu_custom_call.1']
    #allocation8 [shape = 'u8[262144]{0}', space=vmem, size = 0x40000, scoped, tag = 'output window, operand 0']
    %8 = vsyncpa [#allocation4], 0
    %s9 = scalar_lea.sflag [#allocation4], 1
    %10 = vsyncpa %s9, 0
    %11 = vsyncpa [#allocation7], 0
    %12 = vsyncpa [#allocation5], 0
    %s13 = scalar_lea.sflag [#allocation5], 1
    %14 = vsyncpa %s13, 0
    loop: start=0, step=1, limit=4
    $region2: #{tpu_custom_call.1} parent=1 // loop_pre_header
      _
    $region3: #{tpu_custom_call.1} parent=1 // loop_header
      %s16 = sphi 0, %s20
      %p17 = scmp.ge.s32.totalorder %s16, 4
      %s26 = sphi 0, %s28
      %s29 = sphi 0, %s26
      %s30 = sphi 0, %s29
      %s46 = sphi 0, %s30
      %s50 = sphi 0, %s50
      %s52 = sphi 0, %s50
      %s53 = sphi 0, %s52
      %s67 = sphi 0, %s53
      %s71 = sphi 0, %s71
      %s73 = sphi 0, %s71
      %s74 = sphi 0, %s73
      %s88 = sphi 0, %s74
      %s94 = sphi 0, %s96
      %s97 = sphi 0, %s94
      %s98 = sphi 0, %s97
      %s114 = sphi 0, %s98
    $region4: #{tpu_custom_call.1} parent=1 // loop_header_branch
      %19 = sbr.rel (%p17) target = $region8
    $region5: #{tpu_custom_call.1} parent=1 // loop_body
      %s21 = ssub.s32 %s16, 1
      %s22 = ssub.s32 %s16, 2
      %s23 = sadd.s32 %s16, 1
      %s24 = ssub.s32 %s16, %s23
      %p25 = scmp.eq.s32.totalorder %s24, 0
      %s27 = sadd.s32 %s26, 1
      %s28 = scalar_select %p25, %s26, %s27
      %p31 = pneg %p25
      %p32 = scmp.eq.s32.totalorder %s16, 1
      %p33 = por %p31, %p32
      %p34 = scmp.ne.s32.totalorder %s26, %s29
      %p35 = scmp.eq.s32.totalorder %s16, 0
      %p36 = por %p34, %p35
      %p37 = scmp.ne.s32.totalorder %s26, %s29
      %p38 = scmp.eq.s32.totalorder %s21, 1
      %p39 = por %p37, %p38
      %p40 = scmp.ne.s32.totalorder %s29, %s30
      %p41 = scmp.eq.s32.totalorder %s21, 0
      %p42 = por %p40, %p41
      %p43 = scmp.ne.s32.totalorder %s29, %s30
      %p44 = scmp.eq.s32.totalorder %s22, 1
      %p45 = por %p43, %p44
      %p47 = scmp.ne.s32.totalorder %s30, %s46
      %p48 = scmp.eq.s32.totalorder %s22, 0
      %p49 = por %p47, %p48
      %s51 = sadd.s32 %s50, 1
      %p54 = scmp.eq.s32.totalorder %s16, 1
      %p55 = scmp.ne.s32.totalorder %s50, %s52
      %p56 = scmp.eq.s32.totalorder %s16, 0
      %p57 = por %p55, %p56
      %p58 = scmp.ne.s32.totalorder %s50, %s52
      %p59 = scmp.eq.s32.totalorder %s21, 1
      %p60 = por %p58, %p59
      %p61 = scmp.ne.s32.totalorder %s52, %s53
      %p62 = scmp.eq.s32.totalorder %s21, 0
      %p63 = por %p61, %p62
      %p64 = scmp.ne.s32.totalorder %s52, %s53
      %p65 = scmp.eq.s32.totalorder %s22, 1
      %p66 = por %p64, %p65
      %p68 = scmp.ne.s32.totalorder %s53, %s67
      %p69 = scmp.eq.s32.totalorder %s22, 0
      %p70 = por %p68, %p69
      %s72 = sadd.s32 %s71, 1
      %p75 = scmp.eq.s32.totalorder %s16, 1
      %p76 = scmp.ne.s32.totalorder %s71, %s73
      %p77 = scmp.eq.s32.totalorder %s16, 0
      %p78 = por %p76, %p77
      %p79 = scmp.ne.s32.totalorder %s71, %s73
      %p80 = scmp.eq.s32.totalorder %s21, 1
      %p81 = por %p79, %p80
      %p82 = scmp.ne.s32.totalorder %s73, %s74
      %p83 = scmp.eq.s32.totalorder %s21, 0
      %p84 = por %p82, %p83
      %p85 = scmp.ne.s32.totalorder %s73, %s74
      %p86 = scmp.eq.s32.totalorder %s22, 1
      %p87 = por %p85, %p86
      %p89 = scmp.ne.s32.totalorder %s74, %s88
      %p90 = scmp.eq.s32.totalorder %s22, 0
      %p91 = por %p89, %p90
      %s92 = ssub.s32 %s16, %s23
      %p93 = scmp.eq.s32.totalorder %s92, 0
      %s95 = sadd.s32 %s94, 1
      %s96 = scalar_select %p93, %s94, %s95
      %p99 = pneg %p93
      %p100 = scmp.eq.s32.totalorder %s16, 1
      %p101 = por %p99, %p100
      %p102 = scmp.ne.s32.totalorder %s94, %s97
      %p103 = scmp.eq.s32.totalorder %s16, 0
      %p104 = por %p102, %p103
      %p105 = scmp.ne.s32.totalorder %s94, %s97
      %p106 = scmp.eq.s32.totalorder %s21, 1
      %p107 = por %p105, %p106
      %p108 = scmp.ne.s32.totalorder %s97, %s98
      %p109 = scmp.eq.s32.totalorder %s21, 0
      %p110 = por %p108, %p109
      %p111 = scmp.ne.s32.totalorder %s97, %s98
      %p112 = scmp.eq.s32.totalorder %s22, 1
      %p113 = por %p111, %p112
      %p115 = scmp.ne.s32.totalorder %s98, %s114
      %p116 = scmp.eq.s32.totalorder %s22, 0
      %p117 = por %p115, %p116
      %p118 = scmp.le.s32.totalorder 1, %s16
      %p119 = scmp.lt.s32.totalorder %s16, 3
      %p120 = pnand %p118, %p119
      %p121 = pneg %p120
      // Predicated region
      $region9: #{tpu_custom_call.1} parent=5 // pred_check
        _
      $region10: #{tpu_custom_call.1} parent=5 // pred_check_branch
        %123 = sbr.rel (%p120) target = $region12
      $region11: #{tpu_custom_call.1} parent=5 // pred_region
        %s124 = ssub.s32 %s16, 1
        // Predicated region
        $region13: #{tpu_custom_call.1} parent=11 // pred_check
          %p125 = pneg %p63
        $region14: #{tpu_custom_call.1} parent=11 // pred_check_branch
          %127 = sbr.rel (%p125) target = $region16
        $region15: #{tpu_custom_call.1} parent=11 // pred_region
          %129 = vsyncadd [#allocation7], 0
          %s130 = sshll.u32 %s1, 4
          %s131 = int_to_ptr.hbm [resolvable:$true] %s130
          %s132 = sshll.u32 [#allocation6], 4
          %s133 = int_to_ptr.vmem [resolvable:$true] %s132
          %138 = dma.hbm_to_vmem [thread:$0]  %s131, 9216, %s133, [#allocation7], 64, 64, 4
        $region16: #{tpu_custom_call.1} parent=11 // pred_fallthru
          _
        // Predicated region
        $region17: #{tpu_custom_call.1} parent=11 // pred_check
          %p139 = pneg %p84
        $region18: #{tpu_custom_call.1} parent=11 // pred_check_branch
          %141 = sbr.rel (%p139) target = $region20
        $region19: #{tpu_custom_call.1} parent=11 // pred_region
          _
        $region20: #{tpu_custom_call.1} parent=11 // pred_fallthru
          _
      $region12: #{tpu_custom_call.1} parent=5 // pred_fallthru
        _
      %p142 = scmp.lt.s32.totalorder %s16, 2
      // Predicated region
      $region21: #{tpu_custom_call.1} parent=5 // pred_check
        %p143 = pneg %p142
      $region22: #{tpu_custom_call.1} parent=5 // pred_check_branch
        %145 = sbr.rel (%p143) target = $region24
      $region23: #{tpu_custom_call.1} parent=5 // pred_region
        // Predicated region
        $region25: #{tpu_custom_call.1} parent=23 // pred_check
          %p146 = pneg %p36
        $region26: #{tpu_custom_call.1} parent=23 // pred_check_branch
          %148 = sbr.rel (%p146) target = $region28
        $region27: #{tpu_custom_call.1} parent=23 // pred_region
          %s149 = sand.u32 %s26, 1
          %s150 = scalar_lea.sflag [#allocation4], %s149
          %s151 = sand.u32 %s26, 1
          %s152 = smul.addr %s151, 128
          %s153 = scalar_lea.vmem [#allocation3], %s152
          %155 = vsyncadd %s150, 0
          %s156 = smul.addr %s16, 32
          %s157 = smul.addr %s156, 4
          %s158 = scalar_lea.hbm %s0, %s157
          %s159 = sshll.u32 %s158, 4
          %s160 = int_to_ptr.hbm [resolvable:$true] %s159
          %s161 = sshll.u32 %s153, 4
          %s162 = int_to_ptr.vmem [resolvable:$true] %s161
          %167 = dma.hbm_to_vmem [thread:$0]  %s160, 2048, %s162, %s150, 64, 64, 4
        $region28: #{tpu_custom_call.1} parent=23 // pred_fallthru
          _
      $region24: #{tpu_custom_call.1} parent=5 // pred_fallthru
        _
      %p168 = scmp.le.s32.totalorder 1, %s16
      %p169 = scmp.lt.s32.totalorder %s16, 3
      %p170 = pnand %p168, %p169
      %p171 = pneg %p170
      // Predicated region
      $region29: #{tpu_custom_call.1} parent=5 // pred_check
        _
      $region30: #{tpu_custom_call.1} parent=5 // pred_check_branch
        %173 = sbr.rel (%p170) target = $region32
      $region31: #{tpu_custom_call.1} parent=5 // pred_region
        %s174 = ssub.s32 %s16, 1
        %s175 = sand.u32 %s29, 1
        %s176 = scalar_lea.sflag [#allocation4], %s175
        %s177 = sand.u32 %s29, 1
        %s178 = smul.addr %s177, 128
        %s179 = scalar_lea.vmem [#allocation3], %s178
        // Predicated region
        $region33: #{tpu_custom_call.1} parent=31 // pred_check
          %p180 = pneg %p42
        $region34: #{tpu_custom_call.1} parent=31 // pred_check_branch
          %182 = sbr.rel (%p180) target = $region36
        $region35: #{tpu_custom_call.1} parent=31 // pred_region
          %184 = dma.done %s176, 2048
        $region36: #{tpu_custom_call.1} parent=31 // pred_fallthru
          _
        // Predicated region
        $region37: #{tpu_custom_call.1} parent=31 // pred_check
          %p185 = pneg %p63
        $region38: #{tpu_custom_call.1} parent=31 // pred_check_branch
          %187 = sbr.rel (%p185) target = $region40
        $region39: #{tpu_custom_call.1} parent=31 // pred_region
          %189 = dma.done [#allocation7], 9216
        $region40: #{tpu_custom_call.1} parent=31 // pred_fallthru
          _
        %s190 = sand.u32 %s29, 1
        %s191 = scalar_lea.sflag [#allocation4], %s190
        %s192 = sand.u32 %s29, 1
        %s193 = smul.addr %s192, 128
        %s194 = scalar_lea.vmem [#allocation3], %s193
        %p195 = pneg %p42
        %p196 = pneg %p39
        %p197 = pneg %p63
        %p198 = pneg %p60
        %p199 = pneg %p84
        %p200 = pneg %p81
        %p201 = pneg %p110
        %p202 = pneg %p107
        %s203 = sand.u32 %s97, 1
        %s204 = scalar_lea.sflag [#allocation5], %s203
        %s205 = sand.u32 %s97, 1
        %s206 = smul.addr %s205, 256
        %s207 = scalar_lea.vmem [#allocation8], %s206
        %v209 = vld [vmem:[%s179] sm:$0xf]
        %v210 = vld [vmem:[%s179 + $0x4] sm:$0xf]
        %v211 = vld [vmem:[%s179 + $0x8] sm:$0xf]
        %v212 = vld [vmem:[%s179 + $0xc] sm:$0xf]
        %v213 = vld [vmem:[%s179 + $0x10] sm:$0xf]
        %v214 = vld [vmem:[%s179 + $0x14] sm:$0xf]
        %v215 = vld [vmem:[%s179 + $0x18] sm:$0xf]
        %v216 = vld [vmem:[%s179 + $0x1c] sm:$0xf]
        %v217 = vld [vmem:[%s179 + $0x20] sm:$0xf]
        %v218 = vld [vmem:[%s179 + $0x24] sm:$0xf]
        %v219 = vld [vmem:[%s179 + $0x28] sm:$0xf]
        %v220 = vld [vmem:[%s179 + $0x2c] sm:$0xf]
        %v221 = vld [vmem:[%s179 + $0x30] sm:$0xf]
        %v222 = vld [vmem:[%s179 + $0x34] sm:$0xf]
        %v223 = vld [vmem:[%s179 + $0x38] sm:$0xf]
        %v224 = vld [vmem:[%s179 + $0x3c] sm:$0xf]
        %v225 = vld [vmem:[%s179 + $0x40] sm:$0xf]
        %v226 = vld [vmem:[%s179 + $0x44] sm:$0xf]
        %v227 = vld [vmem:[%s179 + $0x48] sm:$0xf]
        %v228 = vld [vmem:[%s179 + $0x4c] sm:$0xf]
        %v229 = vld [vmem:[%s179 + $0x50] sm:$0xf]
        %v230 = vld [vmem:[%s179 + $0x54] sm:$0xf]
        %v231 = vld [vmem:[%s179 + $0x58] sm:$0xf]
        %v232 = vld [vmem:[%s179 + $0x5c] sm:$0xf]
        %v233 = vld [vmem:[%s179 + $0x60] sm:$0xf]
        %v234 = vld [vmem:[%s179 + $0x64] sm:$0xf]
        %v235 = vld [vmem:[%s179 + $0x68] sm:$0xf]
        %v236 = vld [vmem:[%s179 + $0x6c] sm:$0xf]
        %v237 = vld [vmem:[%s179 + $0x70] sm:$0xf]
        %v238 = vld [vmem:[%s179 + $0x74] sm:$0xf]
        %v239 = vld [vmem:[%s179 + $0x78] sm:$0xf]
        %v240 = vld [vmem:[%s179 + $0x7c] sm:$0xf]
        %241 = vst [vmem:[#allocation2] sm:$0xff] 0
        %242 = vst [vmem:[#allocation2 + $0x8] sm:$0xf] 0
        %243 = vst [vmem:[#allocation2 + $0xc] sm:$0xff] 0
        %244 = vst [vmem:[#allocation2 + $0x14] sm:$0xf] 0
        %245 = vst [vmem:[#allocation2 + $0x18] sm:$0xff] 0
        %246 = vst [vmem:[#allocation2 + $0x20] sm:$0xf] 0
        %247 = vst [vmem:[#allocation2 + $0x24] sm:$0xff] 0
        %248 = vst [vmem:[#allocation2 + $0x2c] sm:$0xf] 0
        %249 = vst [vmem:[#allocation2 + $0x30] sm:$0xff] 0
        %250 = vst [vmem:[#allocation2 + $0x38] sm:$0xf] 0
        %251 = vst [vmem:[#allocation2 + $0x3c] sm:$0xff] 0
        %252 = vst [vmem:[#allocation2 + $0x44] sm:$0xf] 0
        %253 = vst [vmem:[#allocation2 + $0x48] sm:$0xff] 0
        %254 = vst [vmem:[#allocation2 + $0x50] sm:$0xf] 0
        %255 = vst [vmem:[#allocation2 + $0x54] sm:$0xff] 0
        %256 = vst [vmem:[#allocation2 + $0x5c] sm:$0xf] 0
        %257 = vst [vmem:[#allocation2 + $0x60] sm:$0xff] 0
        %258 = vst [vmem:[#allocation2 + $0x68] sm:$0xf] 0
        %259 = vst [vmem:[#allocation2 + $0x6c] sm:$0xff] 0
        %260 = vst [vmem:[#allocation2 + $0x74] sm:$0xf] 0
        %261 = vst [vmem:[#allocation2 + $0x78] sm:$0xff] 0
        %262 = vst [vmem:[#allocation2 + $0x80] sm:$0xf] 0
        %263 = vst [vmem:[#allocation2 + $0x84] sm:$0xff] 0
        %264 = vst [vmem:[#allocation2 + $0x8c] sm:$0xf] 0
        %265 = vst [vmem:[#allocation2 + $0x90] sm:$0xff] 0
        %266 = vst [vmem:[#allocation2 + $0x98] sm:$0xf] 0
        %267 = vst [vmem:[#allocation2 + $0x9c] sm:$0xff] 0
        %268 = vst [vmem:[#allocation2 + $0xa4] sm:$0xf] 0
        %269 = vst [vmem:[#allocation2 + $0xa8] sm:$0xff] 0
        %270 = vst [vmem:[#allocation2 + $0xb0] sm:$0xf] 0
        %271 = vst [vmem:[#allocation2 + $0xb4] sm:$0xff] 0
        %272 = vst [vmem:[#allocation2 + $0xbc] sm:$0xf] 0
        %273 = vst [vmem:[#allocation2 + $0xc0] sm:$0xff] 0
        %274 = vst [vmem:[#allocation2 + $0xc8] sm:$0xf] 0
        %275 = vst [vmem:[#allocation2 + $0xcc] sm:$0xff] 0
        %276 = vst [vmem:[#allocation2 + $0xd4] sm:$0xf] 0
        %277 = vst [vmem:[#allocation2 + $0xd8] sm:$0xff] 0
        %278 = vst [vmem:[#allocation2 + $0xe0] sm:$0xf] 0
        %279 = vst [vmem:[#allocation2 + $0xe4] sm:$0xff] 0
        %280 = vst [vmem:[#allocation2 + $0xec] sm:$0xf] 0
        %281 = vst [vmem:[#allocation2 + $0xf0] sm:$0xff] 0
        %282 = vst [vmem:[#allocation2 + $0xf8] sm:$0xf] 0
        %283 = vst [vmem:[#allocation2 + $0xfc] sm:$0xff] 0
        %284 = vst [vmem:[#allocation2 + $0x104] sm:$0xf] 0
        %285 = vst [vmem:[#allocation2 + $0x108] sm:$0xff] 0
        %286 = vst [vmem:[#allocation2 + $0x110] sm:$0xf] 0
        %287 = vst [vmem:[#allocation2 + $0x114] sm:$0xff] 0
        %288 = vst [vmem:[#allocation2 + $0x11c] sm:$0xf] 0
        %289 = vst [vmem:[#allocation2 + $0x120] sm:$0xff] 0
        %290 = vst [vmem:[#allocation2 + $0x128] sm:$0xf] 0
        %291 = vst [vmem:[#allocation2 + $0x12c] sm:$0xff] 0
        %292 = vst [vmem:[#allocation2 + $0x134] sm:$0xf] 0
        %293 = vst [vmem:[#allocation2 + $0x138] sm:$0xff] 0
        %294 = vst [vmem:[#allocation2 + $0x140] sm:$0xf] 0
        %295 = vst [vmem:[#allocation2 + $0x144] sm:$0xff] 0
        %296 = vst [vmem:[#allocation2 + $0x14c] sm:$0xf] 0
        %297 = vst [vmem:[#allocation2 + $0x150] sm:$0xff] 0
        %298 = vst [vmem:[#allocation2 + $0x158] sm:$0xf] 0
        %299 = vst [vmem:[#allocation2 + $0x15c] sm:$0xff] 0
        %300 = vst [vmem:[#allocation2 + $0x164] sm:$0xf] 0
        %301 = vst [vmem:[#allocation2 + $0x168] sm:$0xff] 0
        %302 = vst [vmem:[#allocation2 + $0x170] sm:$0xf] 0
        %303 = vst [vmem:[#allocation2 + $0x174] sm:$0xff] 0
        %304 = vst [vmem:[#allocation2 + $0x17c] sm:$0xf] 0
        %vm305 = vsmask.f32 256
        %vm306 = vsmask.f32 4368
        %vm307 = vmor %vm305, %vm306
        %v309 = vshrl.u32 %v209, 16
        %v311 = vrot.slane %v309, 7
        %v312 = vshll.u32 %v209, 16
        %v314 = vor.u32 %v311, %v312
        %v315 = vrot.slane %v311, 4
        %v317 = vshrl.u32 %v210, 16
        %v319 = vrot.slane %v317, 7
        %v320 = vshll.u32 %v210, 16
        %v322 = vor.u32 %v319, %v320
        %v323 = vsel %vm307, %v315, %v322
        %v325 = vshrl.u32 %v211, 16
        %v327 = vrot.slane %v325, 7
        %v328 = vshll.u32 %v211, 16
        %v330 = vor.u32 %v327, %v328
        %v331 = vrot.slane %v327, 4
        %v333 = vshrl.u32 %v212, 16
        %v335 = vrot.slane %v333, 7
        %v336 = vshll.u32 %v212, 16
        %v338 = vor.u32 %v335, %v336
        %v339 = vsel %vm307, %v331, %v338
        %v341 = vshrl.u32 %v213, 16
        %v343 = vrot.slane %v341, 7
        %v344 = vshll.u32 %v213, 16
        %v346 = vor.u32 %v343, %v344
        %v347 = vrot.slane %v343, 4
        %v349 = vshrl.u32 %v214, 16
        %v351 = vrot.slane %v349, 7
        %v352 = vshll.u32 %v214, 16
        %v354 = vor.u32 %v351, %v352
        %v355 = vsel %vm307, %v347, %v354
        %v357 = vshrl.u32 %v215, 16
        %v359 = vrot.slane %v357, 7
        %v360 = vshll.u32 %v215, 16
        %v362 = vor.u32 %v359, %v360
        %v363 = vrot.slane %v359, 4
        %v365 = vshrl.u32 %v216, 16
        %v367 = vrot.slane %v365, 7
        %v368 = vshll.u32 %v216, 16
        %v370 = vor.u32 %v367, %v368
        %v371 = vsel %vm307, %v363, %v370
        %v373 = vshrl.u32 %v217, 16
        %v375 = vrot.slane %v373, 7
        %v376 = vshll.u32 %v217, 16
        %v378 = vor.u32 %v375, %v376
        %v379 = vrot.slane %v375, 4
        %v381 = vshrl.u32 %v218, 16
        %v383 = vrot.slane %v381, 7
        %v384 = vshll.u32 %v218, 16
        %v386 = vor.u32 %v383, %v384
        %v387 = vsel %vm307, %v379, %v386
        %v389 = vshrl.u32 %v219, 16
        %v391 = vrot.slane %v389, 7
        %v392 = vshll.u32 %v219, 16
        %v394 = vor.u32 %v391, %v392
        %v395 = vrot.slane %v391, 4
        %v397 = vshrl.u32 %v220, 16
        %v399 = vrot.slane %v397, 7
        %v400 = vshll.u32 %v220, 16
        %v402 = vor.u32 %v399, %v400
        %v403 = vsel %vm307, %v395, %v402
        %v405 = vshrl.u32 %v221, 16
        %v407 = vrot.slane %v405, 7
        %v408 = vshll.u32 %v221, 16
        %v410 = vor.u32 %v407, %v408
        %v411 = vrot.slane %v407, 4
        %v413 = vshrl.u32 %v222, 16
        %v415 = vrot.slane %v413, 7
        %v416 = vshll.u32 %v222, 16
        %v418 = vor.u32 %v415, %v416
        %v419 = vsel %vm307, %v411, %v418
        %v421 = vshrl.u32 %v223, 16
        %v423 = vrot.slane %v421, 7
        %v424 = vshll.u32 %v223, 16
        %v426 = vor.u32 %v423, %v424
        %v427 = vrot.slane %v423, 4
        %v429 = vshrl.u32 %v224, 16
        %v431 = vrot.slane %v429, 7
        %v432 = vshll.u32 %v224, 16
        %v434 = vor.u32 %v431, %v432
        %v435 = vsel %vm307, %v427, %v434
        %v437 = vshrl.u32 %v225, 16
        %v439 = vrot.slane %v437, 7
        %v440 = vshll.u32 %v225, 16
        %v442 = vor.u32 %v439, %v440
        %v443 = vrot.slane %v439, 4
        %v445 = vshrl.u32 %v226, 16
        %v447 = vrot.slane %v445, 7
        %v448 = vshll.u32 %v226, 16
        %v450 = vor.u32 %v447, %v448
        %v451 = vsel %vm307, %v443, %v450
        %v453 = vshrl.u32 %v227, 16
        %v455 = vrot.slane %v453, 7
        %v456 = vshll.u32 %v227, 16
        %v458 = vor.u32 %v455, %v456
        %v459 = vrot.slane %v455, 4
        %v461 = vshrl.u32 %v228, 16
        %v463 = vrot.slane %v461, 7
        %v464 = vshll.u32 %v228, 16
        %v466 = vor.u32 %v463, %v464
        %v467 = vsel %vm307, %v459, %v466
        %v469 = vshrl.u32 %v229, 16
        %v471 = vrot.slane %v469, 7
        %v472 = vshll.u32 %v229, 16
        %v474 = vor.u32 %v471, %v472
        %v475 = vrot.slane %v471, 4
        %v477 = vshrl.u32 %v230, 16
        %v479 = vrot.slane %v477, 7
        %v480 = vshll.u32 %v230, 16
        %v482 = vor.u32 %v479, %v480
        %v483 = vsel %vm307, %v475, %v482
        %v485 = vshrl.u32 %v231, 16
        %v487 = vrot.slane %v485, 7
        %v488 = vshll.u32 %v231, 16
        %v490 = vor.u32 %v487, %v488
        %v491 = vrot.slane %v487, 4
        %v493 = vshrl.u32 %v232, 16
        %v495 = vrot.slane %v493, 7
        %v496 = vshll.u32 %v232, 16
        %v498 = vor.u32 %v495, %v496
        %v499 = vsel %vm307, %v491, %v498
        %v501 = vshrl.u32 %v233, 16
        %v503 = vrot.slane %v501, 7
        %v504 = vshll.u32 %v233, 16
        %v506 = vor.u32 %v503, %v504
        %v507 = vrot.slane %v503, 4
        %v509 = vshrl.u32 %v234, 16
        %v511 = vrot.slane %v509, 7
        %v512 = vshll.u32 %v234, 16
        %v514 = vor.u32 %v511, %v512
        %v515 = vsel %vm307, %v507, %v514
        %v517 = vshrl.u32 %v235, 16
        %v519 = vrot.slane %v517, 7
        %v520 = vshll.u32 %v235, 16
        %v522 = vor.u32 %v519, %v520
        %v523 = vrot.slane %v519, 4
        %v525 = vshrl.u32 %v236, 16
        %v527 = vrot.slane %v525, 7
        %v528 = vshll.u32 %v236, 16
        %v530 = vor.u32 %v527, %v528
        %v531 = vsel %vm307, %v523, %v530
        %v533 = vshrl.u32 %v237, 16
        %v535 = vrot.slane %v533, 7
        %v536 = vshll.u32 %v237, 16
        %v538 = vor.u32 %v535, %v536
        %v539 = vrot.slane %v535, 4
        %v541 = vshrl.u32 %v238, 16
        %v543 = vrot.slane %v541, 7
        %v544 = vshll.u32 %v238, 16
        %v546 = vor.u32 %v543, %v544
        %v547 = vsel %vm307, %v539, %v546
        %v549 = vshrl.u32 %v239, 16
        %v551 = vrot.slane %v549, 7
        %v552 = vshll.u32 %v239, 16
        %v554 = vor.u32 %v551, %v552
        %v555 = vrot.slane %v551, 4
        %v557 = vshrl.u32 %v240, 16
        %v559 = vrot.slane %v557, 7
        %v560 = vshll.u32 %v240, 16
        %v562 = vor.u32 %v559, %v560
        %v563 = vsel %vm307, %v555, %v562
        %vm596 = vcmask 1043456
        %vm597 = vsmask.f32 7938
        %vm598 = vmand %vm596, %vm597
        %v599 = vld [vmem:[#allocation2] sm:$0xf]
        %v600 = vsel %vm598, %v314, %v599
        %601 = vst [vmem:[#allocation2] sm:$0xf] %v600
        %602 = vst [vmem:[#allocation2 + $0xc] sm:$0xf] %v323
        %v603 = vld [vmem:[#allocation2 + $0x18] sm:$0xf]
        %v604 = vsel %vm598, %v330, %v603
        %605 = vst [vmem:[#allocation2 + $0x18] sm:$0xf] %v604
        %606 = vst [vmem:[#allocation2 + $0x24] sm:$0xf] %v339
        %v607 = vld [vmem:[#allocation2 + $0x30] sm:$0xf]
        %v608 = vsel %vm598, %v346, %v607
        %609 = vst [vmem:[#allocation2 + $0x30] sm:$0xf] %v608
        %610 = vst [vmem:[#allocation2 + $0x3c] sm:$0xf] %v355
        %v611 = vld [vmem:[#allocation2 + $0x48] sm:$0xf]
        %v612 = vsel %vm598, %v362, %v611
        %613 = vst [vmem:[#allocation2 + $0x48] sm:$0xf] %v612
        %614 = vst [vmem:[#allocation2 + $0x54] sm:$0xf] %v371
        %v615 = vld [vmem:[#allocation2 + $0x60] sm:$0xf]
        %v616 = vsel %vm598, %v378, %v615
        %617 = vst [vmem:[#allocation2 + $0x60] sm:$0xf] %v616
        %618 = vst [vmem:[#allocation2 + $0x6c] sm:$0xf] %v387
        %v619 = vld [vmem:[#allocation2 + $0x78] sm:$0xf]
        %v620 = vsel %vm598, %v394, %v619
        %621 = vst [vmem:[#allocation2 + $0x78] sm:$0xf] %v620
        %622 = vst [vmem:[#allocation2 + $0x84] sm:$0xf] %v403
        %v623 = vld [vmem:[#allocation2 + $0x90] sm:$0xf]
        %v624 = vsel %vm598, %v410, %v623
        %625 = vst [vmem:[#allocation2 + $0x90] sm:$0xf] %v624
        %626 = vst [vmem:[#allocation2 + $0x9c] sm:$0xf] %v419
        %v627 = vld [vmem:[#allocation2 + $0xa8] sm:$0xf]
        %v628 = vsel %vm598, %v426, %v627
        %629 = vst [vmem:[#allocation2 + $0xa8] sm:$0xf] %v628
        %630 = vst [vmem:[#allocation2 + $0xb4] sm:$0xf] %v435
        %v631 = vld [vmem:[#allocation2 + $0xc0] sm:$0xf]
        %v632 = vsel %vm598, %v442, %v631
        %633 = vst [vmem:[#allocation2 + $0xc0] sm:$0xf] %v632
        %634 = vst [vmem:[#allocation2 + $0xcc] sm:$0xf] %v451
        %v635 = vld [vmem:[#allocation2 + $0xd8] sm:$0xf]
        %v636 = vsel %vm598, %v458, %v635
        %637 = vst [vmem:[#allocation2 + $0xd8] sm:$0xf] %v636
        %638 = vst [vmem:[#allocation2 + $0xe4] sm:$0xf] %v467
        %v639 = vld [vmem:[#allocation2 + $0xf0] sm:$0xf]
        %v640 = vsel %vm598, %v474, %v639
        %641 = vst [vmem:[#allocation2 + $0xf0] sm:$0xf] %v640
        %642 = vst [vmem:[#allocation2 + $0xfc] sm:$0xf] %v483
        %v643 = vld [vmem:[#allocation2 + $0x108] sm:$0xf]
        %v644 = vsel %vm598, %v490, %v643
        %645 = vst [vmem:[#allocation2 + $0x108] sm:$0xf] %v644
        %646 = vst [vmem:[#allocation2 + $0x114] sm:$0xf] %v499
        %v647 = vld [vmem:[#allocation2 + $0x120] sm:$0xf]
        %v648 = vsel %vm598, %v506, %v647
        %649 = vst [vmem:[#allocation2 + $0x120] sm:$0xf] %v648
        %650 = vst [vmem:[#allocation2 + $0x12c] sm:$0xf] %v515
        %v651 = vld [vmem:[#allocation2 + $0x138] sm:$0xf]
        %v652 = vsel %vm598, %v522, %v651
        %653 = vst [vmem:[#allocation2 + $0x138] sm:$0xf] %v652
        %654 = vst [vmem:[#allocation2 + $0x144] sm:$0xf] %v531
        %v655 = vld [vmem:[#allocation2 + $0x150] sm:$0xf]
        %v656 = vsel %vm598, %v538, %v655
        %657 = vst [vmem:[#allocation2 + $0x150] sm:$0xf] %v656
        %658 = vst [vmem:[#allocation2 + $0x15c] sm:$0xf] %v547
        %v659 = vld [vmem:[#allocation2 + $0x168] sm:$0xf]
        %v660 = vsel %vm598, %v554, %v659
        %661 = vst [vmem:[#allocation2 + $0x168] sm:$0xf] %v660
        %662 = vst [vmem:[#allocation2 + $0x174] sm:$0xf] %v563
        %663 = vst [vmem:[#allocation2 + $0x4] sm:$0xf] %v209
        %664 = vst [vmem:[#allocation2 + $0x10] sm:$0xf] %v210
        %665 = vst [vmem:[#allocation2 + $0x1c] sm:$0xf] %v211
        %666 = vst [vmem:[#allocation2 + $0x28] sm:$0xf] %v212
        %667 = vst [vmem:[#allocation2 + $0x34] sm:$0xf] %v213
        %668 = vst [vmem:[#allocation2 + $0x40] sm:$0xf] %v214
        %669 = vst [vmem:[#allocation2 + $0x4c] sm:$0xf] %v215
        %670 = vst [vmem:[#allocation2 + $0x58] sm:$0xf] %v216
        %671 = vst [vmem:[#allocation2 + $0x64] sm:$0xf] %v217
        %672 = vst [vmem:[#allocation2 + $0x70] sm:$0xf] %v218
        %673 = vst [vmem:[#allocation2 + $0x7c] sm:$0xf] %v219
        %674 = vst [vmem:[#allocation2 + $0x88] sm:$0xf] %v220
        %675 = vst [vmem:[#allocation2 + $0x94] sm:$0xf] %v221
        %676 = vst [vmem:[#allocation2 + $0xa0] sm:$0xf] %v222
        %677 = vst [vmem:[#allocation2 + $0xac] sm:$0xf] %v223
        %678 = vst [vmem:[#allocation2 + $0xb8] sm:$0xf] %v224
        %679 = vst [vmem:[#allocation2 + $0xc4] sm:$0xf] %v225
        %680 = vst [vmem:[#allocation2 + $0xd0] sm:$0xf] %v226
        %681 = vst [vmem:[#allocation2 + $0xdc] sm:$0xf] %v227
        %682 = vst [vmem:[#allocation2 + $0xe8] sm:$0xf] %v228
        %683 = vst [vmem:[#allocation2 + $0xf4] sm:$0xf] %v229
        %684 = vst [vmem:[#allocation2 + $0x100] sm:$0xf] %v230
        %685 = vst [vmem:[#allocation2 + $0x10c] sm:$0xf] %v231
        %686 = vst [vmem:[#allocation2 + $0x118] sm:$0xf] %v232
        %687 = vst [vmem:[#allocation2 + $0x124] sm:$0xf] %v233
        %688 = vst [vmem:[#allocation2 + $0x130] sm:$0xf] %v234
        %689 = vst [vmem:[#allocation2 + $0x13c] sm:$0xf] %v235
        %690 = vst [vmem:[#allocation2 + $0x148] sm:$0xf] %v236
        %691 = vst [vmem:[#allocation2 + $0x154] sm:$0xf] %v237
        %692 = vst [vmem:[#allocation2 + $0x160] sm:$0xf] %v238
        %693 = vst [vmem:[#allocation2 + $0x16c] sm:$0xf] %v239
        %694 = vst [vmem:[#allocation2 + $0x178] sm:$0xf] %v240
        %vm695 = vsmask.f32 3328
        %vm696 = vsmask.f32 7440
        %vm697 = vmor %vm695, %vm696
        %v698 = vrot.slane %v309, 4
        %v699 = vrot.slane %v312, 5
        %v700 = vor.u32 %v698, %v699
        %v701 = vrot.slane %v700, 4
        %v702 = vrot.slane %v320, 5
        %v703 = vsel %vm697, %v701, %v702
        %v704 = vrot.slane %v317, 4
        %v705 = vor.u32 %v704, %v702
        %v706 = vrot.slane %v705, 4
        %v707 = vrot.slane %v325, 4
        %v708 = vrot.slane %v328, 5
        %v709 = vor.u32 %v707, %v708
        %v710 = vrot.slane %v709, 4
        %v711 = vrot.slane %v336, 5
        %v712 = vsel %vm697, %v710, %v711
        %v713 = vrot.slane %v333, 4
        %v714 = vor.u32 %v713, %v711
        %v715 = vrot.slane %v714, 4
        %v716 = vrot.slane %v341, 4
        %v717 = vrot.slane %v344, 5
        %v718 = vor.u32 %v716, %v717
        %v719 = vrot.slane %v718, 4
        %v720 = vrot.slane %v352, 5
        %v721 = vsel %vm697, %v719, %v720
        %v722 = vrot.slane %v349, 4
        %v723 = vor.u32 %v722, %v720
        %v724 = vrot.slane %v723, 4
        %v725 = vrot.slane %v357, 4
        %v726 = vrot.slane %v360, 5
        %v727 = vor.u32 %v725, %v726
        %v728 = vrot.slane %v727, 4
        %v729 = vrot.slane %v368, 5
        %v730 = vsel %vm697, %v728, %v729
        %v731 = vrot.slane %v365, 4
        %v732 = vor.u32 %v731, %v729
        %v733 = vrot.slane %v732, 4
        %v734 = vrot.slane %v373, 4
        %v735 = vrot.slane %v376, 5
        %v736 = vor.u32 %v734, %v735
        %v737 = vrot.slane %v736, 4
        %v738 = vrot.slane %v384, 5
        %v739 = vsel %vm697, %v737, %v738
        %v740 = vrot.slane %v381, 4
        %v741 = vor.u32 %v740, %v738
        %v742 = vrot.slane %v741, 4
        %v743 = vrot.slane %v389, 4
        %v744 = vrot.slane %v392, 5
        %v745 = vor.u32 %v743, %v744
        %v746 = vrot.slane %v745, 4
        %v747 = vrot.slane %v400, 5
        %v748 = vsel %vm697, %v746, %v747
        %v749 = vrot.slane %v397, 4
        %v750 = vor.u32 %v749, %v747
        %v751 = vrot.slane %v750, 4
        %v752 = vrot.slane %v405, 4
        %v753 = vrot.slane %v408, 5
        %v754 = vor.u32 %v752, %v753
        %v755 = vrot.slane %v754, 4
        %v756 = vrot.slane %v416, 5
        %v757 = vsel %vm697, %v755, %v756
        %v758 = vrot.slane %v413, 4
        %v759 = vor.u32 %v758, %v756
        %v760 = vrot.slane %v759, 4
        %v761 = vrot.slane %v421, 4
        %v762 = vrot.slane %v424, 5
        %v763 = vor.u32 %v761, %v762
        %v764 = vrot.slane %v763, 4
        %v765 = vrot.slane %v432, 5
        %v766 = vsel %vm697, %v764, %v765
        %v767 = vrot.slane %v429, 4
        %v768 = vor.u32 %v767, %v765
        %v769 = vrot.slane %v768, 4
        %v770 = vrot.slane %v437, 4
        %v771 = vrot.slane %v440, 5
        %v772 = vor.u32 %v770, %v771
        %v773 = vrot.slane %v772, 4
        %v774 = vrot.slane %v448, 5
        %v775 = vsel %vm697, %v773, %v774
        %v776 = vrot.slane %v445, 4
        %v777 = vor.u32 %v776, %v774
        %v778 = vrot.slane %v777, 4
        %v779 = vrot.slane %v453, 4
        %v780 = vrot.slane %v456, 5
        %v781 = vor.u32 %v779, %v780
        %v782 = vrot.slane %v781, 4
        %v783 = vrot.slane %v464, 5
        %v784 = vsel %vm697, %v782, %v783
        %v785 = vrot.slane %v461, 4
        %v786 = vor.u32 %v785, %v783
        %v787 = vrot.slane %v786, 4
        %v788 = vrot.slane %v469, 4
        %v789 = vrot.slane %v472, 5
        %v790 = vor.u32 %v788, %v789
        %v791 = vrot.slane %v790, 4
        %v792 = vrot.slane %v480, 5
        %v793 = vsel %vm697, %v791, %v792
        %v794 = vrot.slane %v477, 4
        %v795 = vor.u32 %v794, %v792
        %v796 = vrot.slane %v795, 4
        %v797 = vrot.slane %v485, 4
        %v798 = vrot.slane %v488, 5
        %v799 = vor.u32 %v797, %v798
        %v800 = vrot.slane %v799, 4
        %v801 = vrot.slane %v496, 5
        %v802 = vsel %vm697, %v800, %v801
        %v803 = vrot.slane %v493, 4
        %v804 = vor.u32 %v803, %v801
        %v805 = vrot.slane %v804, 4
        %v806 = vrot.slane %v501, 4
        %v807 = vrot.slane %v504, 5
        %v808 = vor.u32 %v806, %v807
        %v809 = vrot.slane %v808, 4
        %v810 = vrot.slane %v512, 5
        %v811 = vsel %vm697, %v809, %v810
        %v812 = vrot.slane %v509, 4
        %v813 = vor.u32 %v812, %v810
        %v814 = vrot.slane %v813, 4
        %v815 = vrot.slane %v517, 4
        %v816 = vrot.slane %v520, 5
        %v817 = vor.u32 %v815, %v816
        %v818 = vrot.slane %v817, 4
        %v819 = vrot.slane %v528, 5
        %v820 = vsel %vm697, %v818, %v819
        %v821 = vrot.slane %v525, 4
        %v822 = vor.u32 %v821, %v819
        %v823 = vrot.slane %v822, 4
        %v824 = vrot.slane %v533, 4
        %v825 = vrot.slane %v536, 5
        %v826 = vor.u32 %v824, %v825
        %v827 = vrot.slane %v826, 4
        %v828 = vrot.slane %v544, 5
        %v829 = vsel %vm697, %v827, %v828
        %v830 = vrot.slane %v541, 4
        %v831 = vor.u32 %v830, %v828
        %v832 = vrot.slane %v831, 4
        %v833 = vrot.slane %v549, 4
        %v834 = vrot.slane %v552, 5
        %v835 = vor.u32 %v833, %v834
        %v836 = vrot.slane %v835, 4
        %v837 = vrot.slane %v560, 5
        %v838 = vsel %vm697, %v836, %v837
        %v839 = vrot.slane %v557, 4
        %v840 = vor.u32 %v839, %v837
        %v841 = vrot.slane %v840, 4
        %874 = vst [vmem:[#allocation2 + $0x8] sm:$0xf] %v703
        %vm875 = vmand %vm596, %vm695
        %v876 = vld [vmem:[#allocation2 + $0x14] sm:$0xf]
        %v877 = vsel %vm875, %v706, %v876
        %878 = vst [vmem:[#allocation2 + $0x14] sm:$0xf] %v877
        %879 = vst [vmem:[#allocation2 + $0x20] sm:$0xf] %v712
        %v880 = vld [vmem:[#allocation2 + $0x2c] sm:$0xf]
        %v881 = vsel %vm875, %v715, %v880
        %882 = vst [vmem:[#allocation2 + $0x2c] sm:$0xf] %v881
        %883 = vst [vmem:[#allocation2 + $0x38] sm:$0xf] %v721
        %v884 = vld [vmem:[#allocation2 + $0x44] sm:$0xf]
        %v885 = vsel %vm875, %v724, %v884
        %886 = vst [vmem:[#allocation2 + $0x44] sm:$0xf] %v885
        %887 = vst [vmem:[#allocation2 + $0x50] sm:$0xf] %v730
        %v888 = vld [vmem:[#allocation2 + $0x5c] sm:$0xf]
        %v889 = vsel %vm875, %v733, %v888
        %890 = vst [vmem:[#allocation2 + $0x5c] sm:$0xf] %v889
        %891 = vst [vmem:[#allocation2 + $0x68] sm:$0xf] %v739
        %v892 = vld [vmem:[#allocation2 + $0x74] sm:$0xf]
        %v893 = vsel %vm875, %v742, %v892
        %894 = vst [vmem:[#allocation2 + $0x74] sm:$0xf] %v893
        %895 = vst [vmem:[#allocation2 + $0x80] sm:$0xf] %v748
        %v896 = vld [vmem:[#allocation2 + $0x8c] sm:$0xf]
        %v897 = vsel %vm875, %v751, %v896
        %898 = vst [vmem:[#allocation2 + $0x8c] sm:$0xf] %v897
        %899 = vst [vmem:[#allocation2 + $0x98] sm:$0xf] %v757
        %v900 = vld [vmem:[#allocation2 + $0xa4] sm:$0xf]
        %v901 = vsel %vm875, %v760, %v900
        %902 = vst [vmem:[#allocation2 + $0xa4] sm:$0xf] %v901
        %903 = vst [vmem:[#allocation2 + $0xb0] sm:$0xf] %v766
        %v904 = vld [vmem:[#allocation2 + $0xbc] sm:$0xf]
        %v905 = vsel %vm875, %v769, %v904
        %906 = vst [vmem:[#allocation2 + $0xbc] sm:$0xf] %v905
        %907 = vst [vmem:[#allocation2 + $0xc8] sm:$0xf] %v775
        %v908 = vld [vmem:[#allocation2 + $0xd4] sm:$0xf]
        %v909 = vsel %vm875, %v778, %v908
        %910 = vst [vmem:[#allocation2 + $0xd4] sm:$0xf] %v909
        %911 = vst [vmem:[#allocation2 + $0xe0] sm:$0xf] %v784
        %v912 = vld [vmem:[#allocation2 + $0xec] sm:$0xf]
        %v913 = vsel %vm875, %v787, %v912
        %914 = vst [vmem:[#allocation2 + $0xec] sm:$0xf] %v913
        %915 = vst [vmem:[#allocation2 + $0xf8] sm:$0xf] %v793
        %v916 = vld [vmem:[#allocation2 + $0x104] sm:$0xf]
        %v917 = vsel %vm875, %v796, %v916
        %918 = vst [vmem:[#allocation2 + $0x104] sm:$0xf] %v917
        %919 = vst [vmem:[#allocation2 + $0x110] sm:$0xf] %v802
        %v920 = vld [vmem:[#allocation2 + $0x11c] sm:$0xf]
        %v921 = vsel %vm875, %v805, %v920
        %922 = vst [vmem:[#allocation2 + $0x11c] sm:$0xf] %v921
        %923 = vst [vmem:[#allocation2 + $0x128] sm:$0xf] %v811
        %v924 = vld [vmem:[#allocation2 + $0x134] sm:$0xf]
        %v925 = vsel %vm875, %v814, %v924
        %926 = vst [vmem:[#allocation2 + $0x134] sm:$0xf] %v925
        %927 = vst [vmem:[#allocation2 + $0x140] sm:$0xf] %v820
        %v928 = vld [vmem:[#allocation2 + $0x14c] sm:$0xf]
        %v929 = vsel %vm875, %v823, %v928
        %930 = vst [vmem:[#allocation2 + $0x14c] sm:$0xf] %v929
        %931 = vst [vmem:[#allocation2 + $0x158] sm:$0xf] %v829
        %v932 = vld [vmem:[#allocation2 + $0x164] sm:$0xf]
        %v933 = vsel %vm875, %v832, %v932
        %934 = vst [vmem:[#allocation2 + $0x164] sm:$0xf] %v933
        %935 = vst [vmem:[#allocation2 + $0x170] sm:$0xf] %v838
        %v936 = vld [vmem:[#allocation2 + $0x17c] sm:$0xf]
        %v937 = vsel %vm875, %v841, %v936
        %938 = vst [vmem:[#allocation2 + $0x17c] sm:$0xf] %v937
        %v939 = vld [vmem:[#allocation2] sm:$0xff]
        %v940 = vld [vmem:[#allocation2 + $0x8] sm:$0xf]
        %v941 = vld [vmem:[#allocation2 + $0xc] sm:$0xff]
        %v942 = vld [vmem:[#allocation2 + $0x14] sm:$0xf]
        %v943 = vld [vmem:[#allocation2 + $0x18] sm:$0xff]
        %v944 = vld [vmem:[#allocation2 + $0x20] sm:$0xf]
        %v945 = vld [vmem:[#allocation2 + $0x24] sm:$0xff]
        %v946 = vld [vmem:[#allocation2 + $0x2c] sm:$0xf]
        %v947 = vld [vmem:[#allocation2 + $0x30] sm:$0xff]
        %v948 = vld [vmem:[#allocation2 + $0x38] sm:$0xf]
        %v949 = vld [vmem:[#allocation2 + $0x3c] sm:$0xff]
        %v950 = vld [vmem:[#allocation2 + $0x44] sm:$0xf]
        %v951 = vld [vmem:[#allocation2 + $0x48] sm:$0xff]
        %v952 = vld [vmem:[#allocation2 + $0x50] sm:$0xf]
        %v953 = vld [vmem:[#allocation2 + $0x54] sm:$0xff]
        %v954 = vld [vmem:[#allocation2 + $0x5c] sm:$0xf]
        %v955 = vld [vmem:[#allocation2 + $0x60] sm:$0xff]
        %v956 = vld [vmem:[#allocation2 + $0x68] sm:$0xf]
        %v957 = vld [vmem:[#allocation2 + $0x6c] sm:$0xff]
        %v958 = vld [vmem:[#allocation2 + $0x74] sm:$0xf]
        %v959 = vld [vmem:[#allocation2 + $0x78] sm:$0xff]
        %v960 = vld [vmem:[#allocation2 + $0x80] sm:$0xf]
        %v961 = vld [vmem:[#allocation2 + $0x84] sm:$0xff]
        %v962 = vld [vmem:[#allocation2 + $0x8c] sm:$0xf]
        %v963 = vld [vmem:[#allocation2 + $0x90] sm:$0xff]
        %v964 = vld [vmem:[#allocation2 + $0x98] sm:$0xf]
        %v965 = vld [vmem:[#allocation2 + $0x9c] sm:$0xff]
        %v966 = vld [vmem:[#allocation2 + $0xa4] sm:$0xf]
        %v967 = vld [vmem:[#allocation2 + $0xa8] sm:$0xff]
        %v968 = vld [vmem:[#allocation2 + $0xb0] sm:$0xf]
        %v969 = vld [vmem:[#allocation2 + $0xb4] sm:$0xff]
        %v970 = vld [vmem:[#allocation2 + $0xbc] sm:$0xf]
        %v971 = vld [vmem:[#allocation2 + $0xc0] sm:$0xff]
        %v972 = vld [vmem:[#allocation2 + $0xc8] sm:$0xf]
        %v973 = vld [vmem:[#allocation2 + $0xcc] sm:$0xff]
        %v974 = vld [vmem:[#allocation2 + $0xd4] sm:$0xf]
        %v975 = vld [vmem:[#allocation2 + $0xd8] sm:$0xff]
        %v976 = vld [vmem:[#allocation2 + $0xe0] sm:$0xf]
        %v977 = vld [vmem:[#allocation2 + $0xe4] sm:$0xff]
        %v978 = vld [vmem:[#allocation2 + $0xec] sm:$0xf]
        %v979 = vld [vmem:[#allocation2 + $0xf0] sm:$0xff]
        %v980 = vld [vmem:[#allocation2 + $0xf8] sm:$0xf]
        %v981 = vld [vmem:[#allocation2 + $0xfc] sm:$0xff]
        %v982 = vld [vmem:[#allocation2 + $0x104] sm:$0xf]
        %v983 = vld [vmem:[#allocation2 + $0x108] sm:$0xff]
        %v984 = vld [vmem:[#allocation2 + $0x110] sm:$0xf]
        %v985 = vld [vmem:[#allocation2 + $0x114] sm:$0xff]
        %v986 = vld [vmem:[#allocation2 + $0x11c] sm:$0xf]
        %v987 = vld [vmem:[#allocation2 + $0x120] sm:$0xff]
        %v988 = vld [vmem:[#allocation2 + $0x128] sm:$0xf]
        %v989 = vld [vmem:[#allocation2 + $0x12c] sm:$0xff]
        %v990 = vld [vmem:[#allocation2 + $0x134] sm:$0xf]
        %v991 = vld [vmem:[#allocation2 + $0x138] sm:$0xff]
        %v992 = vld [vmem:[#allocation2 + $0x140] sm:$0xf]
        %v993 = vld [vmem:[#allocation2 + $0x144] sm:$0xff]
        %v994 = vld [vmem:[#allocation2 + $0x14c] sm:$0xf]
        %v995 = vld [vmem:[#allocation2 + $0x150] sm:$0xff]
        %v996 = vld [vmem:[#allocation2 + $0x158] sm:$0xf]
        %v997 = vld [vmem:[#allocation2 + $0x15c] sm:$0xff]
        %v998 = vld [vmem:[#allocation2 + $0x164] sm:$0xf]
        %v999 = vld [vmem:[#allocation2 + $0x168] sm:$0xff]
        %v1000 = vld [vmem:[#allocation2 + $0x170] sm:$0xf]
        %v1001 = vld [vmem:[#allocation2 + $0x174] sm:$0xff]
        %v1002 = vld [vmem:[#allocation2 + $0x17c] sm:$0xf]
        %s1003 = scalar_lea.vmem [#allocation6], 192
        %v1004 = vld [vmem:[%s1003] sm:$0xf]
        %v1005 = vld [vmem:[%s1003 + $0x4] sm:$0xf]
        %v1006 = vld [vmem:[%s1003 + $0x8] sm:$0xf]
        %v1007 = vld [vmem:[%s1003 + $0xc] sm:$0xf]
        %v1008 = vld [vmem:[%s1003 + $0x10] sm:$0xf]
        %v1009 = vld [vmem:[%s1003 + $0x14] sm:$0xf]
        %v1010 = vld [vmem:[%s1003 + $0x18] sm:$0xf]
        %v1011 = vld [vmem:[%s1003 + $0x1c] sm:$0xf]
        %v1012 = vld [vmem:[%s1003 + $0x20] sm:$0xf]
        %v1013 = vld [vmem:[%s1003 + $0x24] sm:$0xf]
        %v1014 = vld [vmem:[%s1003 + $0x28] sm:$0xf]
        %v1015 = vld [vmem:[%s1003 + $0x2c] sm:$0xf]
        %v1016 = vld [vmem:[%s1003 + $0x30] sm:$0xf]
        %v1017 = vld [vmem:[%s1003 + $0x34] sm:$0xf]
        %v1018 = vld [vmem:[%s1003 + $0x38] sm:$0xf]
        %v1019 = vld [vmem:[%s1003 + $0x3c] sm:$0xf]
        %v1020 = vld [vmem:[%s1003 + $0x40] sm:$0xf]
        %v1021 = vld [vmem:[%s1003 + $0x44] sm:$0xf]
        %v1022 = vld [vmem:[%s1003 + $0x48] sm:$0xf]
        %v1023 = vld [vmem:[%s1003 + $0x4c] sm:$0xf]
        %v1024 = vld [vmem:[%s1003 + $0x50] sm:$0xf]
        %v1025 = vld [vmem:[%s1003 + $0x54] sm:$0xf]
        %v1026 = vld [vmem:[%s1003 + $0x58] sm:$0xf]
        %v1027 = vld [vmem:[%s1003 + $0x5c] sm:$0xf]
        %v1028 = vld [vmem:[%s1003 + $0x60] sm:$0xf]
        %v1029 = vld [vmem:[%s1003 + $0x64] sm:$0xf]
        %v1030 = vld [vmem:[%s1003 + $0x68] sm:$0xf]
        %v1031 = vld [vmem:[%s1003 + $0x6c] sm:$0xf]
        %v1032 = vld [vmem:[%s1003 + $0x70] sm:$0xf]
        %v1033 = vld [vmem:[%s1003 + $0x74] sm:$0xf]
        %v1034 = vld [vmem:[%s1003 + $0x78] sm:$0xf]
        %v1035 = vld [vmem:[%s1003 + $0x7c] sm:$0xf]
        %v1036 = vld [vmem:[%s1003 + $0x80] sm:$0xf]
        %v1037 = vld [vmem:[%s1003 + $0x84] sm:$0xf]
        %v1038 = vld [vmem:[%s1003 + $0x88] sm:$0xf]
        %v1039 = vld [vmem:[%s1003 + $0x8c] sm:$0xf]
        %v1040 = vld [vmem:[%s1003 + $0x90] sm:$0xf]
        %v1041 = vld [vmem:[%s1003 + $0x94] sm:$0xf]
        %v1042 = vld [vmem:[%s1003 + $0x98] sm:$0xf]
        %v1043 = vld [vmem:[%s1003 + $0x9c] sm:$0xf]
        %v1044 = vld [vmem:[%s1003 + $0xa0] sm:$0xf]
        %v1045 = vld [vmem:[%s1003 + $0xa4] sm:$0xf]
        %v1046 = vld [vmem:[%s1003 + $0xa8] sm:$0xf]
        %v1047 = vld [vmem:[%s1003 + $0xac] sm:$0xf]
        %v1048 = vld [vmem:[%s1003 + $0xb0] sm:$0xf]
        %v1049 = vld [vmem:[%s1003 + $0xb4] sm:$0xf]
        %v1050 = vld [vmem:[%s1003 + $0xb8] sm:$0xf]
        %v1051 = vld [vmem:[%s1003 + $0xbc] sm:$0xf]
        %v1052 = vld [vmem:[%s2] sm:$0x1]
        %v1054 = vperm.slane %v1052, 0
        %v1120 = vunpack.c.l.b16 %v939
        %v1121 = vunpack.c.h.b16 %v939
        %v1122 = vunpack.c.l.b16 %v940
        %v1123 = vunpack.c.l.b16 %v941
        %v1124 = vunpack.c.h.b16 %v941
        %v1125 = vunpack.c.l.b16 %v942
        %v1126 = vunpack.c.l.b16 %v943
        %v1127 = vunpack.c.h.b16 %v943
        %v1128 = vunpack.c.l.b16 %v944
        %v1129 = vunpack.c.l.b16 %v945
        %v1130 = vunpack.c.h.b16 %v945
        %v1131 = vunpack.c.l.b16 %v946
        %v1132 = vunpack.c.l.b16 %v947
        %v1133 = vunpack.c.h.b16 %v947
        %v1134 = vunpack.c.l.b16 %v948
        %v1135 = vunpack.c.l.b16 %v949
        %v1136 = vunpack.c.h.b16 %v949
        %v1137 = vunpack.c.l.b16 %v950
        %v1138 = vunpack.c.l.b16 %v951
        %v1139 = vunpack.c.h.b16 %v951
        %v1140 = vunpack.c.l.b16 %v952
        %v1141 = vunpack.c.l.b16 %v953
        %v1142 = vunpack.c.h.b16 %v953
        %v1143 = vunpack.c.l.b16 %v954
        %v1144 = vunpack.c.l.b16 %v955
        %v1145 = vunpack.c.h.b16 %v955
        %v1146 = vunpack.c.l.b16 %v956
        %v1147 = vunpack.c.l.b16 %v957
        %v1148 = vunpack.c.h.b16 %v957
        %v1149 = vunpack.c.l.b16 %v958
        %v1150 = vunpack.c.l.b16 %v959
        %v1151 = vunpack.c.h.b16 %v959
        %v1152 = vunpack.c.l.b16 %v960
        %v1153 = vunpack.c.l.b16 %v961
        %v1154 = vunpack.c.h.b16 %v961
        %v1155 = vunpack.c.l.b16 %v962
        %v1156 = vunpack.c.l.b16 %v963
        %v1157 = vunpack.c.h.b16 %v963
        %v1158 = vunpack.c.l.b16 %v964
        %v1159 = vunpack.c.l.b16 %v965
        %v1160 = vunpack.c.h.b16 %v965
        %v1161 = vunpack.c.l.b16 %v966
        %v1162 = vunpack.c.l.b16 %v967
        %v1163 = vunpack.c.h.b16 %v967
        %v1164 = vunpack.c.l.b16 %v968
        %v1165 = vunpack.c.l.b16 %v969
        %v1166 = vunpack.c.h.b16 %v969
        %v1167 = vunpack.c.l.b16 %v970
        %v1168 = vunpack.c.l.b16 %v971
        %v1169 = vunpack.c.h.b16 %v971
        %v1170 = vunpack.c.l.b16 %v972
        %v1171 = vunpack.c.l.b16 %v973
        %v1172 = vunpack.c.h.b16 %v973
        %v1173 = vunpack.c.l.b16 %v974
        %v1174 = vunpack.c.l.b16 %v975
        %v1175 = vunpack.c.h.b16 %v975
        %v1176 = vunpack.c.l.b16 %v976
        %v1177 = vunpack.c.l.b16 %v977
        %v1178 = vunpack.c.h.b16 %v977
        %v1179 = vunpack.c.l.b16 %v978
        %v1180 = vunpack.c.l.b16 %v979
        %v1181 = vunpack.c.h.b16 %v979
        %v1182 = vunpack.c.l.b16 %v980
        %v1183 = vunpack.c.l.b16 %v981
        %v1184 = vunpack.c.h.b16 %v981
        %v1185 = vunpack.c.l.b16 %v982
        %v1186 = vunpack.c.l.b16 %v983
        %v1187 = vunpack.c.h.b16 %v983
        %v1188 = vunpack.c.l.b16 %v984
        %v1189 = vunpack.c.l.b16 %v985
        %v1190 = vunpack.c.h.b16 %v985
        %v1191 = vunpack.c.l.b16 %v986
        %v1192 = vunpack.c.l.b16 %v987
        %v1193 = vunpack.c.h.b16 %v987
        %v1194 = vunpack.c.l.b16 %v988
        %v1195 = vunpack.c.l.b16 %v989
        %v1196 = vunpack.c.h.b16 %v989
        %v1197 = vunpack.c.l.b16 %v990
        %v1198 = vunpack.c.l.b16 %v991
        %v1199 = vunpack.c.h.b16 %v991
        %v1200 = vunpack.c.l.b16 %v992
        %v1201 = vunpack.c.l.b16 %v993
        %v1202 = vunpack.c.h.b16 %v993
        %v1203 = vunpack.c.l.b16 %v994
        %v1204 = vunpack.c.l.b16 %v995
        %v1205 = vunpack.c.h.b16 %v995
        %v1206 = vunpack.c.l.b16 %v996
        %v1207 = vunpack.c.l.b16 %v997
        %v1208 = vunpack.c.h.b16 %v997
        %v1209 = vunpack.c.l.b16 %v998
        %v1210 = vunpack.c.l.b16 %v999
        %v1211 = vunpack.c.h.b16 %v999
        %v1212 = vunpack.c.l.b16 %v1000
        %v1213 = vunpack.c.l.b16 %v1001
        %v1214 = vunpack.c.h.b16 %v1001
        %v1215 = vunpack.c.l.b16 %v1002
        %v1216 = vpack.c.b16 %v1123, %v1120
        %v1217 = vpack.c.b16 %v1124, %v1121
        %v1218 = vpack.c.b16 %v1125, %v1122
        %v1219 = vpack.c.b16 %v1129, %v1126
        %v1220 = vpack.c.b16 %v1130, %v1127
        %v1221 = vpack.c.b16 %v1131, %v1128
        %v1222 = vpack.c.b16 %v1135, %v1132
        %v1223 = vpack.c.b16 %v1136, %v1133
        %v1224 = vpack.c.b16 %v1137, %v1134
        %v1225 = vpack.c.b16 %v1141, %v1138
        %v1226 = vpack.c.b16 %v1142, %v1139
        %v1227 = vpack.c.b16 %v1143, %v1140
        %v1228 = vpack.c.b16 %v1147, %v1144
        %v1229 = vpack.c.b16 %v1148, %v1145
        %v1230 = vpack.c.b16 %v1149, %v1146
        %v1231 = vpack.c.b16 %v1153, %v1150
        %v1232 = vpack.c.b16 %v1154, %v1151
        %v1233 = vpack.c.b16 %v1155, %v1152
        %v1234 = vpack.c.b16 %v1159, %v1156
        %v1235 = vpack.c.b16 %v1160, %v1157
        %v1236 = vpack.c.b16 %v1161, %v1158
        %v1237 = vpack.c.b16 %v1165, %v1162
        %v1238 = vpack.c.b16 %v1166, %v1163
        %v1239 = vpack.c.b16 %v1167, %v1164
        %v1240 = vpack.c.b16 %v1171, %v1168
        %v1241 = vpack.c.b16 %v1172, %v1169
        %v1242 = vpack.c.b16 %v1173, %v1170
        %v1243 = vpack.c.b16 %v1177, %v1174
        %v1244 = vpack.c.b16 %v1178, %v1175
        %v1245 = vpack.c.b16 %v1179, %v1176
        %v1246 = vpack.c.b16 %v1183, %v1180
        %v1247 = vpack.c.b16 %v1184, %v1181
        %v1248 = vpack.c.b16 %v1185, %v1182
        %v1249 = vpack.c.b16 %v1189, %v1186
        %v1250 = vpack.c.b16 %v1190, %v1187
        %v1251 = vpack.c.b16 %v1191, %v1188
        %v1252 = vpack.c.b16 %v1195, %v1192
        %v1253 = vpack.c.b16 %v1196, %v1193
        %v1254 = vpack.c.b16 %v1197, %v1194
        %v1255 = vpack.c.b16 %v1201, %v1198
        %v1256 = vpack.c.b16 %v1202, %v1199
        %v1257 = vpack.c.b16 %v1203, %v1200
        %v1258 = vpack.c.b16 %v1207, %v1204
        %v1259 = vpack.c.b16 %v1208, %v1205
        %v1260 = vpack.c.b16 %v1209, %v1206
        %v1261 = vpack.c.b16 %v1213, %v1210
        %v1262 = vpack.c.b16 %v1214, %v1211
        %v1263 = vpack.c.b16 %v1215, %v1212
        %v1360 = vunpack.c.l.b16 %v1004
        %v1361 = vunpack.c.l.b16 %v1005
        %v1362 = vunpack.c.l.b16 %v1006
        %v1363 = vunpack.c.l.b16 %v1007
        %v1364 = vunpack.c.l.b16 %v1008
        %v1365 = vunpack.c.l.b16 %v1009
        %v1366 = vunpack.c.l.b16 %v1010
        %v1367 = vunpack.c.l.b16 %v1011
        %v1368 = vunpack.c.l.b16 %v1012
        %v1369 = vunpack.c.l.b16 %v1013
        %v1370 = vunpack.c.l.b16 %v1014
        %v1371 = vunpack.c.l.b16 %v1015
        %v1372 = vunpack.c.l.b16 %v1016
        %v1373 = vunpack.c.l.b16 %v1017
        %v1374 = vunpack.c.l.b16 %v1018
        %v1375 = vunpack.c.l.b16 %v1019
        %v1376 = vunpack.c.l.b16 %v1020
        %v1377 = vunpack.c.l.b16 %v1021
        %v1378 = vunpack.c.l.b16 %v1022
        %v1379 = vunpack.c.l.b16 %v1023
        %v1380 = vunpack.c.l.b16 %v1024
        %v1381 = vunpack.c.l.b16 %v1025
        %v1382 = vunpack.c.l.b16 %v1026
        %v1383 = vunpack.c.l.b16 %v1027
        %v1384 = vunpack.c.l.b16 %v1028
        %v1385 = vunpack.c.l.b16 %v1029
        %v1386 = vunpack.c.l.b16 %v1030
        %v1387 = vunpack.c.l.b16 %v1031
        %v1388 = vunpack.c.l.b16 %v1032
        %v1389 = vunpack.c.l.b16 %v1033
        %v1390 = vunpack.c.l.b16 %v1034
        %v1391 = vunpack.c.l.b16 %v1035
        %v1392 = vunpack.c.l.b16 %v1036
        %v1393 = vunpack.c.l.b16 %v1037
        %v1394 = vunpack.c.l.b16 %v1038
        %v1395 = vunpack.c.l.b16 %v1039
        %v1396 = vunpack.c.l.b16 %v1040
        %v1397 = vunpack.c.l.b16 %v1041
        %v1398 = vunpack.c.l.b16 %v1042
        %v1399 = vunpack.c.l.b16 %v1043
        %v1400 = vunpack.c.l.b16 %v1044
        %v1401 = vunpack.c.l.b16 %v1045
        %v1402 = vunpack.c.l.b16 %v1046
        %v1403 = vunpack.c.l.b16 %v1047
        %v1404 = vunpack.c.l.b16 %v1048
        %v1405 = vunpack.c.l.b16 %v1049
        %v1406 = vunpack.c.l.b16 %v1050
        %v1407 = vunpack.c.l.b16 %v1051
        %v1408 = vpack.c.b16 %v1361, %v1360
        %v1409 = vpack.c.b16 %v1363, %v1362
        %v1410 = vpack.c.b16 %v1365, %v1364
        %v1411 = vpack.c.b16 %v1367, %v1366
        %v1412 = vpack.c.b16 %v1369, %v1368
        %v1413 = vpack.c.b16 %v1371, %v1370
        %v1414 = vpack.c.b16 %v1373, %v1372
        %v1415 = vpack.c.b16 %v1375, %v1374
        %v1416 = vpack.c.b16 %v1377, %v1376
        %v1417 = vpack.c.b16 %v1379, %v1378
        %v1418 = vpack.c.b16 %v1381, %v1380
        %v1419 = vpack.c.b16 %v1383, %v1382
        %v1420 = vpack.c.b16 %v1385, %v1384
        %v1421 = vpack.c.b16 %v1387, %v1386
        %v1422 = vpack.c.b16 %v1389, %v1388
        %v1423 = vpack.c.b16 %v1391, %v1390
        %v1424 = vpack.c.b16 %v1393, %v1392
        %v1425 = vpack.c.b16 %v1395, %v1394
        %v1426 = vpack.c.b16 %v1397, %v1396
        %v1427 = vpack.c.b16 %v1399, %v1398
        %v1428 = vpack.c.b16 %v1401, %v1400
        %v1429 = vpack.c.b16 %v1403, %v1402
        %v1430 = vpack.c.b16 %v1405, %v1404
        %v1431 = vpack.c.b16 %v1407, %v1406
        %1456 = vmatpush.bf16.msra.mxu0 %v1415
        %1457 = vmatpush.bf16.msra.mxu0 %v1414
        %1458 = vmatpush.bf16.msra.mxu0 %v1413
        %1459 = vmatpush.bf16.msra.mxu0 %v1412
        %1460 = vmatpush.bf16.msra.mxu0 %v1411
        %1461 = vmatpush.bf16.msra.mxu0 %v1410
        %1462 = vmatpush.bf16.msra.mxu0 %v1409
        %1463 = vmatpush.bf16.msra.mxu0 %v1408
        %1464 = vmatmul.bf16.gmra.mxu0 %v1216
        %v1465 = vpop.f32.mrf.mxu0
        %v1466 = vadd.f32 %v1054, %v1465
        %v1467 = vpop.f32.mrf.mxu0
        %v1468 = vadd.f32 %v1054, %v1467
        %1469 = vmatmul.bf16.gmra.mxu0 %v1219
        %v1470 = vpop.f32.mrf.mxu0
        %v1471 = vadd.f32 %v1054, %v1470
        %v1472 = vpop.f32.mrf.mxu0
        %v1473 = vadd.f32 %v1054, %v1472
        %1474 = vmatmul.bf16.gmra.mxu0 %v1222
        %v1475 = vpop.f32.mrf.mxu0
        %v1476 = vadd.f32 %v1054, %v1475
        %v1477 = vpop.f32.mrf.mxu0
        %v1478 = vadd.f32 %v1054, %v1477
        %1479 = vmatmul.bf16.gmra.mxu0 %v1225
        %v1480 = vpop.f32.mrf.mxu0
        %v1481 = vadd.f32 %v1054, %v1480
        %v1482 = vpop.f32.mrf.mxu0
        %v1483 = vadd.f32 %v1054, %v1482
        %1484 = vmatmul.bf16.gmra.mxu0 %v1228
        %v1485 = vpop.f32.mrf.mxu0
        %v1486 = vadd.f32 %v1054, %v1485
        %v1487 = vpop.f32.mrf.mxu0
        %v1488 = vadd.f32 %v1054, %v1487
        %1489 = vmatmul.bf16.gmra.mxu0 %v1231
        %v1490 = vpop.f32.mrf.mxu0
        %v1491 = vadd.f32 %v1054, %v1490
        %v1492 = vpop.f32.mrf.mxu0
        %v1493 = vadd.f32 %v1054, %v1492
        %1494 = vmatmul.bf16.gmra.mxu0 %v1234
        %v1495 = vpop.f32.mrf.mxu0
        %v1496 = vadd.f32 %v1054, %v1495
        %v1497 = vpop.f32.mrf.mxu0
        %v1498 = vadd.f32 %v1054, %v1497
        %1499 = vmatmul.bf16.gmra.mxu0 %v1237
        %v1500 = vpop.f32.mrf.mxu0
        %v1501 = vadd.f32 %v1054, %v1500
        %v1502 = vpop.f32.mrf.mxu0
        %v1503 = vadd.f32 %v1054, %v1502
        %1504 = vmatmul.bf16.gmra.mxu0 %v1240
        %v1505 = vpop.f32.mrf.mxu0
        %v1506 = vadd.f32 %v1054, %v1505
        %v1507 = vpop.f32.mrf.mxu0
        %v1508 = vadd.f32 %v1054, %v1507
        %1509 = vmatmul.bf16.gmra.mxu0 %v1243
        %v1510 = vpop.f32.mrf.mxu0
        %v1511 = vadd.f32 %v1054, %v1510
        %v1512 = vpop.f32.mrf.mxu0
        %v1513 = vadd.f32 %v1054, %v1512
        %1514 = vmatmul.bf16.gmra.mxu0 %v1246
        %v1515 = vpop.f32.mrf.mxu0
        %v1516 = vadd.f32 %v1054, %v1515
        %v1517 = vpop.f32.mrf.mxu0
        %v1518 = vadd.f32 %v1054, %v1517
        %1519 = vmatmul.bf16.gmra.mxu0 %v1249
        %v1520 = vpop.f32.mrf.mxu0
        %v1521 = vadd.f32 %v1054, %v1520
        %v1522 = vpop.f32.mrf.mxu0
        %v1523 = vadd.f32 %v1054, %v1522
        %1524 = vmatmul.bf16.gmra.mxu0 %v1252
        %v1525 = vpop.f32.mrf.mxu0
        %v1526 = vadd.f32 %v1054, %v1525
        %v1527 = vpop.f32.mrf.mxu0
        %v1528 = vadd.f32 %v1054, %v1527
        %1529 = vmatmul.bf16.gmra.mxu0 %v1255
        %v1530 = vpop.f32.mrf.mxu0
        %v1531 = vadd.f32 %v1054, %v1530
        %v1532 = vpop.f32.mrf.mxu0
        %v1533 = vadd.f32 %v1054, %v1532
        %1534 = vmatmul.bf16.gmra.mxu0 %v1258
        %v1535 = vpop.f32.mrf.mxu0
        %v1536 = vadd.f32 %v1054, %v1535
        %v1537 = vpop.f32.mrf.mxu0
        %v1538 = vadd.f32 %v1054, %v1537
        %1539 = vmatmul.bf16.gmra.mxu0 %v1261
        %v1540 = vpop.f32.mrf.mxu0
        %v1541 = vadd.f32 %v1054, %v1540
        %v1542 = vpop.f32.mrf.mxu0
        %v1543 = vadd.f32 %v1054, %v1542
        %1544 = vdwg.mxu0
        %1545 = vmatpush.bf16.msra.mxu0 %v1423
        %1546 = vmatpush.bf16.msra.mxu0 %v1422
        %1547 = vmatpush.bf16.msra.mxu0 %v1421
        %1548 = vmatpush.bf16.msra.mxu0 %v1420
        %1549 = vmatpush.bf16.msra.mxu0 %v1419
        %1550 = vmatpush.bf16.msra.mxu0 %v1418
        %1551 = vmatpush.bf16.msra.mxu0 %v1417
        %1552 = vmatpush.bf16.msra.mxu0 %v1416
        %1553 = vmatmul.bf16.gmra.mxu0 %v1217
        %v1554 = vpop.f32.mrf.mxu0
        %v1555 = vadd.f32 %v1466, %v1554
        %v1556 = vpop.f32.mrf.mxu0
        %v1557 = vadd.f32 %v1468, %v1556
        %1558 = vmatmul.bf16.gmra.mxu0 %v1220
        %v1559 = vpop.f32.mrf.mxu0
        %v1560 = vadd.f32 %v1471, %v1559
        %v1561 = vpop.f32.mrf.mxu0
        %v1562 = vadd.f32 %v1473, %v1561
        %1563 = vmatmul.bf16.gmra.mxu0 %v1223
        %v1564 = vpop.f32.mrf.mxu0
        %v1565 = vadd.f32 %v1476, %v1564
        %v1566 = vpop.f32.mrf.mxu0
        %v1567 = vadd.f32 %v1478, %v1566
        %1568 = vmatmul.bf16.gmra.mxu0 %v1226
        %v1569 = vpop.f32.mrf.mxu0
        %v1570 = vadd.f32 %v1481, %v1569
        %v1571 = vpop.f32.mrf.mxu0
        %v1572 = vadd.f32 %v1483, %v1571
        %1573 = vmatmul.bf16.gmra.mxu0 %v1229
        %v1574 = vpop.f32.mrf.mxu0
        %v1575 = vadd.f32 %v1486, %v1574
        %v1576 = vpop.f32.mrf.mxu0
        %v1577 = vadd.f32 %v1488, %v1576
        %1578 = vmatmul.bf16.gmra.mxu0 %v1232
        %v1579 = vpop.f32.mrf.mxu0
        %v1580 = vadd.f32 %v1491, %v1579
        %v1581 = vpop.f32.mrf.mxu0
        %v1582 = vadd.f32 %v1493, %v1581
        %1583 = vmatmul.bf16.gmra.mxu0 %v1235
        %v1584 = vpop.f32.mrf.mxu0
        %v1585 = vadd.f32 %v1496, %v1584
        %v1586 = vpop.f32.mrf.mxu0
        %v1587 = vadd.f32 %v1498, %v1586
        %1588 = vmatmul.bf16.gmra.mxu0 %v1238
        %v1589 = vpop.f32.mrf.mxu0
        %v1590 = vadd.f32 %v1501, %v1589
        %v1591 = vpop.f32.mrf.mxu0
        %v1592 = vadd.f32 %v1503, %v1591
        %1593 = vmatmul.bf16.gmra.mxu0 %v1241
        %v1594 = vpop.f32.mrf.mxu0
        %v1595 = vadd.f32 %v1506, %v1594
        %v1596 = vpop.f32.mrf.mxu0
        %v1597 = vadd.f32 %v1508, %v1596
        %1598 = vmatmul.bf16.gmra.mxu0 %v1244
        %v1599 = vpop.f32.mrf.mxu0
        %v1600 = vadd.f32 %v1511, %v1599
        %v1601 = vpop.f32.mrf.mxu0
        %v1602 = vadd.f32 %v1513, %v1601
        %1603 = vmatmul.bf16.gmra.mxu0 %v1247
        %v1604 = vpop.f32.mrf.mxu0
        %v1605 = vadd.f32 %v1516, %v1604
        %v1606 = vpop.f32.mrf.mxu0
        %v1607 = vadd.f32 %v1518, %v1606
        %1608 = vmatmul.bf16.gmra.mxu0 %v1250
        %v1609 = vpop.f32.mrf.mxu0
        %v1610 = vadd.f32 %v1521, %v1609
        %v1611 = vpop.f32.mrf.mxu0
        %v1612 = vadd.f32 %v1523, %v1611
        %1613 = vmatmul.bf16.gmra.mxu0 %v1253
        %v1614 = vpop.f32.mrf.mxu0
        %v1615 = vadd.f32 %v1526, %v1614
        %v1616 = vpop.f32.mrf.mxu0
        %v1617 = vadd.f32 %v1528, %v1616
        %1618 = vmatmul.bf16.gmra.mxu0 %v1256
        %v1619 = vpop.f32.mrf.mxu0
        %v1620 = vadd.f32 %v1531, %v1619
        %v1621 = vpop.f32.mrf.mxu0
        %v1622 = vadd.f32 %v1533, %v1621
        %1623 = vmatmul.bf16.gmra.mxu0 %v1259
        %v1624 = vpop.f32.mrf.mxu0
        %v1625 = vadd.f32 %v1536, %v1624
        %v1626 = vpop.f32.mrf.mxu0
        %v1627 = vadd.f32 %v1538, %v1626
        %1628 = vmatmul.bf16.gmra.mxu0 %v1262
        %v1629 = vpop.f32.mrf.mxu0
        %v1630 = vadd.f32 %v1541, %v1629
        %v1631 = vpop.f32.mrf.mxu0
        %v1632 = vadd.f32 %v1543, %v1631
        %1633 = vdwg.mxu0
        %1634 = vmatpush.bf16.msra.mxu0 %v1431
        %1635 = vmatpush.bf16.msra.mxu0 %v1430
        %1636 = vmatpush.bf16.msra.mxu0 %v1429
        %1637 = vmatpush.bf16.msra.mxu0 %v1428
        %1638 = vmatpush.bf16.msra.mxu0 %v1427
        %1639 = vmatpush.bf16.msra.mxu0 %v1426
        %1640 = vmatpush.bf16.msra.mxu0 %v1425
        %1641 = vmatpush.bf16.msra.mxu0 %v1424
        %1642 = vmatmul.bf16.gmra.mxu0 %v1218
        %v1643 = vpop.f32.mrf.mxu0
        %v1644 = vadd.f32 %v1555, %v1643
        %v1645 = vpop.f32.mrf.mxu0
        %v1646 = vadd.f32 %v1557, %v1645
        %1647 = vmatmul.bf16.gmra.mxu0 %v1221
        %v1648 = vpop.f32.mrf.mxu0
        %v1649 = vadd.f32 %v1560, %v1648
        %v1650 = vpop.f32.mrf.mxu0
        %v1651 = vadd.f32 %v1562, %v1650
        %1652 = vmatmul.bf16.gmra.mxu0 %v1224
        %v1653 = vpop.f32.mrf.mxu0
        %v1654 = vadd.f32 %v1565, %v1653
        %v1655 = vpop.f32.mrf.mxu0
        %v1656 = vadd.f32 %v1567, %v1655
        %1657 = vmatmul.bf16.gmra.mxu0 %v1227
        %v1658 = vpop.f32.mrf.mxu0
        %v1659 = vadd.f32 %v1570, %v1658
        %v1660 = vpop.f32.mrf.mxu0
        %v1661 = vadd.f32 %v1572, %v1660
        %1662 = vmatmul.bf16.gmra.mxu0 %v1230
        %v1663 = vpop.f32.mrf.mxu0
        %v1664 = vadd.f32 %v1575, %v1663
        %v1665 = vpop.f32.mrf.mxu0
        %v1666 = vadd.f32 %v1577, %v1665
        %1667 = vmatmul.bf16.gmra.mxu0 %v1233
        %v1668 = vpop.f32.mrf.mxu0
        %v1669 = vadd.f32 %v1580, %v1668
        %v1670 = vpop.f32.mrf.mxu0
        %v1671 = vadd.f32 %v1582, %v1670
        %1672 = vmatmul.bf16.gmra.mxu0 %v1236
        %v1673 = vpop.f32.mrf.mxu0
        %v1674 = vadd.f32 %v1585, %v1673
        %v1675 = vpop.f32.mrf.mxu0
        %v1676 = vadd.f32 %v1587, %v1675
        %1677 = vmatmul.bf16.gmra.mxu0 %v1239
        %v1678 = vpop.f32.mrf.mxu0
        %v1679 = vadd.f32 %v1590, %v1678
        %v1680 = vpop.f32.mrf.mxu0
        %v1681 = vadd.f32 %v1592, %v1680
        %1682 = vmatmul.bf16.gmra.mxu0 %v1242
        %v1683 = vpop.f32.mrf.mxu0
        %v1684 = vadd.f32 %v1595, %v1683
        %v1685 = vpop.f32.mrf.mxu0
        %v1686 = vadd.f32 %v1597, %v1685
        %1687 = vmatmul.bf16.gmra.mxu0 %v1245
        %v1688 = vpop.f32.mrf.mxu0
        %v1689 = vadd.f32 %v1600, %v1688
        %v1690 = vpop.f32.mrf.mxu0
        %v1691 = vadd.f32 %v1602, %v1690
        %1692 = vmatmul.bf16.gmra.mxu0 %v1248
        %v1693 = vpop.f32.mrf.mxu0
        %v1694 = vadd.f32 %v1605, %v1693
        %v1695 = vpop.f32.mrf.mxu0
        %v1696 = vadd.f32 %v1607, %v1695
        %1697 = vmatmul.bf16.gmra.mxu0 %v1251
        %v1698 = vpop.f32.mrf.mxu0
        %v1699 = vadd.f32 %v1610, %v1698
        %v1700 = vpop.f32.mrf.mxu0
        %v1701 = vadd.f32 %v1612, %v1700
        %1702 = vmatmul.bf16.gmra.mxu0 %v1254
        %v1703 = vpop.f32.mrf.mxu0
        %v1704 = vadd.f32 %v1615, %v1703
        %v1705 = vpop.f32.mrf.mxu0
        %v1706 = vadd.f32 %v1617, %v1705
        %1707 = vmatmul.bf16.gmra.mxu0 %v1257
        %v1708 = vpop.f32.mrf.mxu0
        %v1709 = vadd.f32 %v1620, %v1708
        %v1710 = vpop.f32.mrf.mxu0
        %v1711 = vadd.f32 %v1622, %v1710
        %1712 = vmatmul.bf16.gmra.mxu0 %v1260
        %v1713 = vpop.f32.mrf.mxu0
        %v1714 = vadd.f32 %v1625, %v1713
        %v1715 = vpop.f32.mrf.mxu0
        %v1716 = vadd.f32 %v1627, %v1715
        %1717 = vmatmul.bf16.gmra.mxu0 %v1263
        %v1718 = vpop.f32.mrf.mxu0
        %v1719 = vadd.f32 %v1630, %v1718
        %v1720 = vpop.f32.mrf.mxu0
        %v1721 = vadd.f32 %v1632, %v1720
        %1722 = vdwg.mxu0
        %1723 = vst [vmem:[%s207] sm:$0xff] %v1644
        %1724 = vst [vmem:[%s207 + $0x8] sm:$0xff] %v1646
        %1725 = vst [vmem:[%s207 + $0x10] sm:$0xff] %v1649
        %1726 = vst [vmem:[%s207 + $0x18] sm:$0xff] %v1651
        %1727 = vst [vmem:[%s207 + $0x20] sm:$0xff] %v1654
        %1728 = vst [vmem:[%s207 + $0x28] sm:$0xff] %v1656
        %1729 = vst [vmem:[%s207 + $0x30] sm:$0xff] %v1659
        %1730 = vst [vmem:[%s207 + $0x38] sm:$0xff] %v1661
        %1731 = vst [vmem:[%s207 + $0x40] sm:$0xff] %v1664
        %1732 = vst [vmem:[%s207 + $0x48] sm:$0xff] %v1666
        %1733 = vst [vmem:[%s207 + $0x50] sm:$0xff] %v1669
        %1734 = vst [vmem:[%s207 + $0x58] sm:$0xff] %v1671
        %1735 = vst [vmem:[%s207 + $0x60] sm:$0xff] %v1674
        %1736 = vst [vmem:[%s207 + $0x68] sm:$0xff] %v1676
        %1737 = vst [vmem:[%s207 + $0x70] sm:$0xff] %v1679
        %1738 = vst [vmem:[%s207 + $0x78] sm:$0xff] %v1681
        %1739 = vst [vmem:[%s207 + $0x80] sm:$0xff] %v1684
        %1740 = vst [vmem:[%s207 + $0x88] sm:$0xff] %v1686
        %1741 = vst [vmem:[%s207 + $0x90] sm:$0xff] %v1689
        %1742 = vst [vmem:[%s207 + $0x98] sm:$0xff] %v1691
        %1743 = vst [vmem:[%s207 + $0xa0] sm:$0xff] %v1694
        %1744 = vst [vmem:[%s207 + $0xa8] sm:$0xff] %v1696
        %1745 = vst [vmem:[%s207 + $0xb0] sm:$0xff] %v1699
        %1746 = vst [vmem:[%s207 + $0xb8] sm:$0xff] %v1701
        %1747 = vst [vmem:[%s207 + $0xc0] sm:$0xff] %v1704
        %1748 = vst [vmem:[%s207 + $0xc8] sm:$0xff] %v1706
        %1749 = vst [vmem:[%s207 + $0xd0] sm:$0xff] %v1709
        %1750 = vst [vmem:[%s207 + $0xd8] sm:$0xff] %v1711
        %1751 = vst [vmem:[%s207 + $0xe0] sm:$0xff] %v1714
        %1752 = vst [vmem:[%s207 + $0xe8] sm:$0xff] %v1716
        %1753 = vst [vmem:[%s207 + $0xf0] sm:$0xff] %v1719
        %1754 = vst [vmem:[%s207 + $0xf8] sm:$0xff] %v1721
        %v1755 = vld [vmem:[#allocation2] sm:$0xff]
        %v1756 = vld [vmem:[#allocation2 + $0x8] sm:$0xf]
        %v1757 = vld [vmem:[#allocation2 + $0xc] sm:$0xff]
        %v1758 = vld [vmem:[#allocation2 + $0x14] sm:$0xf]
        %v1759 = vld [vmem:[#allocation2 + $0x18] sm:$0xff]
        %v1760 = vld [vmem:[#allocation2 + $0x20] sm:$0xf]
        %v1761 = vld [vmem:[#allocation2 + $0x24] sm:$0xff]
        %v1762 = vld [vmem:[#allocation2 + $0x2c] sm:$0xf]
        %v1763 = vld [vmem:[#allocation2 + $0x30] sm:$0xff]
        %v1764 = vld [vmem:[#allocation2 + $0x38] sm:$0xf]
        %v1765 = vld [vmem:[#allocation2 + $0x3c] sm:$0xff]
        %v1766 = vld [vmem:[#allocation2 + $0x44] sm:$0xf]
        %v1767 = vld [vmem:[#allocation2 + $0x48] sm:$0xff]
        %v1768 = vld [vmem:[#allocation2 + $0x50] sm:$0xf]
        %v1769 = vld [vmem:[#allocation2 + $0x54] sm:$0xff]
        %v1770 = vld [vmem:[#allocation2 + $0x5c] sm:$0xf]
        %v1771 = vld [vmem:[#allocation2 + $0x60] sm:$0xff]
        %v1772 = vld [vmem:[#allocation2 + $0x68] sm:$0xf]
        %v1773 = vld [vmem:[#allocation2 + $0x6c] sm:$0xff]
        %v1774 = vld [vmem:[#allocation2 + $0x74] sm:$0xf]
        %v1775 = vld [vmem:[#allocation2 + $0x78] sm:$0xff]
        %v1776 = vld [vmem:[#allocation2 + $0x80] sm:$0xf]
        %v1777 = vld [vmem:[#allocation2 + $0x84] sm:$0xff]
        %v1778 = vld [vmem:[#allocation2 + $0x8c] sm:$0xf]
        %v1779 = vld [vmem:[#allocation2 + $0x90] sm:$0xff]
        %v1780 = vld [vmem:[#allocation2 + $0x98] sm:$0xf]
        %v1781 = vld [vmem:[#allocation2 + $0x9c] sm:$0xff]
        %v1782 = vld [vmem:[#allocation2 + $0xa4] sm:$0xf]
        %v1783 = vld [vmem:[#allocation2 + $0xa8] sm:$0xff]
        %v1784 = vld [vmem:[#allocation2 + $0xb0] sm:$0xf]
        %v1785 = vld [vmem:[#allocation2 + $0xb4] sm:$0xff]
        %v1786 = vld [vmem:[#allocation2 + $0xbc] sm:$0xf]
        %v1787 = vld [vmem:[#allocation2 + $0xc0] sm:$0xff]
        %v1788 = vld [vmem:[#allocation2 + $0xc8] sm:$0xf]
        %v1789 = vld [vmem:[#allocation2 + $0xcc] sm:$0xff]
        %v1790 = vld [vmem:[#allocation2 + $0xd4] sm:$0xf]
        %v1791 = vld [vmem:[#allocation2 + $0xd8] sm:$0xff]
        %v1792 = vld [vmem:[#allocation2 + $0xe0] sm:$0xf]
        %v1793 = vld [vmem:[#allocation2 + $0xe4] sm:$0xff]
        %v1794 = vld [vmem:[#allocation2 + $0xec] sm:$0xf]
        %v1795 = vld [vmem:[#allocation2 + $0xf0] sm:$0xff]
        %v1796 = vld [vmem:[#allocation2 + $0xf8] sm:$0xf]
        %v1797 = vld [vmem:[#allocation2 + $0xfc] sm:$0xff]
        %v1798 = vld [vmem:[#allocation2 + $0x104] sm:$0xf]
        %v1799 = vld [vmem:[#allocation2 + $0x108] sm:$0xff]
        %v1800 = vld [vmem:[#allocation2 + $0x110] sm:$0xf]
        %v1801 = vld [vmem:[#allocation2 + $0x114] sm:$0xff]
        %v1802 = vld [vmem:[#allocation2 + $0x11c] sm:$0xf]
        %v1803 = vld [vmem:[#allocation2 + $0x120] sm:$0xff]
        %v1804 = vld [vmem:[#allocation2 + $0x128] sm:$0xf]
        %v1805 = vld [vmem:[#allocation2 + $0x12c] sm:$0xff]
        %v1806 = vld [vmem:[#allocation2 + $0x134] sm:$0xf]
        %v1807 = vld [vmem:[#allocation2 + $0x138] sm:$0xff]
        %v1808 = vld [vmem:[#allocation2 + $0x140] sm:$0xf]
        %v1809 = vld [vmem:[#allocation2 + $0x144] sm:$0xff]
        %v1810 = vld [vmem:[#allocation2 + $0x14c] sm:$0xf]
        %v1811 = vld [vmem:[#allocation2 + $0x150] sm:$0xff]
        %v1812 = vld [vmem:[#allocation2 + $0x158] sm:$0xf]
        %v1813 = vld [vmem:[#allocation2 + $0x15c] sm:$0xff]
        %v1814 = vld [vmem:[#allocation2 + $0x164] sm:$0xf]
        %v1815 = vld [vmem:[#allocation6] sm:$0xf]
        %v1816 = vld [vmem:[#allocation6 + $0x4] sm:$0xf]
        %v1817 = vld [vmem:[#allocation6 + $0x8] sm:$0xf]
        %v1818 = vld [vmem:[#allocation6 + $0xc] sm:$0xf]
        %v1819 = vld [vmem:[#allocation6 + $0x10] sm:$0xf]
        %v1820 = vld [vmem:[#allocation6 + $0x14] sm:$0xf]
        %v1821 = vld [vmem:[#allocation6 + $0x18] sm:$0xf]
        %v1822 = vld [vmem:[#allocation6 + $0x1c] sm:$0xf]
        %v1823 = vld [vmem:[#allocation6 + $0x20] sm:$0xf]
        %v1824 = vld [vmem:[#allocation6 + $0x24] sm:$0xf]
        %v1825 = vld [vmem:[#allocation6 + $0x28] sm:$0xf]
        %v1826 = vld [vmem:[#allocation6 + $0x2c] sm:$0xf]
        %v1827 = vld [vmem:[#allocation6 + $0x30] sm:$0xf]
        %v1828 = vld [vmem:[#allocation6 + $0x34] sm:$0xf]
        %v1829 = vld [vmem:[#allocation6 + $0x38] sm:$0xf]
        %v1830 = vld [vmem:[#allocation6 + $0x3c] sm:$0xf]
        %v1831 = vld [vmem:[#allocation6 + $0x40] sm:$0xf]
        %v1832 = vld [vmem:[#allocation6 + $0x44] sm:$0xf]
        %v1833 = vld [vmem:[#allocation6 + $0x48] sm:$0xf]
        %v1834 = vld [vmem:[#allocation6 + $0x4c] sm:$0xf]
        %v1835 = vld [vmem:[#allocation6 + $0x50] sm:$0xf]
        %v1836 = vld [vmem:[#allocation6 + $0x54] sm:$0xf]
        %v1837 = vld [vmem:[#allocation6 + $0x58] sm:$0xf]
        %v1838 = vld [vmem:[#allocation6 + $0x5c] sm:$0xf]
        %v1839 = vld [vmem:[#allocation6 + $0x60] sm:$0xf]
        %v1840 = vld [vmem:[#allocation6 + $0x64] sm:$0xf]
        %v1841 = vld [vmem:[#allocation6 + $0x68] sm:$0xf]
        %v1842 = vld [vmem:[#allocation6 + $0x6c] sm:$0xf]
        %v1843 = vld [vmem:[#allocation6 + $0x70] sm:$0xf]
        %v1844 = vld [vmem:[#allocation6 + $0x74] sm:$0xf]
        %v1845 = vld [vmem:[#allocation6 + $0x78] sm:$0xf]
        %v1846 = vld [vmem:[#allocation6 + $0x7c] sm:$0xf]
        %v1847 = vld [vmem:[#allocation6 + $0x80] sm:$0xf]
        %v1848 = vld [vmem:[#allocation6 + $0x84] sm:$0xf]
        %v1849 = vld [vmem:[#allocation6 + $0x88] sm:$0xf]
        %v1850 = vld [vmem:[#allocation6 + $0x8c] sm:$0xf]
        %v1851 = vld [vmem:[#allocation6 + $0x90] sm:$0xf]
        %v1852 = vld [vmem:[#allocation6 + $0x94] sm:$0xf]
        %v1853 = vld [vmem:[#allocation6 + $0x98] sm:$0xf]
        %v1854 = vld [vmem:[#allocation6 + $0x9c] sm:$0xf]
        %v1855 = vld [vmem:[#allocation6 + $0xa0] sm:$0xf]
        %v1856 = vld [vmem:[#allocation6 + $0xa4] sm:$0xf]
        %v1857 = vld [vmem:[#allocation6 + $0xa8] sm:$0xf]
        %v1858 = vld [vmem:[#allocation6 + $0xac] sm:$0xf]
        %v1859 = vld [vmem:[#allocation6 + $0xb0] sm:$0xf]
        %v1860 = vld [vmem:[#allocation6 + $0xb4] sm:$0xf]
        %v1861 = vld [vmem:[#allocation6 + $0xb8] sm:$0xf]
        %v1862 = vld [vmem:[#allocation6 + $0xbc] sm:$0xf]
        %v1923 = vunpack.c.l.b16 %v1755
        %v1924 = vunpack.c.h.b16 %v1755
        %v1925 = vunpack.c.l.b16 %v1756
        %v1926 = vunpack.c.l.b16 %v1757
        %v1927 = vunpack.c.h.b16 %v1757
        %v1928 = vunpack.c.l.b16 %v1758
        %v1929 = vunpack.c.l.b16 %v1759
        %v1930 = vunpack.c.h.b16 %v1759
        %v1931 = vunpack.c.l.b16 %v1760
        %v1932 = vunpack.c.l.b16 %v1761
        %v1933 = vunpack.c.h.b16 %v1761
        %v1934 = vunpack.c.l.b16 %v1762
        %v1935 = vunpack.c.l.b16 %v1763
        %v1936 = vunpack.c.h.b16 %v1763
        %v1937 = vunpack.c.l.b16 %v1764
        %v1938 = vunpack.c.l.b16 %v1765
        %v1939 = vunpack.c.h.b16 %v1765
        %v1940 = vunpack.c.l.b16 %v1766
        %v1941 = vunpack.c.l.b16 %v1767
        %v1942 = vunpack.c.h.b16 %v1767
        %v1943 = vunpack.c.l.b16 %v1768
        %v1944 = vunpack.c.l.b16 %v1769
        %v1945 = vunpack.c.h.b16 %v1769
        %v1946 = vunpack.c.l.b16 %v1770
        %v1947 = vunpack.c.l.b16 %v1771
        %v1948 = vunpack.c.h.b16 %v1771
        %v1949 = vunpack.c.l.b16 %v1772
        %v1950 = vunpack.c.l.b16 %v1773
        %v1951 = vunpack.c.h.b16 %v1773
        %v1952 = vunpack.c.l.b16 %v1774
        %v1953 = vunpack.c.l.b16 %v1775
        %v1954 = vunpack.c.h.b16 %v1775
        %v1955 = vunpack.c.l.b16 %v1776
        %v1956 = vunpack.c.l.b16 %v1777
        %v1957 = vunpack.c.h.b16 %v1777
        %v1958 = vunpack.c.l.b16 %v1778
        %v1959 = vunpack.c.l.b16 %v1779
        %v1960 = vunpack.c.h.b16 %v1779
        %v1961 = vunpack.c.l.b16 %v1780
        %v1962 = vunpack.c.l.b16 %v1781
        %v1963 = vunpack.c.h.b16 %v1781
        %v1964 = vunpack.c.l.b16 %v1782
        %v1965 = vunpack.c.l.b16 %v1783
        %v1966 = vunpack.c.h.b16 %v1783
        %v1967 = vunpack.c.l.b16 %v1784
        %v1968 = vunpack.c.l.b16 %v1785
        %v1969 = vunpack.c.h.b16 %v1785
        %v1970 = vunpack.c.l.b16 %v1786
        %v1971 = vunpack.c.l.b16 %v1787
        %v1972 = vunpack.c.h.b16 %v1787
        %v1973 = vunpack.c.l.b16 %v1788
        %v1974 = vunpack.c.l.b16 %v1789
        %v1975 = vunpack.c.h.b16 %v1789
        %v1976 = vunpack.c.l.b16 %v1790
        %v1977 = vunpack.c.l.b16 %v1791
        %v1978 = vunpack.c.h.b16 %v1791
        %v1979 = vunpack.c.l.b16 %v1792
        %v1980 = vunpack.c.l.b16 %v1793
        %v1981 = vunpack.c.h.b16 %v1793
        %v1982 = vunpack.c.l.b16 %v1794
        %v1983 = vunpack.c.l.b16 %v1795
        %v1984 = vunpack.c.h.b16 %v1795
        %v1985 = vunpack.c.l.b16 %v1796
        %v1986 = vunpack.c.l.b16 %v1797
        %v1987 = vunpack.c.h.b16 %v1797
        %v1988 = vunpack.c.l.b16 %v1798
        %v1989 = vunpack.c.l.b16 %v1799
        %v1990 = vunpack.c.h.b16 %v1799
        %v1991 = vunpack.c.l.b16 %v1800
        %v1992 = vunpack.c.l.b16 %v1801
        %v1993 = vunpack.c.h.b16 %v1801
        %v1994 = vunpack.c.l.b16 %v1802
        %v1995 = vunpack.c.l.b16 %v1803
        %v1996 = vunpack.c.h.b16 %v1803
        %v1997 = vunpack.c.l.b16 %v1804
        %v1998 = vunpack.c.l.b16 %v1805
        %v1999 = vunpack.c.h.b16 %v1805
        %v2000 = vunpack.c.l.b16 %v1806
        %v2001 = vunpack.c.l.b16 %v1807
        %v2002 = vunpack.c.h.b16 %v1807
        %v2003 = vunpack.c.l.b16 %v1808
        %v2004 = vunpack.c.l.b16 %v1809
        %v2005 = vunpack.c.h.b16 %v1809
        %v2006 = vunpack.c.l.b16 %v1810
        %v2007 = vunpack.c.l.b16 %v1811
        %v2008 = vunpack.c.h.b16 %v1811
        %v2009 = vunpack.c.l.b16 %v1812
        %v2010 = vunpack.c.l.b16 %v1813
        %v2011 = vunpack.c.h.b16 %v1813
        %v2012 = vunpack.c.l.b16 %v1814
        %v2013 = vpack.c.b16 %v1926, %v1923
        %v2014 = vpack.c.b16 %v1927, %v1924
        %v2015 = vpack.c.b16 %v1928, %v1925
        %v2016 = vpack.c.b16 %v1932, %v1929
        %v2017 = vpack.c.b16 %v1933, %v1930
        %v2018 = vpack.c.b16 %v1934, %v1931
        %v2019 = vpack.c.b16 %v1938, %v1935
        %v2020 = vpack.c.b16 %v1939, %v1936
        %v2021 = vpack.c.b16 %v1940, %v1937
        %v2022 = vpack.c.b16 %v1944, %v1941
        %v2023 = vpack.c.b16 %v1945, %v1942
        %v2024 = vpack.c.b16 %v1946, %v1943
        %v2025 = vpack.c.b16 %v1950, %v1947
        %v2026 = vpack.c.b16 %v1951, %v1948
        %v2027 = vpack.c.b16 %v1952, %v1949
        %v2028 = vpack.c.b16 %v1956, %v1953
        %v2029 = vpack.c.b16 %v1957, %v1954
        %v2030 = vpack.c.b16 %v1958, %v1955
        %v2031 = vpack.c.b16 %v1962, %v1959
        %v2032 = vpack.c.b16 %v1963, %v1960
        %v2033 = vpack.c.b16 %v1964, %v1961
        %v2034 = vpack.c.b16 %v1968, %v1965
        %v2035 = vpack.c.b16 %v1969, %v1966
        %v2036 = vpack.c.b16 %v1970, %v1967
        %v2037 = vpack.c.b16 %v1974, %v1971
        %v2038 = vpack.c.b16 %v1975, %v1972
        %v2039 = vpack.c.b16 %v1976, %v1973
        %v2040 = vpack.c.b16 %v1980, %v1977
        %v2041 = vpack.c.b16 %v1981, %v1978
        %v2042 = vpack.c.b16 %v1982, %v1979
        %v2043 = vpack.c.b16 %v1986, %v1983
        %v2044 = vpack.c.b16 %v1987, %v1984
        %v2045 = vpack.c.b16 %v1988, %v1985
        %v2046 = vpack.c.b16 %v1992, %v1989
        %v2047 = vpack.c.b16 %v1993, %v1990
        %v2048 = vpack.c.b16 %v1994, %v1991
        %v2049 = vpack.c.b16 %v1998, %v1995
        %v2050 = vpack.c.b16 %v1999, %v1996
        %v2051 = vpack.c.b16 %v2000, %v1997
        %v2052 = vpack.c.b16 %v2004, %v2001
        %v2053 = vpack.c.b16 %v2005, %v2002
        %v2054 = vpack.c.b16 %v2006, %v2003
        %v2055 = vpack.c.b16 %v2010, %v2007
        %v2056 = vpack.c.b16 %v2011, %v2008
        %v2057 = vpack.c.b16 %v2012, %v2009
        %v2151 = vunpack.c.l.b16 %v1815
        %v2152 = vunpack.c.l.b16 %v1816
        %v2153 = vunpack.c.l.b16 %v1817
        %v2154 = vunpack.c.l.b16 %v1818
        %v2155 = vunpack.c.l.b16 %v1819
        %v2156 = vunpack.c.l.b16 %v1820
        %v2157 = vunpack.c.l.b16 %v1821
        %v2158 = vunpack.c.l.b16 %v1822
        %v2159 = vunpack.c.l.b16 %v1823
        %v2160 = vunpack.c.l.b16 %v1824
        %v2161 = vunpack.c.l.b16 %v1825
        %v2162 = vunpack.c.l.b16 %v1826
        %v2163 = vunpack.c.l.b16 %v1827
        %v2164 = vunpack.c.l.b16 %v1828
        %v2165 = vunpack.c.l.b16 %v1829
        %v2166 = vunpack.c.l.b16 %v1830
        %v2167 = vunpack.c.l.b16 %v1831
        %v2168 = vunpack.c.l.b16 %v1832
        %v2169 = vunpack.c.l.b16 %v1833
        %v2170 = vunpack.c.l.b16 %v1834
        %v2171 = vunpack.c.l.b16 %v1835
        %v2172 = vunpack.c.l.b16 %v1836
        %v2173 = vunpack.c.l.b16 %v1837
        %v2174 = vunpack.c.l.b16 %v1838
        %v2175 = vunpack.c.l.b16 %v1839
        %v2176 = vunpack.c.l.b16 %v1840
        %v2177 = vunpack.c.l.b16 %v1841
        %v2178 = vunpack.c.l.b16 %v1842
        %v2179 = vunpack.c.l.b16 %v1843
        %v2180 = vunpack.c.l.b16 %v1844
        %v2181 = vunpack.c.l.b16 %v1845
        %v2182 = vunpack.c.l.b16 %v1846
        %v2183 = vunpack.c.l.b16 %v1847
        %v2184 = vunpack.c.l.b16 %v1848
        %v2185 = vunpack.c.l.b16 %v1849
        %v2186 = vunpack.c.l.b16 %v1850
        %v2187 = vunpack.c.l.b16 %v1851
        %v2188 = vunpack.c.l.b16 %v1852
        %v2189 = vunpack.c.l.b16 %v1853
        %v2190 = vunpack.c.l.b16 %v1854
        %v2191 = vunpack.c.l.b16 %v1855
        %v2192 = vunpack.c.l.b16 %v1856
        %v2193 = vunpack.c.l.b16 %v1857
        %v2194 = vunpack.c.l.b16 %v1858
        %v2195 = vunpack.c.l.b16 %v1859
        %v2196 = vunpack.c.l.b16 %v1860
        %v2197 = vunpack.c.l.b16 %v1861
        %v2198 = vunpack.c.l.b16 %v1862
        %v2199 = vpack.c.b16 %v2152, %v2151
        %v2200 = vpack.c.b16 %v2154, %v2153
        %v2201 = vpack.c.b16 %v2156, %v2155
        %v2202 = vpack.c.b16 %v2158, %v2157
        %v2203 = vpack.c.b16 %v2160, %v2159
        %v2204 = vpack.c.b16 %v2162, %v2161
        %v2205 = vpack.c.b16 %v2164, %v2163
        %v2206 = vpack.c.b16 %v2166, %v2165
        %v2207 = vpack.c.b16 %v2168, %v2167
        %v2208 = vpack.c.b16 %v2170, %v2169
        %v2209 = vpack.c.b16 %v2172, %v2171
        %v2210 = vpack.c.b16 %v2174, %v2173
        %v2211 = vpack.c.b16 %v2176, %v2175
        %v2212 = vpack.c.b16 %v2178, %v2177
        %v2213 = vpack.c.b16 %v2180, %v2179
        %v2214 = vpack.c.b16 %v2182, %v2181
        %v2215 = vpack.c.b16 %v2184, %v2183
        %v2216 = vpack.c.b16 %v2186, %v2185
        %v2217 = vpack.c.b16 %v2188, %v2187
        %v2218 = vpack.c.b16 %v2190, %v2189
        %v2219 = vpack.c.b16 %v2192, %v2191
        %v2220 = vpack.c.b16 %v2194, %v2193
        %v2221 = vpack.c.b16 %v2196, %v2195
        %v2222 = vpack.c.b16 %v2198, %v2197
        %2247 = vmatpush.bf16.msra.mxu0 %v2206
        %2248 = vmatpush.bf16.msra.mxu0 %v2205
        %2249 = vmatpush.bf16.msra.mxu0 %v2204
        %2250 = vmatpush.bf16.msra.mxu0 %v2203
        %2251 = vmatpush.bf16.msra.mxu0 %v2202
        %2252 = vmatpush.bf16.msra.mxu0 %v2201
        %2253 = vmatpush.bf16.msra.mxu0 %v2200
        %2254 = vmatpush.bf16.msra.mxu0 %v2199
        %2255 = vmatmul.bf16.gmra.mxu0 %v2013
        %v2256 = vpop.f32.mrf.mxu0
        %v2257 = vadd.f32 0.0, %v2256
        %v2258 = vpop.f32.mrf.mxu0
        %v2259 = vadd.f32 0.0, %v2258
        %2260 = vmatmul.bf16.gmra.mxu0 %v2016
        %v2261 = vpop.f32.mrf.mxu0
        %v2262 = vadd.f32 0.0, %v2261
        %v2263 = vpop.f32.mrf.mxu0
        %v2264 = vadd.f32 0.0, %v2263
        %2265 = vmatmul.bf16.gmra.mxu0 %v2019
        %v2266 = vpop.f32.mrf.mxu0
        %v2267 = vadd.f32 0.0, %v2266
        %v2268 = vpop.f32.mrf.mxu0
        %v2269 = vadd.f32 0.0, %v2268
        %2270 = vmatmul.bf16.gmra.mxu0 %v2022
        %v2271 = vpop.f32.mrf.mxu0
        %v2272 = vadd.f32 0.0, %v2271
        %v2273 = vpop.f32.mrf.mxu0
        %v2274 = vadd.f32 0.0, %v2273
        %2275 = vmatmul.bf16.gmra.mxu0 %v2025
        %v2276 = vpop.f32.mrf.mxu0
        %v2277 = vadd.f32 0.0, %v2276
        %v2278 = vpop.f32.mrf.mxu0
        %v2279 = vadd.f32 0.0, %v2278
        %2280 = vmatmul.bf16.gmra.mxu0 %v2028
        %v2281 = vpop.f32.mrf.mxu0
        %v2282 = vadd.f32 0.0, %v2281
        %v2283 = vpop.f32.mrf.mxu0
        %v2284 = vadd.f32 0.0, %v2283
        %2285 = vmatmul.bf16.gmra.mxu0 %v2031
        %v2286 = vpop.f32.mrf.mxu0
        %v2287 = vadd.f32 0.0, %v2286
        %v2288 = vpop.f32.mrf.mxu0
        %v2289 = vadd.f32 0.0, %v2288
        %2290 = vmatmul.bf16.gmra.mxu0 %v2034
        %v2291 = vpop.f32.mrf.mxu0
        %v2292 = vadd.f32 0.0, %v2291
        %v2293 = vpop.f32.mrf.mxu0
        %v2294 = vadd.f32 0.0, %v2293
        %2295 = vmatmul.bf16.gmra.mxu0 %v2037
        %v2296 = vpop.f32.mrf.mxu0
        %v2297 = vadd.f32 0.0, %v2296
        %v2298 = vpop.f32.mrf.mxu0
        %v2299 = vadd.f32 0.0, %v2298
        %2300 = vmatmul.bf16.gmra.mxu0 %v2040
        %v2301 = vpop.f32.mrf.mxu0
        %v2302 = vadd.f32 0.0, %v2301
        %v2303 = vpop.f32.mrf.mxu0
        %v2304 = vadd.f32 0.0, %v2303
        %2305 = vmatmul.bf16.gmra.mxu0 %v2043
        %v2306 = vpop.f32.mrf.mxu0
        %v2307 = vadd.f32 0.0, %v2306
        %v2308 = vpop.f32.mrf.mxu0
        %v2309 = vadd.f32 0.0, %v2308
        %2310 = vmatmul.bf16.gmra.mxu0 %v2046
        %v2311 = vpop.f32.mrf.mxu0
        %v2312 = vadd.f32 0.0, %v2311
        %v2313 = vpop.f32.mrf.mxu0
        %v2314 = vadd.f32 0.0, %v2313
        %2315 = vmatmul.bf16.gmra.mxu0 %v2049
        %v2316 = vpop.f32.mrf.mxu0
        %v2317 = vadd.f32 0.0, %v2316
        %v2318 = vpop.f32.mrf.mxu0
        %v2319 = vadd.f32 0.0, %v2318
        %2320 = vmatmul.bf16.gmra.mxu0 %v2052
        %v2321 = vpop.f32.mrf.mxu0
        %v2322 = vadd.f32 0.0, %v2321
        %v2323 = vpop.f32.mrf.mxu0
        %v2324 = vadd.f32 0.0, %v2323
        %2325 = vmatmul.bf16.gmra.mxu0 %v2055
        %v2326 = vpop.f32.mrf.mxu0
        %v2327 = vadd.f32 0.0, %v2326
        %v2328 = vpop.f32.mrf.mxu0
        %v2329 = vadd.f32 0.0, %v2328
        %2330 = vdwg.mxu0
        %2331 = vmatpush.bf16.msra.mxu0 %v2214
        %2332 = vmatpush.bf16.msra.mxu0 %v2213
        %2333 = vmatpush.bf16.msra.mxu0 %v2212
        %2334 = vmatpush.bf16.msra.mxu0 %v2211
        %2335 = vmatpush.bf16.msra.mxu0 %v2210
        %2336 = vmatpush.bf16.msra.mxu0 %v2209
        %2337 = vmatpush.bf16.msra.mxu0 %v2208
        %2338 = vmatpush.bf16.msra.mxu0 %v2207
        %2339 = vmatmul.bf16.gmra.mxu0 %v2014
        %v2340 = vpop.f32.mrf.mxu0
        %v2341 = vadd.f32 %v2257, %v2340
        %v2342 = vpop.f32.mrf.mxu0
        %v2343 = vadd.f32 %v2259, %v2342
        %2344 = vmatmul.bf16.gmra.mxu0 %v2017
        %v2345 = vpop.f32.mrf.mxu0
        %v2346 = vadd.f32 %v2262, %v2345
        %v2347 = vpop.f32.mrf.mxu0
        %v2348 = vadd.f32 %v2264, %v2347
        %2349 = vmatmul.bf16.gmra.mxu0 %v2020
        %v2350 = vpop.f32.mrf.mxu0
        %v2351 = vadd.f32 %v2267, %v2350
        %v2352 = vpop.f32.mrf.mxu0
        %v2353 = vadd.f32 %v2269, %v2352
        %2354 = vmatmul.bf16.gmra.mxu0 %v2023
        %v2355 = vpop.f32.mrf.mxu0
        %v2356 = vadd.f32 %v2272, %v2355
        %v2357 = vpop.f32.mrf.mxu0
        %v2358 = vadd.f32 %v2274, %v2357
        %2359 = vmatmul.bf16.gmra.mxu0 %v2026
        %v2360 = vpop.f32.mrf.mxu0
        %v2361 = vadd.f32 %v2277, %v2360
        %v2362 = vpop.f32.mrf.mxu0
        %v2363 = vadd.f32 %v2279, %v2362
        %2364 = vmatmul.bf16.gmra.mxu0 %v2029
        %v2365 = vpop.f32.mrf.mxu0
        %v2366 = vadd.f32 %v2282, %v2365
        %v2367 = vpop.f32.mrf.mxu0
        %v2368 = vadd.f32 %v2284, %v2367
        %2369 = vmatmul.bf16.gmra.mxu0 %v2032
        %v2370 = vpop.f32.mrf.mxu0
        %v2371 = vadd.f32 %v2287, %v2370
        %v2372 = vpop.f32.mrf.mxu0
        %v2373 = vadd.f32 %v2289, %v2372
        %2374 = vmatmul.bf16.gmra.mxu0 %v2035
        %v2375 = vpop.f32.mrf.mxu0
        %v2376 = vadd.f32 %v2292, %v2375
        %v2377 = vpop.f32.mrf.mxu0
        %v2378 = vadd.f32 %v2294, %v2377
        %2379 = vmatmul.bf16.gmra.mxu0 %v2038
        %v2380 = vpop.f32.mrf.mxu0
        %v2381 = vadd.f32 %v2297, %v2380
        %v2382 = vpop.f32.mrf.mxu0
        %v2383 = vadd.f32 %v2299, %v2382
        %2384 = vmatmul.bf16.gmra.mxu0 %v2041
        %v2385 = vpop.f32.mrf.mxu0
        %v2386 = vadd.f32 %v2302, %v2385
        %v2387 = vpop.f32.mrf.mxu0
        %v2388 = vadd.f32 %v2304, %v2387
        %2389 = vmatmul.bf16.gmra.mxu0 %v2044
        %v2390 = vpop.f32.mrf.mxu0
        %v2391 = vadd.f32 %v2307, %v2390
        %v2392 = vpop.f32.mrf.mxu0
        %v2393 = vadd.f32 %v2309, %v2392
        %2394 = vmatmul.bf16.gmra.mxu0 %v2047
        %v2395 = vpop.f32.mrf.mxu0
        %v2396 = vadd.f32 %v2312, %v2395
        %v2397 = vpop.f32.mrf.mxu0
        %v2398 = vadd.f32 %v2314, %v2397
        %2399 = vmatmul.bf16.gmra.mxu0 %v2050
        %v2400 = vpop.f32.mrf.mxu0
        %v2401 = vadd.f32 %v2317, %v2400
        %v2402 = vpop.f32.mrf.mxu0
        %v2403 = vadd.f32 %v2319, %v2402
        %2404 = vmatmul.bf16.gmra.mxu0 %v2053
        %v2405 = vpop.f32.mrf.mxu0
        %v2406 = vadd.f32 %v2322, %v2405
        %v2407 = vpop.f32.mrf.mxu0
        %v2408 = vadd.f32 %v2324, %v2407
        %2409 = vmatmul.bf16.gmra.mxu0 %v2056
        %v2410 = vpop.f32.mrf.mxu0
        %v2411 = vadd.f32 %v2327, %v2410
        %v2412 = vpop.f32.mrf.mxu0
        %v2413 = vadd.f32 %v2329, %v2412
        %2414 = vdwg.mxu0
        %2415 = vmatpush.bf16.msra.mxu0 %v2222
        %2416 = vmatpush.bf16.msra.mxu0 %v2221
        %2417 = vmatpush.bf16.msra.mxu0 %v2220
        %2418 = vmatpush.bf16.msra.mxu0 %v2219
        %2419 = vmatpush.bf16.msra.mxu0 %v2218
        %2420 = vmatpush.bf16.msra.mxu0 %v2217
        %2421 = vmatpush.bf16.msra.mxu0 %v2216
        %2422 = vmatpush.bf16.msra.mxu0 %v2215
        %2423 = vmatmul.bf16.gmra.mxu0 %v2015
        %v2424 = vpop.f32.mrf.mxu0
        %v2425 = vadd.f32 %v2341, %v2424
        %v2426 = vpop.f32.mrf.mxu0
        %v2427 = vadd.f32 %v2343, %v2426
        %2428 = vmatmul.bf16.gmra.mxu0 %v2018
        %v2429 = vpop.f32.mrf.mxu0
        %v2430 = vadd.f32 %v2346, %v2429
        %v2431 = vpop.f32.mrf.mxu0
        %v2432 = vadd.f32 %v2348, %v2431
        %2433 = vmatmul.bf16.gmra.mxu0 %v2021
        %v2434 = vpop.f32.mrf.mxu0
        %v2435 = vadd.f32 %v2351, %v2434
        %v2436 = vpop.f32.mrf.mxu0
        %v2437 = vadd.f32 %v2353, %v2436
        %2438 = vmatmul.bf16.gmra.mxu0 %v2024
        %v2439 = vpop.f32.mrf.mxu0
        %v2440 = vadd.f32 %v2356, %v2439
        %v2441 = vpop.f32.mrf.mxu0
        %v2442 = vadd.f32 %v2358, %v2441
        %2443 = vmatmul.bf16.gmra.mxu0 %v2027
        %v2444 = vpop.f32.mrf.mxu0
        %v2445 = vadd.f32 %v2361, %v2444
        %v2446 = vpop.f32.mrf.mxu0
        %v2447 = vadd.f32 %v2363, %v2446
        %2448 = vmatmul.bf16.gmra.mxu0 %v2030
        %v2449 = vpop.f32.mrf.mxu0
        %v2450 = vadd.f32 %v2366, %v2449
        %v2451 = vpop.f32.mrf.mxu0
        %v2452 = vadd.f32 %v2368, %v2451
        %2453 = vmatmul.bf16.gmra.mxu0 %v2033
        %v2454 = vpop.f32.mrf.mxu0
        %v2455 = vadd.f32 %v2371, %v2454
        %v2456 = vpop.f32.mrf.mxu0
        %v2457 = vadd.f32 %v2373, %v2456
        %2458 = vmatmul.bf16.gmra.mxu0 %v2036
        %v2459 = vpop.f32.mrf.mxu0
        %v2460 = vadd.f32 %v2376, %v2459
        %v2461 = vpop.f32.mrf.mxu0
        %v2462 = vadd.f32 %v2378, %v2461
        %2463 = vmatmul.bf16.gmra.mxu0 %v2039
        %v2464 = vpop.f32.mrf.mxu0
        %v2465 = vadd.f32 %v2381, %v2464
        %v2466 = vpop.f32.mrf.mxu0
        %v2467 = vadd.f32 %v2383, %v2466
        %2468 = vmatmul.bf16.gmra.mxu0 %v2042
        %v2469 = vpop.f32.mrf.mxu0
        %v2470 = vadd.f32 %v2386, %v2469
        %v2471 = vpop.f32.mrf.mxu0
        %v2472 = vadd.f32 %v2388, %v2471
        %2473 = vmatmul.bf16.gmra.mxu0 %v2045
        %v2474 = vpop.f32.mrf.mxu0
        %v2475 = vadd.f32 %v2391, %v2474
        %v2476 = vpop.f32.mrf.mxu0
        %v2477 = vadd.f32 %v2393, %v2476
        %2478 = vmatmul.bf16.gmra.mxu0 %v2048
        %v2479 = vpop.f32.mrf.mxu0
        %v2480 = vadd.f32 %v2396, %v2479
        %v2481 = vpop.f32.mrf.mxu0
        %v2482 = vadd.f32 %v2398, %v2481
        %2483 = vmatmul.bf16.gmra.mxu0 %v2051
        %v2484 = vpop.f32.mrf.mxu0
        %v2485 = vadd.f32 %v2401, %v2484
        %v2486 = vpop.f32.mrf.mxu0
        %v2487 = vadd.f32 %v2403, %v2486
        %2488 = vmatmul.bf16.gmra.mxu0 %v2054
        %v2489 = vpop.f32.mrf.mxu0
        %v2490 = vadd.f32 %v2406, %v2489
        %v2491 = vpop.f32.mrf.mxu0
        %v2492 = vadd.f32 %v2408, %v2491
        %2493 = vmatmul.bf16.gmra.mxu0 %v2057
        %v2494 = vpop.f32.mrf.mxu0
        %v2495 = vadd.f32 %v2411, %v2494
        %v2496 = vpop.f32.mrf.mxu0
        %v2497 = vadd.f32 %v2413, %v2496
        %2498 = vdwg.mxu0
        %v2499 = vld [vmem:[%s207 + $0x10] sm:$0xff]
        %v2500 = vld [vmem:[%s207 + $0x18] sm:$0xff]
        %v2501 = vld [vmem:[%s207 + $0x20] sm:$0xff]
        %v2502 = vld [vmem:[%s207 + $0x28] sm:$0xff]
        %v2503 = vld [vmem:[%s207 + $0x30] sm:$0xff]
        %v2504 = vld [vmem:[%s207 + $0x38] sm:$0xff]
        %v2505 = vld [vmem:[%s207 + $0x40] sm:$0xff]
        %v2506 = vld [vmem:[%s207 + $0x48] sm:$0xff]
        %v2507 = vld [vmem:[%s207 + $0x50] sm:$0xff]
        %v2508 = vld [vmem:[%s207 + $0x58] sm:$0xff]
        %v2509 = vld [vmem:[%s207 + $0x60] sm:$0xff]
        %v2510 = vld [vmem:[%s207 + $0x68] sm:$0xff]
        %v2511 = vld [vmem:[%s207 + $0x70] sm:$0xff]
        %v2512 = vld [vmem:[%s207 + $0x78] sm:$0xff]
        %v2513 = vld [vmem:[%s207 + $0x80] sm:$0xff]
        %v2514 = vld [vmem:[%s207 + $0x88] sm:$0xff]
        %v2515 = vld [vmem:[%s207 + $0x90] sm:$0xff]
        %v2516 = vld [vmem:[%s207 + $0x98] sm:$0xff]
        %v2517 = vld [vmem:[%s207 + $0xa0] sm:$0xff]
        %v2518 = vld [vmem:[%s207 + $0xa8] sm:$0xff]
        %v2519 = vld [vmem:[%s207 + $0xb0] sm:$0xff]
        %v2520 = vld [vmem:[%s207 + $0xb8] sm:$0xff]
        %v2521 = vld [vmem:[%s207 + $0xc0] sm:$0xff]
        %v2522 = vld [vmem:[%s207 + $0xc8] sm:$0xff]
        %v2523 = vld [vmem:[%s207 + $0xd0] sm:$0xff]
        %v2524 = vld [vmem:[%s207 + $0xd8] sm:$0xff]
        %v2525 = vld [vmem:[%s207 + $0xe0] sm:$0xff]
        %v2526 = vld [vmem:[%s207 + $0xe8] sm:$0xff]
        %v2527 = vld [vmem:[%s207 + $0xf0] sm:$0xff]
        %v2528 = vld [vmem:[%s207 + $0xf8] sm:$0xff]
        %v2529 = vadd.f32 %v2499, %v2425
        %v2530 = vadd.f32 %v2500, %v2427
        %v2531 = vadd.f32 %v2501, %v2430
        %v2532 = vadd.f32 %v2502, %v2432
        %v2533 = vadd.f32 %v2503, %v2435
        %v2534 = vadd.f32 %v2504, %v2437
        %v2535 = vadd.f32 %v2505, %v2440
        %v2536 = vadd.f32 %v2506, %v2442
        %v2537 = vadd.f32 %v2507, %v2445
        %v2538 = vadd.f32 %v2508, %v2447
        %v2539 = vadd.f32 %v2509, %v2450
        %v2540 = vadd.f32 %v2510, %v2452
        %v2541 = vadd.f32 %v2511, %v2455
        %v2542 = vadd.f32 %v2512, %v2457
        %v2543 = vadd.f32 %v2513, %v2460
        %v2544 = vadd.f32 %v2514, %v2462
        %v2545 = vadd.f32 %v2515, %v2465
        %v2546 = vadd.f32 %v2516, %v2467
        %v2547 = vadd.f32 %v2517, %v2470
        %v2548 = vadd.f32 %v2518, %v2472
        %v2549 = vadd.f32 %v2519, %v2475
        %v2550 = vadd.f32 %v2520, %v2477
        %v2551 = vadd.f32 %v2521, %v2480
        %v2552 = vadd.f32 %v2522, %v2482
        %v2553 = vadd.f32 %v2523, %v2485
        %v2554 = vadd.f32 %v2524, %v2487
        %v2555 = vadd.f32 %v2525, %v2490
        %v2556 = vadd.f32 %v2526, %v2492
        %v2557 = vadd.f32 %v2527, %v2495
        %v2558 = vadd.f32 %v2528, %v2497
        %2559 = vst [vmem:[%s207 + $0x10] sm:$0xff] %v2529
        %2560 = vst [vmem:[%s207 + $0x18] sm:$0xff] %v2530
        %2561 = vst [vmem:[%s207 + $0x20] sm:$0xff] %v2531
        %2562 = vst [vmem:[%s207 + $0x28] sm:$0xff] %v2532
        %2563 = vst [vmem:[%s207 + $0x30] sm:$0xff] %v2533
        %2564 = vst [vmem:[%s207 + $0x38] sm:$0xff] %v2534
        %2565 = vst [vmem:[%s207 + $0x40] sm:$0xff] %v2535
        %2566 = vst [vmem:[%s207 + $0x48] sm:$0xff] %v2536
        %2567 = vst [vmem:[%s207 + $0x50] sm:$0xff] %v2537
        %2568 = vst [vmem:[%s207 + $0x58] sm:$0xff] %v2538
        %2569 = vst [vmem:[%s207 + $0x60] sm:$0xff] %v2539
        %2570 = vst [vmem:[%s207 + $0x68] sm:$0xff] %v2540
        %2571 = vst [vmem:[%s207 + $0x70] sm:$0xff] %v2541
        %2572 = vst [vmem:[%s207 + $0x78] sm:$0xff] %v2542
        %2573 = vst [vmem:[%s207 + $0x80] sm:$0xff] %v2543
        %2574 = vst [vmem:[%s207 + $0x88] sm:$0xff] %v2544
        %2575 = vst [vmem:[%s207 + $0x90] sm:$0xff] %v2545
        %2576 = vst [vmem:[%s207 + $0x98] sm:$0xff] %v2546
        %2577 = vst [vmem:[%s207 + $0xa0] sm:$0xff] %v2547
        %2578 = vst [vmem:[%s207 + $0xa8] sm:$0xff] %v2548
        %2579 = vst [vmem:[%s207 + $0xb0] sm:$0xff] %v2549
        %2580 = vst [vmem:[%s207 + $0xb8] sm:$0xff] %v2550
        %2581 = vst [vmem:[%s207 + $0xc0] sm:$0xff] %v2551
        %2582 = vst [vmem:[%s207 + $0xc8] sm:$0xff] %v2552
        %2583 = vst [vmem:[%s207 + $0xd0] sm:$0xff] %v2553
        %2584 = vst [vmem:[%s207 + $0xd8] sm:$0xff] %v2554
        %2585 = vst [vmem:[%s207 + $0xe0] sm:$0xff] %v2555
        %2586 = vst [vmem:[%s207 + $0xe8] sm:$0xff] %v2556
        %2587 = vst [vmem:[%s207 + $0xf0] sm:$0xff] %v2557
        %2588 = vst [vmem:[%s207 + $0xf8] sm:$0xff] %v2558
        %s2589 = scalar_lea.vmem [#allocation2], 24
        %v2590 = vld [vmem:[%s2589] sm:$0xff]
        %v2591 = vld [vmem:[%s2589 + $0x8] sm:$0xf]
        %v2592 = vld [vmem:[%s2589 + $0xc] sm:$0xff]
        %v2593 = vld [vmem:[%s2589 + $0x14] sm:$0xf]
        %v2594 = vld [vmem:[%s2589 + $0x18] sm:$0xff]
        %v2595 = vld [vmem:[%s2589 + $0x20] sm:$0xf]
        %v2596 = vld [vmem:[%s2589 + $0x24] sm:$0xff]
        %v2597 = vld [vmem:[%s2589 + $0x2c] sm:$0xf]
        %v2598 = vld [vmem:[%s2589 + $0x30] sm:$0xff]
        %v2599 = vld [vmem:[%s2589 + $0x38] sm:$0xf]
        %v2600 = vld [vmem:[%s2589 + $0x3c] sm:$0xff]
        %v2601 = vld [vmem:[%s2589 + $0x44] sm:$0xf]
        %v2602 = vld [vmem:[%s2589 + $0x48] sm:$0xff]
        %v2603 = vld [vmem:[%s2589 + $0x50] sm:$0xf]
        %v2604 = vld [vmem:[%s2589 + $0x54] sm:$0xff]
        %v2605 = vld [vmem:[%s2589 + $0x5c] sm:$0xf]
        %v2606 = vld [vmem:[%s2589 + $0x60] sm:$0xff]
        %v2607 = vld [vmem:[%s2589 + $0x68] sm:$0xf]
        %v2608 = vld [vmem:[%s2589 + $0x6c] sm:$0xff]
        %v2609 = vld [vmem:[%s2589 + $0x74] sm:$0xf]
        %v2610 = vld [vmem:[%s2589 + $0x78] sm:$0xff]
        %v2611 = vld [vmem:[%s2589 + $0x80] sm:$0xf]
        %v2612 = vld [vmem:[%s2589 + $0x84] sm:$0xff]
        %v2613 = vld [vmem:[%s2589 + $0x8c] sm:$0xf]
        %v2614 = vld [vmem:[%s2589 + $0x90] sm:$0xff]
        %v2615 = vld [vmem:[%s2589 + $0x98] sm:$0xf]
        %v2616 = vld [vmem:[%s2589 + $0x9c] sm:$0xff]
        %v2617 = vld [vmem:[%s2589 + $0xa4] sm:$0xf]
        %v2618 = vld [vmem:[%s2589 + $0xa8] sm:$0xff]
        %v2619 = vld [vmem:[%s2589 + $0xb0] sm:$0xf]
        %v2620 = vld [vmem:[%s2589 + $0xb4] sm:$0xff]
        %v2621 = vld [vmem:[%s2589 + $0xbc] sm:$0xf]
        %v2622 = vld [vmem:[%s2589 + $0xc0] sm:$0xff]
        %v2623 = vld [vmem:[%s2589 + $0xc8] sm:$0xf]
        %v2624 = vld [vmem:[%s2589 + $0xcc] sm:$0xff]
        %v2625 = vld [vmem:[%s2589 + $0xd4] sm:$0xf]
        %v2626 = vld [vmem:[%s2589 + $0xd8] sm:$0xff]
        %v2627 = vld [vmem:[%s2589 + $0xe0] sm:$0xf]
        %v2628 = vld [vmem:[%s2589 + $0xe4] sm:$0xff]
        %v2629 = vld [vmem:[%s2589 + $0xec] sm:$0xf]
        %v2630 = vld [vmem:[%s2589 + $0xf0] sm:$0xff]
        %v2631 = vld [vmem:[%s2589 + $0xf8] sm:$0xf]
        %v2632 = vld [vmem:[%s2589 + $0xfc] sm:$0xff]
        %v2633 = vld [vmem:[%s2589 + $0x104] sm:$0xf]
        %v2634 = vld [vmem:[%s2589 + $0x108] sm:$0xff]
        %v2635 = vld [vmem:[%s2589 + $0x110] sm:$0xf]
        %v2636 = vld [vmem:[%s2589 + $0x114] sm:$0xff]
        %v2637 = vld [vmem:[%s2589 + $0x11c] sm:$0xf]
        %v2638 = vld [vmem:[%s2589 + $0x120] sm:$0xff]
        %v2639 = vld [vmem:[%s2589 + $0x128] sm:$0xf]
        %v2640 = vld [vmem:[%s2589 + $0x12c] sm:$0xff]
        %v2641 = vld [vmem:[%s2589 + $0x134] sm:$0xf]
        %v2642 = vld [vmem:[%s2589 + $0x138] sm:$0xff]
        %v2643 = vld [vmem:[%s2589 + $0x140] sm:$0xf]
        %v2644 = vld [vmem:[%s2589 + $0x144] sm:$0xff]
        %v2645 = vld [vmem:[%s2589 + $0x14c] sm:$0xf]
        %v2646 = vld [vmem:[%s2589 + $0x150] sm:$0xff]
        %v2647 = vld [vmem:[%s2589 + $0x158] sm:$0xf]
        %v2648 = vld [vmem:[%s2589 + $0x15c] sm:$0xff]
        %v2649 = vld [vmem:[%s2589 + $0x164] sm:$0xf]
        %s2650 = scalar_lea.vmem [#allocation6], 384
        %v2651 = vld [vmem:[%s2650] sm:$0xf]
        %v2652 = vld [vmem:[%s2650 + $0x4] sm:$0xf]
        %v2653 = vld [vmem:[%s2650 + $0x8] sm:$0xf]
        %v2654 = vld [vmem:[%s2650 + $0xc] sm:$0xf]
        %v2655 = vld [vmem:[%s2650 + $0x10] sm:$0xf]
        %v2656 = vld [vmem:[%s2650 + $0x14] sm:$0xf]
        %v2657 = vld [vmem:[%s2650 + $0x18] sm:$0xf]
        %v2658 = vld [vmem:[%s2650 + $0x1c] sm:$0xf]
        %v2659 = vld [vmem:[%s2650 + $0x20] sm:$0xf]
        %v2660 = vld [vmem:[%s2650 + $0x24] sm:$0xf]
        %v2661 = vld [vmem:[%s2650 + $0x28] sm:$0xf]
        %v2662 = vld [vmem:[%s2650 + $0x2c] sm:$0xf]
        %v2663 = vld [vmem:[%s2650 + $0x30] sm:$0xf]
        %v2664 = vld [vmem:[%s2650 + $0x34] sm:$0xf]
        %v2665 = vld [vmem:[%s2650 + $0x38] sm:$0xf]
        %v2666 = vld [vmem:[%s2650 + $0x3c] sm:$0xf]
        %v2667 = vld [vmem:[%s2650 + $0x40] sm:$0xf]
        %v2668 = vld [vmem:[%s2650 + $0x44] sm:$0xf]
        %v2669 = vld [vmem:[%s2650 + $0x48] sm:$0xf]
        %v2670 = vld [vmem:[%s2650 + $0x4c] sm:$0xf]
        %v2671 = vld [vmem:[%s2650 + $0x50] sm:$0xf]
        %v2672 = vld [vmem:[%s2650 + $0x54] sm:$0xf]
        %v2673 = vld [vmem:[%s2650 + $0x58] sm:$0xf]
        %v2674 = vld [vmem:[%s2650 + $0x5c] sm:$0xf]
        %v2675 = vld [vmem:[%s2650 + $0x60] sm:$0xf]
        %v2676 = vld [vmem:[%s2650 + $0x64] sm:$0xf]
        %v2677 = vld [vmem:[%s2650 + $0x68] sm:$0xf]
        %v2678 = vld [vmem:[%s2650 + $0x6c] sm:$0xf]
        %v2679 = vld [vmem:[%s2650 + $0x70] sm:$0xf]
        %v2680 = vld [vmem:[%s2650 + $0x74] sm:$0xf]
        %v2681 = vld [vmem:[%s2650 + $0x78] sm:$0xf]
        %v2682 = vld [vmem:[%s2650 + $0x7c] sm:$0xf]
        %v2683 = vld [vmem:[%s2650 + $0x80] sm:$0xf]
        %v2684 = vld [vmem:[%s2650 + $0x84] sm:$0xf]
        %v2685 = vld [vmem:[%s2650 + $0x88] sm:$0xf]
        %v2686 = vld [vmem:[%s2650 + $0x8c] sm:$0xf]
        %v2687 = vld [vmem:[%s2650 + $0x90] sm:$0xf]
        %v2688 = vld [vmem:[%s2650 + $0x94] sm:$0xf]
        %v2689 = vld [vmem:[%s2650 + $0x98] sm:$0xf]
        %v2690 = vld [vmem:[%s2650 + $0x9c] sm:$0xf]
        %v2691 = vld [vmem:[%s2650 + $0xa0] sm:$0xf]
        %v2692 = vld [vmem:[%s2650 + $0xa4] sm:$0xf]
        %v2693 = vld [vmem:[%s2650 + $0xa8] sm:$0xf]
        %v2694 = vld [vmem:[%s2650 + $0xac] sm:$0xf]
        %v2695 = vld [vmem:[%s2650 + $0xb0] sm:$0xf]
        %v2696 = vld [vmem:[%s2650 + $0xb4] sm:$0xf]
        %v2697 = vld [vmem:[%s2650 + $0xb8] sm:$0xf]
        %v2698 = vld [vmem:[%s2650 + $0xbc] sm:$0xf]
        %v2759 = vunpack.c.l.b16 %v2590
        %v2760 = vunpack.c.h.b16 %v2590
        %v2761 = vunpack.c.l.b16 %v2591
        %v2762 = vunpack.c.l.b16 %v2592
        %v2763 = vunpack.c.h.b16 %v2592
        %v2764 = vunpack.c.l.b16 %v2593
        %v2765 = vunpack.c.l.b16 %v2594
        %v2766 = vunpack.c.h.b16 %v2594
        %v2767 = vunpack.c.l.b16 %v2595
        %v2768 = vunpack.c.l.b16 %v2596
        %v2769 = vunpack.c.h.b16 %v2596
        %v2770 = vunpack.c.l.b16 %v2597
        %v2771 = vunpack.c.l.b16 %v2598
        %v2772 = vunpack.c.h.b16 %v2598
        %v2773 = vunpack.c.l.b16 %v2599
        %v2774 = vunpack.c.l.b16 %v2600
        %v2775 = vunpack.c.h.b16 %v2600
        %v2776 = vunpack.c.l.b16 %v2601
        %v2777 = vunpack.c.l.b16 %v2602
        %v2778 = vunpack.c.h.b16 %v2602
        %v2779 = vunpack.c.l.b16 %v2603
        %v2780 = vunpack.c.l.b16 %v2604
        %v2781 = vunpack.c.h.b16 %v2604
        %v2782 = vunpack.c.l.b16 %v2605
        %v2783 = vunpack.c.l.b16 %v2606
        %v2784 = vunpack.c.h.b16 %v2606
        %v2785 = vunpack.c.l.b16 %v2607
        %v2786 = vunpack.c.l.b16 %v2608
        %v2787 = vunpack.c.h.b16 %v2608
        %v2788 = vunpack.c.l.b16 %v2609
        %v2789 = vunpack.c.l.b16 %v2610
        %v2790 = vunpack.c.h.b16 %v2610
        %v2791 = vunpack.c.l.b16 %v2611
        %v2792 = vunpack.c.l.b16 %v2612
        %v2793 = vunpack.c.h.b16 %v2612
        %v2794 = vunpack.c.l.b16 %v2613
        %v2795 = vunpack.c.l.b16 %v2614
        %v2796 = vunpack.c.h.b16 %v2614
        %v2797 = vunpack.c.l.b16 %v2615
        %v2798 = vunpack.c.l.b16 %v2616
        %v2799 = vunpack.c.h.b16 %v2616
        %v2800 = vunpack.c.l.b16 %v2617
        %v2801 = vunpack.c.l.b16 %v2618
        %v2802 = vunpack.c.h.b16 %v2618
        %v2803 = vunpack.c.l.b16 %v2619
        %v2804 = vunpack.c.l.b16 %v2620
        %v2805 = vunpack.c.h.b16 %v2620
        %v2806 = vunpack.c.l.b16 %v2621
        %v2807 = vunpack.c.l.b16 %v2622
        %v2808 = vunpack.c.h.b16 %v2622
        %v2809 = vunpack.c.l.b16 %v2623
        %v2810 = vunpack.c.l.b16 %v2624
        %v2811 = vunpack.c.h.b16 %v2624
        %v2812 = vunpack.c.l.b16 %v2625
        %v2813 = vunpack.c.l.b16 %v2626
        %v2814 = vunpack.c.h.b16 %v2626
        %v2815 = vunpack.c.l.b16 %v2627
        %v2816 = vunpack.c.l.b16 %v2628
        %v2817 = vunpack.c.h.b16 %v2628
        %v2818 = vunpack.c.l.b16 %v2629
        %v2819 = vunpack.c.l.b16 %v2630
        %v2820 = vunpack.c.h.b16 %v2630
        %v2821 = vunpack.c.l.b16 %v2631
        %v2822 = vunpack.c.l.b16 %v2632
        %v2823 = vunpack.c.h.b16 %v2632
        %v2824 = vunpack.c.l.b16 %v2633
        %v2825 = vunpack.c.l.b16 %v2634
        %v2826 = vunpack.c.h.b16 %v2634
        %v2827 = vunpack.c.l.b16 %v2635
        %v2828 = vunpack.c.l.b16 %v2636
        %v2829 = vunpack.c.h.b16 %v2636
        %v2830 = vunpack.c.l.b16 %v2637
        %v2831 = vunpack.c.l.b16 %v2638
        %v2832 = vunpack.c.h.b16 %v2638
        %v2833 = vunpack.c.l.b16 %v2639
        %v2834 = vunpack.c.l.b16 %v2640
        %v2835 = vunpack.c.h.b16 %v2640
        %v2836 = vunpack.c.l.b16 %v2641
        %v2837 = vunpack.c.l.b16 %v2642
        %v2838 = vunpack.c.h.b16 %v2642
        %v2839 = vunpack.c.l.b16 %v2643
        %v2840 = vunpack.c.l.b16 %v2644
        %v2841 = vunpack.c.h.b16 %v2644
        %v2842 = vunpack.c.l.b16 %v2645
        %v2843 = vunpack.c.l.b16 %v2646
        %v2844 = vunpack.c.h.b16 %v2646
        %v2845 = vunpack.c.l.b16 %v2647
        %v2846 = vunpack.c.l.b16 %v2648
        %v2847 = vunpack.c.h.b16 %v2648
        %v2848 = vunpack.c.l.b16 %v2649
        %v2849 = vpack.c.b16 %v2762, %v2759
        %v2850 = vpack.c.b16 %v2763, %v2760
        %v2851 = vpack.c.b16 %v2764, %v2761
        %v2852 = vpack.c.b16 %v2768, %v2765
        %v2853 = vpack.c.b16 %v2769, %v2766
        %v2854 = vpack.c.b16 %v2770, %v2767
        %v2855 = vpack.c.b16 %v2774, %v2771
        %v2856 = vpack.c.b16 %v2775, %v2772
        %v2857 = vpack.c.b16 %v2776, %v2773
        %v2858 = vpack.c.b16 %v2780, %v2777
        %v2859 = vpack.c.b16 %v2781, %v2778
        %v2860 = vpack.c.b16 %v2782, %v2779
        %v2861 = vpack.c.b16 %v2786, %v2783
        %v2862 = vpack.c.b16 %v2787, %v2784
        %v2863 = vpack.c.b16 %v2788, %v2785
        %v2864 = vpack.c.b16 %v2792, %v2789
        %v2865 = vpack.c.b16 %v2793, %v2790
        %v2866 = vpack.c.b16 %v2794, %v2791
        %v2867 = vpack.c.b16 %v2798, %v2795
        %v2868 = vpack.c.b16 %v2799, %v2796
        %v2869 = vpack.c.b16 %v2800, %v2797
        %v2870 = vpack.c.b16 %v2804, %v2801
        %v2871 = vpack.c.b16 %v2805, %v2802
        %v2872 = vpack.c.b16 %v2806, %v2803
        %v2873 = vpack.c.b16 %v2810, %v2807
        %v2874 = vpack.c.b16 %v2811, %v2808
        %v2875 = vpack.c.b16 %v2812, %v2809
        %v2876 = vpack.c.b16 %v2816, %v2813
        %v2877 = vpack.c.b16 %v2817, %v2814
        %v2878 = vpack.c.b16 %v2818, %v2815
        %v2879 = vpack.c.b16 %v2822, %v2819
        %v2880 = vpack.c.b16 %v2823, %v2820
        %v2881 = vpack.c.b16 %v2824, %v2821
        %v2882 = vpack.c.b16 %v2828, %v2825
        %v2883 = vpack.c.b16 %v2829, %v2826
        %v2884 = vpack.c.b16 %v2830, %v2827
        %v2885 = vpack.c.b16 %v2834, %v2831
        %v2886 = vpack.c.b16 %v2835, %v2832
        %v2887 = vpack.c.b16 %v2836, %v2833
        %v2888 = vpack.c.b16 %v2840, %v2837
        %v2889 = vpack.c.b16 %v2841, %v2838
        %v2890 = vpack.c.b16 %v2842, %v2839
        %v2891 = vpack.c.b16 %v2846, %v2843
        %v2892 = vpack.c.b16 %v2847, %v2844
        %v2893 = vpack.c.b16 %v2848, %v2845
        %v2987 = vunpack.c.l.b16 %v2651
        %v2988 = vunpack.c.l.b16 %v2652
        %v2989 = vunpack.c.l.b16 %v2653
        %v2990 = vunpack.c.l.b16 %v2654
        %v2991 = vunpack.c.l.b16 %v2655
        %v2992 = vunpack.c.l.b16 %v2656
        %v2993 = vunpack.c.l.b16 %v2657
        %v2994 = vunpack.c.l.b16 %v2658
        %v2995 = vunpack.c.l.b16 %v2659
        %v2996 = vunpack.c.l.b16 %v2660
        %v2997 = vunpack.c.l.b16 %v2661
        %v2998 = vunpack.c.l.b16 %v2662
        %v2999 = vunpack.c.l.b16 %v2663
        %v3000 = vunpack.c.l.b16 %v2664
        %v3001 = vunpack.c.l.b16 %v2665
        %v3002 = vunpack.c.l.b16 %v2666
        %v3003 = vunpack.c.l.b16 %v2667
        %v3004 = vunpack.c.l.b16 %v2668
        %v3005 = vunpack.c.l.b16 %v2669
        %v3006 = vunpack.c.l.b16 %v2670
        %v3007 = vunpack.c.l.b16 %v2671
        %v3008 = vunpack.c.l.b16 %v2672
        %v3009 = vunpack.c.l.b16 %v2673
        %v3010 = vunpack.c.l.b16 %v2674
        %v3011 = vunpack.c.l.b16 %v2675
        %v3012 = vunpack.c.l.b16 %v2676
        %v3013 = vunpack.c.l.b16 %v2677
        %v3014 = vunpack.c.l.b16 %v2678
        %v3015 = vunpack.c.l.b16 %v2679
        %v3016 = vunpack.c.l.b16 %v2680
        %v3017 = vunpack.c.l.b16 %v2681
        %v3018 = vunpack.c.l.b16 %v2682
        %v3019 = vunpack.c.l.b16 %v2683
        %v3020 = vunpack.c.l.b16 %v2684
        %v3021 = vunpack.c.l.b16 %v2685
        %v3022 = vunpack.c.l.b16 %v2686
        %v3023 = vunpack.c.l.b16 %v2687
        %v3024 = vunpack.c.l.b16 %v2688
        %v3025 = vunpack.c.l.b16 %v2689
        %v3026 = vunpack.c.l.b16 %v2690
        %v3027 = vunpack.c.l.b16 %v2691
        %v3028 = vunpack.c.l.b16 %v2692
        %v3029 = vunpack.c.l.b16 %v2693
        %v3030 = vunpack.c.l.b16 %v2694
        %v3031 = vunpack.c.l.b16 %v2695
        %v3032 = vunpack.c.l.b16 %v2696
        %v3033 = vunpack.c.l.b16 %v2697
        %v3034 = vunpack.c.l.b16 %v2698
        %v3035 = vpack.c.b16 %v2988, %v2987
        %v3036 = vpack.c.b16 %v2990, %v2989
        %v3037 = vpack.c.b16 %v2992, %v2991
        %v3038 = vpack.c.b16 %v2994, %v2993
        %v3039 = vpack.c.b16 %v2996, %v2995
        %v3040 = vpack.c.b16 %v2998, %v2997
        %v3041 = vpack.c.b16 %v3000, %v2999
        %v3042 = vpack.c.b16 %v3002, %v3001
        %v3043 = vpack.c.b16 %v3004, %v3003
        %v3044 = vpack.c.b16 %v3006, %v3005
        %v3045 = vpack.c.b16 %v3008, %v3007
        %v3046 = vpack.c.b16 %v3010, %v3009
        %v3047 = vpack.c.b16 %v3012, %v3011
        %v3048 = vpack.c.b16 %v3014, %v3013
        %v3049 = vpack.c.b16 %v3016, %v3015
        %v3050 = vpack.c.b16 %v3018, %v3017
        %v3051 = vpack.c.b16 %v3020, %v3019
        %v3052 = vpack.c.b16 %v3022, %v3021
        %v3053 = vpack.c.b16 %v3024, %v3023
        %v3054 = vpack.c.b16 %v3026, %v3025
        %v3055 = vpack.c.b16 %v3028, %v3027
        %v3056 = vpack.c.b16 %v3030, %v3029
        %v3057 = vpack.c.b16 %v3032, %v3031
        %v3058 = vpack.c.b16 %v3034, %v3033
        %3083 = vmatpush.bf16.msra.mxu0 %v3042
        %3084 = vmatpush.bf16.msra.mxu0 %v3041
        %3085 = vmatpush.bf16.msra.mxu0 %v3040
        %3086 = vmatpush.bf16.msra.mxu0 %v3039
        %3087 = vmatpush.bf16.msra.mxu0 %v3038
        %3088 = vmatpush.bf16.msra.mxu0 %v3037
        %3089 = vmatpush.bf16.msra.mxu0 %v3036
        %3090 = vmatpush.bf16.msra.mxu0 %v3035
        %3091 = vmatmul.bf16.gmra.mxu0 %v2849
        %v3092 = vpop.f32.mrf.mxu0
        %v3093 = vadd.f32 0.0, %v3092
        %v3094 = vpop.f32.mrf.mxu0
        %v3095 = vadd.f32 0.0, %v3094
        %3096 = vmatmul.bf16.gmra.mxu0 %v2852
        %v3097 = vpop.f32.mrf.mxu0
        %v3098 = vadd.f32 0.0, %v3097
        %v3099 = vpop.f32.mrf.mxu0
        %v3100 = vadd.f32 0.0, %v3099
        %3101 = vmatmul.bf16.gmra.mxu0 %v2855
        %v3102 = vpop.f32.mrf.mxu0
        %v3103 = vadd.f32 0.0, %v3102
        %v3104 = vpop.f32.mrf.mxu0
        %v3105 = vadd.f32 0.0, %v3104
        %3106 = vmatmul.bf16.gmra.mxu0 %v2858
        %v3107 = vpop.f32.mrf.mxu0
        %v3108 = vadd.f32 0.0, %v3107
        %v3109 = vpop.f32.mrf.mxu0
        %v3110 = vadd.f32 0.0, %v3109
        %3111 = vmatmul.bf16.gmra.mxu0 %v2861
        %v3112 = vpop.f32.mrf.mxu0
        %v3113 = vadd.f32 0.0, %v3112
        %v3114 = vpop.f32.mrf.mxu0
        %v3115 = vadd.f32 0.0, %v3114
        %3116 = vmatmul.bf16.gmra.mxu0 %v2864
        %v3117 = vpop.f32.mrf.mxu0
        %v3118 = vadd.f32 0.0, %v3117
        %v3119 = vpop.f32.mrf.mxu0
        %v3120 = vadd.f32 0.0, %v3119
        %3121 = vmatmul.bf16.gmra.mxu0 %v2867
        %v3122 = vpop.f32.mrf.mxu0
        %v3123 = vadd.f32 0.0, %v3122
        %v3124 = vpop.f32.mrf.mxu0
        %v3125 = vadd.f32 0.0, %v3124
        %3126 = vmatmul.bf16.gmra.mxu0 %v2870
        %v3127 = vpop.f32.mrf.mxu0
        %v3128 = vadd.f32 0.0, %v3127
        %v3129 = vpop.f32.mrf.mxu0
        %v3130 = vadd.f32 0.0, %v3129
        %3131 = vmatmul.bf16.gmra.mxu0 %v2873
        %v3132 = vpop.f32.mrf.mxu0
        %v3133 = vadd.f32 0.0, %v3132
        %v3134 = vpop.f32.mrf.mxu0
        %v3135 = vadd.f32 0.0, %v3134
        %3136 = vmatmul.bf16.gmra.mxu0 %v2876
        %v3137 = vpop.f32.mrf.mxu0
        %v3138 = vadd.f32 0.0, %v3137
        %v3139 = vpop.f32.mrf.mxu0
        %v3140 = vadd.f32 0.0, %v3139
        %3141 = vmatmul.bf16.gmra.mxu0 %v2879
        %v3142 = vpop.f32.mrf.mxu0
        %v3143 = vadd.f32 0.0, %v3142
        %v3144 = vpop.f32.mrf.mxu0
        %v3145 = vadd.f32 0.0, %v3144
        %3146 = vmatmul.bf16.gmra.mxu0 %v2882
        %v3147 = vpop.f32.mrf.mxu0
        %v3148 = vadd.f32 0.0, %v3147
        %v3149 = vpop.f32.mrf.mxu0
        %v3150 = vadd.f32 0.0, %v3149
        %3151 = vmatmul.bf16.gmra.mxu0 %v2885
        %v3152 = vpop.f32.mrf.mxu0
        %v3153 = vadd.f32 0.0, %v3152
        %v3154 = vpop.f32.mrf.mxu0
        %v3155 = vadd.f32 0.0, %v3154
        %3156 = vmatmul.bf16.gmra.mxu0 %v2888
        %v3157 = vpop.f32.mrf.mxu0
        %v3158 = vadd.f32 0.0, %v3157
        %v3159 = vpop.f32.mrf.mxu0
        %v3160 = vadd.f32 0.0, %v3159
        %3161 = vmatmul.bf16.gmra.mxu0 %v2891
        %v3162 = vpop.f32.mrf.mxu0
        %v3163 = vadd.f32 0.0, %v3162
        %v3164 = vpop.f32.mrf.mxu0
        %v3165 = vadd.f32 0.0, %v3164
        %3166 = vdwg.mxu0
        %3167 = vmatpush.bf16.msra.mxu0 %v3050
        %3168 = vmatpush.bf16.msra.mxu0 %v3049
        %3169 = vmatpush.bf16.msra.mxu0 %v3048
        %3170 = vmatpush.bf16.msra.mxu0 %v3047
        %3171 = vmatpush.bf16.msra.mxu0 %v3046
        %3172 = vmatpush.bf16.msra.mxu0 %v3045
        %3173 = vmatpush.bf16.msra.mxu0 %v3044
        %3174 = vmatpush.bf16.msra.mxu0 %v3043
        %3175 = vmatmul.bf16.gmra.mxu0 %v2850
        %v3176 = vpop.f32.mrf.mxu0
        %v3177 = vadd.f32 %v3093, %v3176
        %v3178 = vpop.f32.mrf.mxu0
        %v3179 = vadd.f32 %v3095, %v3178
        %3180 = vmatmul.bf16.gmra.mxu0 %v2853
        %v3181 = vpop.f32.mrf.mxu0
        %v3182 = vadd.f32 %v3098, %v3181
        %v3183 = vpop.f32.mrf.mxu0
        %v3184 = vadd.f32 %v3100, %v3183
        %3185 = vmatmul.bf16.gmra.mxu0 %v2856
        %v3186 = vpop.f32.mrf.mxu0
        %v3187 = vadd.f32 %v3103, %v3186
        %v3188 = vpop.f32.mrf.mxu0
        %v3189 = vadd.f32 %v3105, %v3188
        %3190 = vmatmul.bf16.gmra.mxu0 %v2859
        %v3191 = vpop.f32.mrf.mxu0
        %v3192 = vadd.f32 %v3108, %v3191
        %v3193 = vpop.f32.mrf.mxu0
        %v3194 = vadd.f32 %v3110, %v3193
        %3195 = vmatmul.bf16.gmra.mxu0 %v2862
        %v3196 = vpop.f32.mrf.mxu0
        %v3197 = vadd.f32 %v3113, %v3196
        %v3198 = vpop.f32.mrf.mxu0
        %v3199 = vadd.f32 %v3115, %v3198
        %3200 = vmatmul.bf16.gmra.mxu0 %v2865
        %v3201 = vpop.f32.mrf.mxu0
        %v3202 = vadd.f32 %v3118, %v3201
        %v3203 = vpop.f32.mrf.mxu0
        %v3204 = vadd.f32 %v3120, %v3203
        %3205 = vmatmul.bf16.gmra.mxu0 %v2868
        %v3206 = vpop.f32.mrf.mxu0
        %v3207 = vadd.f32 %v3123, %v3206
        %v3208 = vpop.f32.mrf.mxu0
        %v3209 = vadd.f32 %v3125, %v3208
        %3210 = vmatmul.bf16.gmra.mxu0 %v2871
        %v3211 = vpop.f32.mrf.mxu0
        %v3212 = vadd.f32 %v3128, %v3211
        %v3213 = vpop.f32.mrf.mxu0
        %v3214 = vadd.f32 %v3130, %v3213
        %3215 = vmatmul.bf16.gmra.mxu0 %v2874
        %v3216 = vpop.f32.mrf.mxu0
        %v3217 = vadd.f32 %v3133, %v3216
        %v3218 = vpop.f32.mrf.mxu0
        %v3219 = vadd.f32 %v3135, %v3218
        %3220 = vmatmul.bf16.gmra.mxu0 %v2877
        %v3221 = vpop.f32.mrf.mxu0
        %v3222 = vadd.f32 %v3138, %v3221
        %v3223 = vpop.f32.mrf.mxu0
        %v3224 = vadd.f32 %v3140, %v3223
        %3225 = vmatmul.bf16.gmra.mxu0 %v2880
        %v3226 = vpop.f32.mrf.mxu0
        %v3227 = vadd.f32 %v3143, %v3226
        %v3228 = vpop.f32.mrf.mxu0
        %v3229 = vadd.f32 %v3145, %v3228
        %3230 = vmatmul.bf16.gmra.mxu0 %v2883
        %v3231 = vpop.f32.mrf.mxu0
        %v3232 = vadd.f32 %v3148, %v3231
        %v3233 = vpop.f32.mrf.mxu0
        %v3234 = vadd.f32 %v3150, %v3233
        %3235 = vmatmul.bf16.gmra.mxu0 %v2886
        %v3236 = vpop.f32.mrf.mxu0
        %v3237 = vadd.f32 %v3153, %v3236
        %v3238 = vpop.f32.mrf.mxu0
        %v3239 = vadd.f32 %v3155, %v3238
        %3240 = vmatmul.bf16.gmra.mxu0 %v2889
        %v3241 = vpop.f32.mrf.mxu0
        %v3242 = vadd.f32 %v3158, %v3241
        %v3243 = vpop.f32.mrf.mxu0
        %v3244 = vadd.f32 %v3160, %v3243
        %3245 = vmatmul.bf16.gmra.mxu0 %v2892
        %v3246 = vpop.f32.mrf.mxu0
        %v3247 = vadd.f32 %v3163, %v3246
        %v3248 = vpop.f32.mrf.mxu0
        %v3249 = vadd.f32 %v3165, %v3248
        %3250 = vdwg.mxu0
        %3251 = vmatpush.bf16.msra.mxu0 %v3058
        %3252 = vmatpush.bf16.msra.mxu0 %v3057
        %3253 = vmatpush.bf16.msra.mxu0 %v3056
        %3254 = vmatpush.bf16.msra.mxu0 %v3055
        %3255 = vmatpush.bf16.msra.mxu0 %v3054
        %3256 = vmatpush.bf16.msra.mxu0 %v3053
        %3257 = vmatpush.bf16.msra.mxu0 %v3052
        %3258 = vmatpush.bf16.msra.mxu0 %v3051
        %3259 = vmatmul.bf16.gmra.mxu0 %v2851
        %v3260 = vpop.f32.mrf.mxu0
        %v3261 = vadd.f32 %v3177, %v3260
        %v3262 = vpop.f32.mrf.mxu0
        %v3263 = vadd.f32 %v3179, %v3262
        %3264 = vmatmul.bf16.gmra.mxu0 %v2854
        %v3265 = vpop.f32.mrf.mxu0
        %v3266 = vadd.f32 %v3182, %v3265
        %v3267 = vpop.f32.mrf.mxu0
        %v3268 = vadd.f32 %v3184, %v3267
        %3269 = vmatmul.bf16.gmra.mxu0 %v2857
        %v3270 = vpop.f32.mrf.mxu0
        %v3271 = vadd.f32 %v3187, %v3270
        %v3272 = vpop.f32.mrf.mxu0
        %v3273 = vadd.f32 %v3189, %v3272
        %3274 = vmatmul.bf16.gmra.mxu0 %v2860
        %v3275 = vpop.f32.mrf.mxu0
        %v3276 = vadd.f32 %v3192, %v3275
        %v3277 = vpop.f32.mrf.mxu0
        %v3278 = vadd.f32 %v3194, %v3277
        %3279 = vmatmul.bf16.gmra.mxu0 %v2863
        %v3280 = vpop.f32.mrf.mxu0
        %v3281 = vadd.f32 %v3197, %v3280
        %v3282 = vpop.f32.mrf.mxu0
        %v3283 = vadd.f32 %v3199, %v3282
        %3284 = vmatmul.bf16.gmra.mxu0 %v2866
        %v3285 = vpop.f32.mrf.mxu0
        %v3286 = vadd.f32 %v3202, %v3285
        %v3287 = vpop.f32.mrf.mxu0
        %v3288 = vadd.f32 %v3204, %v3287
        %3289 = vmatmul.bf16.gmra.mxu0 %v2869
        %v3290 = vpop.f32.mrf.mxu0
        %v3291 = vadd.f32 %v3207, %v3290
        %v3292 = vpop.f32.mrf.mxu0
        %v3293 = vadd.f32 %v3209, %v3292
        %3294 = vmatmul.bf16.gmra.mxu0 %v2872
        %v3295 = vpop.f32.mrf.mxu0
        %v3296 = vadd.f32 %v3212, %v3295
        %v3297 = vpop.f32.mrf.mxu0
        %v3298 = vadd.f32 %v3214, %v3297
        %3299 = vmatmul.bf16.gmra.mxu0 %v2875
        %v3300 = vpop.f32.mrf.mxu0
        %v3301 = vadd.f32 %v3217, %v3300
        %v3302 = vpop.f32.mrf.mxu0
        %v3303 = vadd.f32 %v3219, %v3302
        %3304 = vmatmul.bf16.gmra.mxu0 %v2878
        %v3305 = vpop.f32.mrf.mxu0
        %v3306 = vadd.f32 %v3222, %v3305
        %v3307 = vpop.f32.mrf.mxu0
        %v3308 = vadd.f32 %v3224, %v3307
        %3309 = vmatmul.bf16.gmra.mxu0 %v2881
        %v3310 = vpop.f32.mrf.mxu0
        %v3311 = vadd.f32 %v3227, %v3310
        %v3312 = vpop.f32.mrf.mxu0
        %v3313 = vadd.f32 %v3229, %v3312
        %3314 = vmatmul.bf16.gmra.mxu0 %v2884
        %v3315 = vpop.f32.mrf.mxu0
        %v3316 = vadd.f32 %v3232, %v3315
        %v3317 = vpop.f32.mrf.mxu0
        %v3318 = vadd.f32 %v3234, %v3317
        %3319 = vmatmul.bf16.gmra.mxu0 %v2887
        %v3320 = vpop.f32.mrf.mxu0
        %v3321 = vadd.f32 %v3237, %v3320
        %v3322 = vpop.f32.mrf.mxu0
        %v3323 = vadd.f32 %v3239, %v3322
        %3324 = vmatmul.bf16.gmra.mxu0 %v2890
        %v3325 = vpop.f32.mrf.mxu0
        %v3326 = vadd.f32 %v3242, %v3325
        %v3327 = vpop.f32.mrf.mxu0
        %v3328 = vadd.f32 %v3244, %v3327
        %3329 = vmatmul.bf16.gmra.mxu0 %v2893
        %v3330 = vpop.f32.mrf.mxu0
        %v3331 = vadd.f32 %v3247, %v3330
        %v3332 = vpop.f32.mrf.mxu0
        %v3333 = vadd.f32 %v3249, %v3332
        %3334 = vdwg.mxu0
        %v3335 = vld [vmem:[%s207] sm:$0xff]
        %v3336 = vld [vmem:[%s207 + $0x8] sm:$0xff]
        %v3337 = vld [vmem:[%s207 + $0x10] sm:$0xff]
        %v3338 = vld [vmem:[%s207 + $0x18] sm:$0xff]
        %v3339 = vld [vmem:[%s207 + $0x20] sm:$0xff]
        %v3340 = vld [vmem:[%s207 + $0x28] sm:$0xff]
        %v3341 = vld [vmem:[%s207 + $0x30] sm:$0xff]
        %v3342 = vld [vmem:[%s207 + $0x38] sm:$0xff]
        %v3343 = vld [vmem:[%s207 + $0x40] sm:$0xff]
        %v3344 = vld [vmem:[%s207 + $0x48] sm:$0xff]
        %v3345 = vld [vmem:[%s207 + $0x50] sm:$0xff]
        %v3346 = vld [vmem:[%s207 + $0x58] sm:$0xff]
        %v3347 = vld [vmem:[%s207 + $0x60] sm:$0xff]
        %v3348 = vld [vmem:[%s207 + $0x68] sm:$0xff]
        %v3349 = vld [vmem:[%s207 + $0x70] sm:$0xff]
        %v3350 = vld [vmem:[%s207 + $0x78] sm:$0xff]
        %v3351 = vld [vmem:[%s207 + $0x80] sm:$0xff]
        %v3352 = vld [vmem:[%s207 + $0x88] sm:$0xff]
        %v3353 = vld [vmem:[%s207 + $0x90] sm:$0xff]
        %v3354 = vld [vmem:[%s207 + $0x98] sm:$0xff]
        %v3355 = vld [vmem:[%s207 + $0xa0] sm:$0xff]
        %v3356 = vld [vmem:[%s207 + $0xa8] sm:$0xff]
        %v3357 = vld [vmem:[%s207 + $0xb0] sm:$0xff]
        %v3358 = vld [vmem:[%s207 + $0xb8] sm:$0xff]
        %v3359 = vld [vmem:[%s207 + $0xc0] sm:$0xff]
        %v3360 = vld [vmem:[%s207 + $0xc8] sm:$0xff]
        %v3361 = vld [vmem:[%s207 + $0xd0] sm:$0xff]
        %v3362 = vld [vmem:[%s207 + $0xd8] sm:$0xff]
        %v3363 = vld [vmem:[%s207 + $0xe0] sm:$0xff]
        %v3364 = vld [vmem:[%s207 + $0xe8] sm:$0xff]
        %v3365 = vadd.f32 %v3335, %v3261
        %v3366 = vadd.f32 %v3336, %v3263
        %v3367 = vadd.f32 %v3337, %v3266
        %v3368 = vadd.f32 %v3338, %v3268
        %v3369 = vadd.f32 %v3339, %v3271
        %v3370 = vadd.f32 %v3340, %v3273
        %v3371 = vadd.f32 %v3341, %v3276
        %v3372 = vadd.f32 %v3342, %v3278
        %v3373 = vadd.f32 %v3343, %v3281
        %v3374 = vadd.f32 %v3344, %v3283
        %v3375 = vadd.f32 %v3345, %v3286
        %v3376 = vadd.f32 %v3346, %v3288
        %v3377 = vadd.f32 %v3347, %v3291
        %v3378 = vadd.f32 %v3348, %v3293
        %v3379 = vadd.f32 %v3349, %v3296
        %v3380 = vadd.f32 %v3350, %v3298
        %v3381 = vadd.f32 %v3351, %v3301
        %v3382 = vadd.f32 %v3352, %v3303
        %v3383 = vadd.f32 %v3353, %v3306
        %v3384 = vadd.f32 %v3354, %v3308
        %v3385 = vadd.f32 %v3355, %v3311
        %v3386 = vadd.f32 %v3356, %v3313
        %v3387 = vadd.f32 %v3357, %v3316
        %v3388 = vadd.f32 %v3358, %v3318
        %v3389 = vadd.f32 %v3359, %v3321
        %v3390 = vadd.f32 %v3360, %v3323
        %v3391 = vadd.f32 %v3361, %v3326
        %v3392 = vadd.f32 %v3362, %v3328
        %v3393 = vadd.f32 %v3363, %v3331
        %v3394 = vadd.f32 %v3364, %v3333
        %3395 = vst [vmem:[%s207] sm:$0xff] %v3365
        %3396 = vst [vmem:[%s207 + $0x8] sm:$0xff] %v3366
        %3397 = vst [vmem:[%s207 + $0x10] sm:$0xff] %v3367
        %3398 = vst [vmem:[%s207 + $0x18] sm:$0xff] %v3368
        %3399 = vst [vmem:[%s207 + $0x20] sm:$0xff] %v3369
        %3400 = vst [vmem:[%s207 + $0x28] sm:$0xff] %v3370
        %3401 = vst [vmem:[%s207 + $0x30] sm:$0xff] %v3371
        %3402 = vst [vmem:[%s207 + $0x38] sm:$0xff] %v3372
        %3403 = vst [vmem:[%s207 + $0x40] sm:$0xff] %v3373
        %3404 = vst [vmem:[%s207 + $0x48] sm:$0xff] %v3374
        %3405 = vst [vmem:[%s207 + $0x50] sm:$0xff] %v3375
        %3406 = vst [vmem:[%s207 + $0x58] sm:$0xff] %v3376
        %3407 = vst [vmem:[%s207 + $0x60] sm:$0xff] %v3377
        %3408 = vst [vmem:[%s207 + $0x68] sm:$0xff] %v3378
        %3409 = vst [vmem:[%s207 + $0x70] sm:$0xff] %v3379
        %3410 = vst [vmem:[%s207 + $0x78] sm:$0xff] %v3380
        %3411 = vst [vmem:[%s207 + $0x80] sm:$0xff] %v3381
        %3412 = vst [vmem:[%s207 + $0x88] sm:$0xff] %v3382
        %3413 = vst [vmem:[%s207 + $0x90] sm:$0xff] %v3383
        %3414 = vst [vmem:[%s207 + $0x98] sm:$0xff] %v3384
        %3415 = vst [vmem:[%s207 + $0xa0] sm:$0xff] %v3385
        %3416 = vst [vmem:[%s207 + $0xa8] sm:$0xff] %v3386
        %3417 = vst [vmem:[%s207 + $0xb0] sm:$0xff] %v3387
        %3418 = vst [vmem:[%s207 + $0xb8] sm:$0xff] %v3388
        %3419 = vst [vmem:[%s207 + $0xc0] sm:$0xff] %v3389
        %3420 = vst [vmem:[%s207 + $0xc8] sm:$0xff] %v3390
        %3421 = vst [vmem:[%s207 + $0xd0] sm:$0xff] %v3391
        %3422 = vst [vmem:[%s207 + $0xd8] sm:$0xff] %v3392
        %3423 = vst [vmem:[%s207 + $0xe0] sm:$0xff] %v3393
        %3424 = vst [vmem:[%s207 + $0xe8] sm:$0xff] %v3394
        %s3425 = sand.u32 %s97, 1
        %s3426 = scalar_lea.sflag [#allocation5], %s3425
        %s3427 = sand.u32 %s97, 1
        %s3428 = smul.addr %s3427, 256
        %s3429 = scalar_lea.vmem [#allocation8], %s3428
        // Predicated region
        $region41: #{tpu_custom_call.1} parent=31 // pred_check
          %p3430 = pneg %p107
        $region42: #{tpu_custom_call.1} parent=31 // pred_check_branch
          %3432 = sbr.rel (%p3430) target = $region44
        $region43: #{tpu_custom_call.1} parent=31 // pred_region
          %3434 = vsyncadd %s3426, 0
          %s3435 = smul.addr %s21, 32
          %s3436 = smul.addr %s3435, 8
          %s3437 = scalar_lea.hbm %s3, %s3436
          %s3438 = sshll.u32 %s3429, 4
          %s3439 = int_to_ptr.vmem [resolvable:$true] %s3438
          %s3440 = sshll.u32 %s3437, 4
          %s3441 = int_to_ptr.hbm [resolvable:$true] %s3440
          %3446 = dma.vmem_to_hbm [thread:$0]  %s3439, 4096, %s3441, %s3426, 128, 128, 8
        $region44: #{tpu_custom_call.1} parent=31 // pred_fallthru
          _
      $region32: #{tpu_custom_call.1} parent=5 // pred_fallthru
        _
      %p3447 = scmp.le.s32.totalorder 2, %s16
      // Predicated region
      $region45: #{tpu_custom_call.1} parent=5 // pred_check
        %p3448 = pneg %p3447
      $region46: #{tpu_custom_call.1} parent=5 // pred_check_branch
        %3450 = sbr.rel (%p3448) target = $region48
      $region47: #{tpu_custom_call.1} parent=5 // pred_region
        %s3451 = ssub.s32 %s16, 2
        // Predicated region
        $region49: #{tpu_custom_call.1} parent=47 // pred_check
          %p3452 = pneg %p113
        $region50: #{tpu_custom_call.1} parent=47 // pred_check_branch
          %3454 = sbr.rel (%p3452) target = $region52
        $region51: #{tpu_custom_call.1} parent=47 // pred_region
          %s3455 = sand.u32 %s98, 1
          %s3456 = scalar_lea.sflag [#allocation5], %s3455
          %s3457 = sand.u32 %s98, 1
          %s3458 = smul.addr %s3457, 256
          %s3459 = scalar_lea.vmem [#allocation8], %s3458
          %3461 = dma.done %s3456, 4096
        $region52: #{tpu_custom_call.1} parent=47 // pred_fallthru
          _
      $region48: #{tpu_custom_call.1} parent=5 // pred_fallthru
        _
    $region6: #{tpu_custom_call.1} parent=1 // loop_footer
      %s20 = sadd.s32 1, %s16
    $region7: #{tpu_custom_call.1} parent=1 // loop_footer_branch
      %15 = sbr.rel target = $region3
    $region8: #{tpu_custom_call.1} parent=1 // loop_exit
      _
    %3462 = vsyncpa [#allocation4], 1
    %s3463 = scalar_lea.sflag [#allocation4], 1
    %3464 = vsyncpa %s3463, 1
    %3465 = vsyncpa [#allocation7], 1
    %3466 = vsyncpa [#allocation5], 1
    %s3467 = scalar_lea.sflag [#allocation5], 1
    %3468 = vsyncpa %s3467, 1

</llo_original>
